<compile_context>
chip_gen: v6e
topology: v6e:2x2x1
jax: 0.10.0
libtpu: 0.0.40
codegen_flags: <defaults>
</compile_context>

<pallas_src>
import math

import jax
import jax.numpy as jnp
import numpy as np
from jax.experimental import pallas as pl
from jax.experimental.pallas import tpu as pltpu

_EPS = 1e-5
_ACT_DTYPE = jnp.bfloat16      # storage dtype for activations / conv weights


# --------------------------------------------------------------------------
# Generation-aware compiler params
# --------------------------------------------------------------------------

def _vmem_limit_bytes():
    try:
        cap = int(pltpu.get_tpu_info().vmem_capacity_bytes)
    except Exception:
        cap = 128 * 1024 * 1024
    # ~32 MiB on v7x (64 MiB physical), 48 MiB on v5e/v6e (128 MiB physical).
    return int(min(48 * 1024 * 1024, max(32 * 1024 * 1024, cap // 2)))


_VMEM_LIMIT = _vmem_limit_bytes()


def _cparams():
    return pltpu.CompilerParams(
        dimension_semantics=("parallel", "parallel"),
        vmem_limit_bytes=_VMEM_LIMIT)


# --------------------------------------------------------------------------
# Pallas kernels
# --------------------------------------------------------------------------

def _make_conv1_kernel(TN, Wp):
    """3x3 conv (no bias) on the padded input, 9 accumulating MXU dots per
    lane tile (Cin is tiny for the stem, so no folded-K contraction), plus
    masked per-tile [sum, sum^2] BN partials."""

    def kernel(x_ref, mask_ref, w_ref, raw_ref, st_ref):
        tt = pl.program_id(1)
        # 3-tile window of the per-batch resident input: global lanes
        # [tt*TN, (tt+3)*TN); the output tile is the centre TN lanes.
        win = jnp.concatenate([x_ref[tt], x_ref[tt + 1], x_ref[tt + 2]],
                              axis=-1)                                # (Cin, 3TN) bf16
        cout = raw_ref.shape[0]
        acc = jnp.zeros((cout, TN), jnp.float32)
        for dy in range(3):
            for dx in range(3):
                off = TN + (dy - 1) * Wp + (dx - 1)
                acc = acc + jnp.dot(w_ref[dy * 3 + dx], win[:, off:off + TN],
                                    preferred_element_type=jnp.float32)
        raw_ref[...] = acc.astype(raw_ref.dtype)
        mc = mask_ref[tt + 1]                                         # (1, TN)
        accm = jnp.where(mc > 0.0, acc, 0.0)
        st_ref[:, 0:1] = jnp.sum(accm, axis=1, keepdims=True)
        st_ref[:, 1:2] = jnp.sum(accm * accm, axis=1, keepdims=True)

    return kernel


def _make_conv2_kernel(TN, Wp):
    """3x3 conv with conv1's BN+ReLU fused into the load path.  Taps are
    folded on the K axis (one K=9*Cmid MXU dot).  Halo / padding positions are
    neutralised with the 0/1 mask (jnp.where -> NaN-safe for the never-written
    lead/tail tiles of raw1)."""

    def kernel(r_ref, mask_ref, sc_ref, sh_ref, w_ref, raw_ref, st_ref):
        tt = pl.program_id(1)
        win = jnp.concatenate([r_ref[tt], r_ref[tt + 1], r_ref[tt + 2]],
                              axis=-1).astype(jnp.float32)            # (Cmid, 3TN)
        mwin = jnp.concatenate([mask_ref[tt], mask_ref[tt + 1], mask_ref[tt + 2]],
                               axis=-1)                               # (1, 3TN)
        hwin = jnp.where(mwin > 0.0,
                         jnp.maximum(win * sc_ref[...] + sh_ref[...], 0.0),
                         0.0).astype(w_ref.dtype)                     # (Cmid, 3TN) bf16
        taps = jnp.concatenate(
            [hwin[:, TN + (dy - 1) * Wp + (dx - 1):
                  2 * TN + (dy - 1) * Wp + (dx - 1)]
             for dy in range(3) for dx in range(3)], axis=0)          # (9*Cmid, TN)
        acc = jnp.dot(w_ref[...], taps, preferred_element_type=jnp.float32)
        raw_ref[...] = acc.astype(raw_ref.dtype)
        mc = mask_ref[tt + 1]
        accm = jnp.where(mc > 0.0, acc, 0.0)
        st_ref[:, 0:1] = jnp.sum(accm, axis=1, keepdims=True)
        st_ref[:, 1:2] = jnp.sum(accm * accm, axis=1, keepdims=True)

    return kernel


def _make_epilogue_kernel(TN, Wp):
    """Fused epilogue on one lane tile: BN2+ReLU of raw2, SpatialAttention
    (per-pixel channel mean/max + 3x3 conv + sigmoid, all in-register from the
    3-tile window), residual 1x1 conv, and h*chAtt + h*spAtt + residual.
    chAtt is a per-batch scalar read from SMEM."""

    def kernel(r2_ref, mask_ref, sc_ref, sh_ref, ch_ref, sa_ref,
               x_ref, wr_ref, br_ref, o_ref):
        b = pl.program_id(0)
        tt = pl.program_id(1)
        win = jnp.concatenate([r2_ref[tt], r2_ref[tt + 1], r2_ref[tt + 2]],
                              axis=-1).astype(jnp.float32)            # (Cout, 3TN)
        mwin = jnp.concatenate([mask_ref[tt], mask_ref[tt + 1], mask_ref[tt + 2]],
                               axis=-1)
        hwin = jnp.where(mwin > 0.0,
                         jnp.maximum(win * sc_ref[...] + sh_ref[...], 0.0),
                         0.0)                                         # (Cout, 3TN)
        inv_c = 1.0 / float(hwin.shape[0])
        # SpatialAttention: 18 scalar*vector FMAs (weights from SMEM), no MXU.
        sa = jnp.zeros((1, TN), jnp.float32) + sa_ref[18]
        for dy in range(3):
            for dx in range(3):
                off = TN + (dy - 1) * Wp + (dx - 1)
                tap = hwin[:, off:off + TN]                           # (Cout, TN)
                j = dy * 3 + dx
                sa = sa + sa_ref[j] * (jnp.sum(tap, axis=0, keepdims=True) * inv_c)
                sa = sa + sa_ref[9 + j] * jnp.max(tap, axis=0, keepdims=True)
        sp = jax.nn.sigmoid(sa)                                       # (1, TN)
        h = hwin[:, TN:2 * TN]                                        # (Cout, TN)
        res = jnp.dot(wr_ref[...], x_ref[...],
                      preferred_element_type=jnp.float32) + br_ref[...]
        o_ref[...] = h * (ch_ref[b] + sp) + res

    return kernel


# --------------------------------------------------------------------------
# BlockSpec helpers
# --------------------------------------------------------------------------

def _resident_spec(ttot, c, tn):
    """Whole per-batch activation (Ttot, C, TN) resident in VMEM (fetched once
    per batch thanks to the constant index over the tile axis)."""
    return pl.BlockSpec((None, ttot, c, tn), lambda b, t: (b, 0, 0, 0))


def _center_spec(c, tn, shift):
    """One (C, TN) lane tile at global tile index t+shift."""
    return pl.BlockSpec((None, None, c, tn),
                        lambda b, t, _s=shift: (b, t + _s, 0, 0))


def _stats_spec(c):
    return pl.BlockSpec((None, None, c, 2), lambda b, t: (b, t, 0, 0))


def _const_spec(shape):
    n = len(shape)
    return pl.BlockSpec(tuple(shape), lambda b, t, _n=n: (0,) * _n)


def _smem_spec():
    return pl.BlockSpec(memory_space=pltpu.MemorySpace.SMEM)


def _fold_bn(st, count, gamma, beta):
    """Per-tile partials -> global batch mean/var -> per-channel scale/shift."""
    s = jnp.sum(st[..., 0], axis=(0, 1))
    ss = jnp.sum(st[..., 1], axis=(0, 1))
    mean = s / count
    var = jnp.maximum(ss / count - mean * mean, 0.0)
    scale = gamma * jax.lax.rsqrt(var + _EPS)
    shift = beta - mean * scale
    return (scale.reshape(-1, 1).astype(jnp.float32),
            shift.reshape(-1, 1).astype(jnp.float32))


# --------------------------------------------------------------------------
# Forward pass
# --------------------------------------------------------------------------

@jax.jit
def double_conv_forward(x_nchw, p):
    """DoubleConv(in, out, attention=True, residual=True) forward (NCHW API)."""
    B, Cin, H, W = x_nchw.shape
    Hp, Wp = H + 2, W + 2
    S = Hp * Wp
    TN = 128 * max(1, -(-(Wp + 2) // 128))   # lane tile: mult of 128, >= Wp+2
    Tc = -(-S // TN)                         # computed lane tiles per image
    Ttot = Tc + 2                            # + lead/tail halo tiles
    L = Ttot * TN

    Cmid = p['w1'].shape[0]
    Cout = p['w2'].shape[0]

    def to_tiles(a_pad):                     # (B, C, Hp, Wp) -> (B, Ttot, C, TN)
        c = a_pad.shape[1]
        a = a_pad.reshape(B, c, S)
        a = jnp.pad(a, ((0, 0), (0, 0), (TN, L - TN - S)))
        return a.reshape(B, c, Ttot, TN).transpose(0, 2, 1, 3)

    x_t = to_tiles(jnp.pad(x_nchw.astype(_ACT_DTYPE),
                           ((0, 0), (0, 0), (1, 1), (1, 1))))

    # 0/1 validity mask over the padded flattened pixel layout (real pixels=1).
    mhw = jnp.zeros((Hp, Wp), jnp.float32).at[1:H + 1, 1:W + 1].set(1.0)
    mask = jnp.pad(mhw.reshape(-1), (TN, L - TN - S)).reshape(Ttot, 1, TN)

    # ---- conv1 (3x3, no bias) + BN partial stats ----
    w1_9 = jnp.transpose(p['w1'], (2, 3, 0, 1)).reshape(9, Cmid, Cin).astype(_ACT_DTYPE)
    raw1, st1 = pl.pallas_call(
        _make_conv1_kernel(TN, Wp),
        grid=(B, Tc),
        in_specs=[_resident_spec(Ttot, Cin, TN),
                  _const_spec((Ttot, 1, TN)),
                  _const_spec((9, Cmid, Cin))],
        out_specs=(_center_spec(Cmid, TN, 1), _stats_spec(Cmid)),
        out_shape=(jax.ShapeDtypeStruct((B, Ttot, Cmid, TN), _ACT_DTYPE),
                   jax.ShapeDtypeStruct((B, Tc, Cmid, 2), jnp.float32)),
        compiler_params=_cparams(),
    )(x_t, mask, w1_9)
    sc1, sh1 = _fold_bn(st1, B * H * W, p['bn1_g'], p['bn1_b'])

    # ---- conv2 (BN1+ReLU fused into its load path) + BN partial stats ----
    w2f = jnp.transpose(p['w2'], (0, 2, 3, 1)).reshape(Cout, 9 * Cmid).astype(_ACT_DTYPE)
    raw2, st2 = pl.pallas_call(
        _make_conv2_kernel(TN, Wp),
        grid=(B, Tc),
        in_specs=[_resident_spec(Ttot, Cmid, TN),
                  _const_spec((Ttot, 1, TN)),
                  _const_spec((Cmid, 1)),
                  _const_spec((Cmid, 1)),
                  _const_spec((Cout, 9 * Cmid))],
        out_specs=(_center_spec(Cout, TN, 1), _stats_spec(Cout)),
        out_shape=(jax.ShapeDtypeStruct((B, Ttot, Cout, TN), _ACT_DTYPE),
                   jax.ShapeDtypeStruct((B, Tc, Cout, 2), jnp.float32)),
        compiler_params=_cparams(),
    )(raw1, mask, sc1, sh1, w2f)
    sc2, sh2 = _fold_bn(st2, B * H * W, p['bn2_g'], p['bn2_b'])

    # ---- ChannelAttention: global avg/max pools + tiny shared MLP (XLA) ----
    # (Fused reduce over raw2; C -> ceil(C/16) -> 1 on (B, C) is far too small
    #  for the MXU, so it stays in plain XLA as the review recommends.)
    m4 = mask[None] > 0.0
    h2x = jnp.where(m4,
                    jnp.maximum(raw2.astype(jnp.float32) * sc2.reshape(1, 1, Cout, 1)
                                + sh2.reshape(1, 1, Cout, 1), 0.0),
                    0.0)
    avg = jnp.sum(h2x, axis=(1, 3)) / (H * W)                 # (B, Cout)
    mx = jnp.max(h2x, axis=(1, 3))                            # (B, Cout)

    def ca_mlp(v):
        h = v @ p['ca_w1'][:, :, 0, 0].T + p['ca_b1']
        h = h @ p['ca_w2'][:, :, 1, 1].T + p['ca_b2']   # 3x3 on a 1x1 map == center tap
        h = h @ p['ca_w3'][:, :, 0, 0].T + p['ca_b3']
        return h

    ch = jax.nn.sigmoid(ca_mlp(avg) + ca_mlp(mx))[:, 0]       # (B,) per-batch gate

    # ---- fused epilogue: BN2+ReLU, spatial attention, residual, combine ----
    sa_vec = jnp.concatenate([p['sa_w'][0, 0].reshape(-1),
                              p['sa_w'][0, 1].reshape(-1),
                              p['sa_b'].reshape(-1)]).astype(jnp.float32)   # (19,)
    wrf = p['wr'][:, :, 0, 0].astype(_ACT_DTYPE)
    brf = p['br'].reshape(Cout, 1).astype(jnp.float32)
    out_t = pl.pallas_call(
        _make_epilogue_kernel(TN, Wp),
        grid=(B, Tc),
        in_specs=[_resident_spec(Ttot, Cout, TN),      # raw2 (per-batch resident)
                  _const_spec((Ttot, 1, TN)),          # mask
                  _const_spec((Cout, 1)),              # sc2
                  _const_spec((Cout, 1)),              # sh2
                  _smem_spec(),                        # channel gate (B,)
                  _smem_spec(),                        # spatial-att weights (19,)
                  _center_spec(Cin, TN, 1),            # x tile (residual input)
                  _const_spec((Cout, Cin)),            # residual 1x1 weight
                  _const_spec((Cout, 1))],             # residual bias
        out_specs=_center_spec(Cout, TN, 0),
        out_shape=jax.ShapeDtypeStruct((B, Tc, Cout, TN), jnp.float32),
        compiler_params=_cparams(),
    )(raw2, mask, sc2, sh2, ch, sa_vec, x_t, wrf, brf)

    out = out_t.transpose(0, 2, 1, 3).reshape(B, Cout, Tc * TN)[:, :, :S]
    out = out.reshape(B, Cout, Hp, Wp)[:, :, 1:H + 1, 1:W + 1]
    return out


# --------------------------------------------------------------------------
# Parameters & pure-JAX reference (mirrors the PyTorch module) for validation
# --------------------------------------------------------------------------

def init_params(key, cin, cout, cmid=None):
    if cmid is None:
        cmid = cout
    cm = math.ceil(cout // 16)   # exactly as the PyTorch module (needs cout >= 16)
    ks = jax.random.split(key, 12)

    def w(k, shape, fan_in):
        return jax.random.normal(k, shape, jnp.float32) / math.sqrt(fan_in)

    return {
        'w1': w(ks[0], (cmid, cin, 3, 3), cin * 9),
        'bn1_g': 1.0 + 0.1 * jax.random.normal(ks[1], (cmid,), jnp.float32),
        'bn1_b': 0.1 * jax.random.normal(ks[2], (cmid,), jnp.float32),
        'w2': w(ks[3], (cout, cmid, 3, 3), cmid * 9),
        'bn2_g': 1.0 + 0.1 * jax.random.normal(ks[4], (cout,), jnp.float32),
        'bn2_b': 0.1 * jax.random.normal(ks[5], (cout,), jnp.float32),
        'wr': w(ks[6], (cout, cin, 1, 1), cin),
        'br': 0.1 * jax.random.normal(ks[7], (cout,), jnp.float32),
        'ca_w1': w(ks[8], (cm, cout, 1, 1), cout),
        'ca_b1': jnp.full((cm,), 0.05, jnp.float32),
        'ca_w2': w(ks[9], (cm, cm, 3, 3), cm * 9),
        'ca_b2': jnp.full((cm,), -0.05, jnp.float32),
        'ca_w3': w(ks[10], (1, cm, 1, 1), cm),
        'ca_b3': jnp.full((1,), 0.02, jnp.float32),
        'sa_w': w(ks[11], (1, 2, 3, 3), 2 * 9),
        'sa_b': jnp.full((1,), 0.01, jnp.float32),
    }


def _conv2d(x, w, b=None, padding=0):
    out = jax.lax.conv_general_dilated(
        x, w, window_strides=(1, 1),
        padding=[(padding, padding), (padding, padding)],
        dimension_numbers=('NCHW', 'OIHW', 'NCHW'))
    if b is not None:
        out = out + b[None, :, None, None]
    return out


def _bn_train(x, g, b):
    mean = jnp.mean(x, axis=(0, 2, 3), keepdims=True)
    var = jnp.mean(jnp.square(x - mean), axis=(0, 2, 3), keepdims=True)
    return (x - mean) * jax.lax.rsqrt(var + _EPS) * g[None, :, None, None] \
        + b[None, :, None, None]


def reference_forward(x, p):
    res = _conv2d(x, p['wr'], p['br'])
    h = jnp.maximum(_bn_train(_conv2d(x, p['w1'], None, 1), p['bn1_g'], p['bn1_b']), 0.0)
    h = jnp.maximum(_bn_train(_conv2d(h, p['w2'], None, 1), p['bn2_g'], p['bn2_b']), 0.0)
    avg = jnp.mean(h, axis=(2, 3), keepdims=True)
    mx = jnp.max(h.reshape(h.shape[0], h.shape[1], -1), axis=2)[:, :, None, None]

    def cblock(v):
        v = _conv2d(v, p['ca_w1'], p['ca_b1'])
        v = _conv2d(v, p['ca_w2'], p['ca_b2'], 1)
        v = _conv2d(v, p['ca_w3'], p['ca_b3'])
        return v

    ch = jax.nn.sigmoid(cblock(avg) + cblock(mx))
    am = jnp.mean(h, axis=1, keepdims=True)
    mm = jnp.max(h, axis=1, keepdims=True)
    sp = jax.nn.sigmoid(_conv2d(jnp.concatenate([am, mm], axis=1), p['sa_w'], p['sa_b'], 1))
    return h * ch + h * sp + res


# --------------------------------------------------------------------------

if __name__ == "__main__":
    key = jax.random.PRNGKey(0)
    kx, kp = jax.random.split(key)

    B, Cin, H, W = 2, 4, 16, 16
    Cout = 16   # ChannelAttention requires out_channels >= 16 (ceil(C//16) >= 1)

    x = jax.random.normal(kx, (B, Cin, H, W), jnp.float32)
    params = init_params(kp, Cin, Cout)

    out = jax.block_until_ready(double_conv_forward(x, params))
    ref = jax.block_until_ready(reference_forward(x, params))

    assert out.shape == (B, Cout, H, W), out.shape
    # Tolerance accounts for bf16 activation/weight storage in the kernels.
    if not np.allclose(np.asarray(out), np.asarray(ref), atol=1e-1, rtol=1e-1):
        err = float(np.max(np.abs(np.asarray(out) - np.asarray(ref))))
        raise AssertionError(f"kernel/reference mismatch, max abs err = {err}")
    print("KERNEL_OK")
</pallas_src>

<mosaic_0001>
module attributes {stable_mosaic.version = 11 : i64} {
  func.func @kernel(%arg0: i32, %arg1: i32, %arg2: memref<1x5x4x128xbf16, #tpu.memory_space<vmem>>, %arg3: memref<5x1x128xf32, #tpu.memory_space<vmem>>, %arg4: memref<9x16x4xbf16, #tpu.memory_space<vmem>>, %arg5: memref<1x1x16x128xbf16, #tpu.memory_space<vmem>>, %arg6: memref<1x1x16x2xf32, #tpu.memory_space<vmem>>) attributes {dimension_semantics = [#tpu.dimension_semantics<parallel>, #tpu.dimension_semantics<parallel>], iteration_bounds = array<i64: 2, 3>, scalar_prefetch = 0 : i64, scratch_operands = 0 : i64, tpu.core_type = #tpu.core_type<tc>, window_params = [{transform_indices = @transform_0, window_bounds = array<i64: 1, 5, 4, 128>}, {pipeline_mode = #tpu.pipeline_mode<synchronous>, transform_indices = @transform_1, window_bounds = array<i64: 5, 1, 128>}, {pipeline_mode = #tpu.pipeline_mode<synchronous>, transform_indices = @transform_2, window_bounds = array<i64: 9, 16, 4>}, {transform_indices = @transform_3, window_bounds = array<i64: 1, 1, 16, 128>}, {transform_indices = @transform_4, window_bounds = array<i64: 1, 1, 16, 2>}]} {
    %c0 = arith.constant 0 : index
    %0 = arith.index_cast %arg1 : i32 to index
    %c0_0 = arith.constant 0 : index
    %c0_1 = arith.constant 0 : index
    %1 = vector.load %arg2[%c0, %0, %c0_0, %c0_1] : memref<1x5x4x128xbf16, #tpu.memory_space<vmem>>, vector<1x1x4x128xbf16>
    %2 = vector.shape_cast %1 : vector<1x1x4x128xbf16> to vector<4x128xbf16>
    %c1_i32 = arith.constant 1 : i32
    %3 = arith.addi %arg1, %c1_i32 : i32
    %c0_2 = arith.constant 0 : index
    %4 = arith.index_cast %3 : i32 to index
    %c0_3 = arith.constant 0 : index
    %c0_4 = arith.constant 0 : index
    %5 = vector.load %arg2[%c0_2, %4, %c0_3, %c0_4] : memref<1x5x4x128xbf16, #tpu.memory_space<vmem>>, vector<1x1x4x128xbf16>
    %6 = vector.shape_cast %5 : vector<1x1x4x128xbf16> to vector<4x128xbf16>
    %c2_i32 = arith.constant 2 : i32
    %7 = arith.addi %arg1, %c2_i32 : i32
    %c0_5 = arith.constant 0 : index
    %8 = arith.index_cast %7 : i32 to index
    %c0_6 = arith.constant 0 : index
    %c0_7 = arith.constant 0 : index
    %9 = vector.load %arg2[%c0_5, %8, %c0_6, %c0_7] : memref<1x5x4x128xbf16, #tpu.memory_space<vmem>>, vector<1x1x4x128xbf16>
    %10 = vector.shape_cast %9 : vector<1x1x4x128xbf16> to vector<4x128xbf16>
    %11 = tpu.concatenate %2, %6, %10 in 1 : vector<4x128xbf16>, vector<4x128xbf16>, vector<4x128xbf16> -> vector<4x384xbf16>
    %cst = arith.constant 0.000000e+00 : f32
    %12 = vector.broadcast %cst : f32 to vector<16x128xf32>
    %c0_8 = arith.constant 0 : index
    %c0_9 = arith.constant 0 : index
    %c0_10 = arith.constant 0 : index
    %13 = vector.load %arg4[%c0_8, %c0_9, %c0_10] : memref<9x16x4xbf16, #tpu.memory_space<vmem>>, vector<1x16x4xbf16>
    %14 = vector.shape_cast %13 : vector<1x16x4xbf16> to vector<16x4xbf16>
    %15 = vector.extract_strided_slice %11 {offsets = [0, 109], sizes = [4, 128], strides = [1, 1]} : vector<4x384xbf16> to vector<4x128xbf16>
    %cst_11 = arith.constant dense<0.000000e+00> : vector<16x128xf32>
    %16 = tpu.matmul %14, %15, %cst_11 {dimension_numbers = #tpu.dot_dimension_numbers<[1], [0], [0], [1], [0, 0, 1, 1], [], []>} : vector<16x4xbf16>, vector<4x128xbf16>, vector<16x128xf32> -> vector<16x128xf32>
    %17 = arith.addf %12, %16 : vector<16x128xf32>
    %c1 = arith.constant 1 : index
    %c0_12 = arith.constant 0 : index
    %c0_13 = arith.constant 0 : index
    %18 = vector.load %arg4[%c1, %c0_12, %c0_13] : memref<9x16x4xbf16, #tpu.memory_space<vmem>>, vector<1x16x4xbf16>
    %19 = vector.shape_cast %18 : vector<1x16x4xbf16> to vector<16x4xbf16>
    %20 = vector.extract_strided_slice %11 {offsets = [0, 110], sizes = [4, 128], strides = [1, 1]} : vector<4x384xbf16> to vector<4x128xbf16>
    %cst_14 = arith.constant dense<0.000000e+00> : vector<16x128xf32>
    %21 = tpu.matmul %19, %20, %cst_14 {dimension_numbers = #tpu.dot_dimension_numbers<[1], [0], [0], [1], [0, 0, 1, 1], [], []>} : vector<16x4xbf16>, vector<4x128xbf16>, vector<16x128xf32> -> vector<16x128xf32>
    %22 = arith.addf %17, %21 : vector<16x128xf32>
    %c2 = arith.constant 2 : index
    %c0_15 = arith.constant 0 : index
    %c0_16 = arith.constant 0 : index
    %23 = vector.load %arg4[%c2, %c0_15, %c0_16] : memref<9x16x4xbf16, #tpu.memory_space<vmem>>, vector<1x16x4xbf16>
    %24 = vector.shape_cast %23 : vector<1x16x4xbf16> to vector<16x4xbf16>
    %25 = vector.extract_strided_slice %11 {offsets = [0, 111], sizes = [4, 128], strides = [1, 1]} : vector<4x384xbf16> to vector<4x128xbf16>
    %cst_17 = arith.constant dense<0.000000e+00> : vector<16x128xf32>
    %26 = tpu.matmul %24, %25, %cst_17 {dimension_numbers = #tpu.dot_dimension_numbers<[1], [0], [0], [1], [0, 0, 1, 1], [], []>} : vector<16x4xbf16>, vector<4x128xbf16>, vector<16x128xf32> -> vector<16x128xf32>
    %27 = arith.addf %22, %26 : vector<16x128xf32>
    %c3 = arith.constant 3 : index
    %c0_18 = arith.constant 0 : index
    %c0_19 = arith.constant 0 : index
    %28 = vector.load %arg4[%c3, %c0_18, %c0_19] : memref<9x16x4xbf16, #tpu.memory_space<vmem>>, vector<1x16x4xbf16>
    %29 = vector.shape_cast %28 : vector<1x16x4xbf16> to vector<16x4xbf16>
    %30 = vector.extract_strided_slice %11 {offsets = [0, 127], sizes = [4, 128], strides = [1, 1]} : vector<4x384xbf16> to vector<4x128xbf16>
    %cst_20 = arith.constant dense<0.000000e+00> : vector<16x128xf32>
    %31 = tpu.matmul %29, %30, %cst_20 {dimension_numbers = #tpu.dot_dimension_numbers<[1], [0], [0], [1], [0, 0, 1, 1], [], []>} : vector<16x4xbf16>, vector<4x128xbf16>, vector<16x128xf32> -> vector<16x128xf32>
    %32 = arith.addf %27, %31 : vector<16x128xf32>
    %c4 = arith.constant 4 : index
    %c0_21 = arith.constant 0 : index
    %c0_22 = arith.constant 0 : index
    %33 = vector.load %arg4[%c4, %c0_21, %c0_22] : memref<9x16x4xbf16, #tpu.memory_space<vmem>>, vector<1x16x4xbf16>
    %34 = vector.shape_cast %33 : vector<1x16x4xbf16> to vector<16x4xbf16>
    %35 = vector.extract_strided_slice %11 {offsets = [0, 128], sizes = [4, 128], strides = [1, 1]} : vector<4x384xbf16> to vector<4x128xbf16>
    %cst_23 = arith.constant dense<0.000000e+00> : vector<16x128xf32>
    %36 = tpu.matmul %34, %35, %cst_23 {dimension_numbers = #tpu.dot_dimension_numbers<[1], [0], [0], [1], [0, 0, 1, 1], [], []>} : vector<16x4xbf16>, vector<4x128xbf16>, vector<16x128xf32> -> vector<16x128xf32>
    %37 = arith.addf %32, %36 : vector<16x128xf32>
    %c5 = arith.constant 5 : index
    %c0_24 = arith.constant 0 : index
    %c0_25 = arith.constant 0 : index
    %38 = vector.load %arg4[%c5, %c0_24, %c0_25] : memref<9x16x4xbf16, #tpu.memory_space<vmem>>, vector<1x16x4xbf16>
    %39 = vector.shape_cast %38 : vector<1x16x4xbf16> to vector<16x4xbf16>
    %40 = vector.extract_strided_slice %11 {offsets = [0, 129], sizes = [4, 128], strides = [1, 1]} : vector<4x384xbf16> to vector<4x128xbf16>
    %cst_26 = arith.constant dense<0.000000e+00> : vector<16x128xf32>
    %41 = tpu.matmul %39, %40, %cst_26 {dimension_numbers = #tpu.dot_dimension_numbers<[1], [0], [0], [1], [0, 0, 1, 1], [], []>} : vector<16x4xbf16>, vector<4x128xbf16>, vector<16x128xf32> -> vector<16x128xf32>
    %42 = arith.addf %37, %41 : vector<16x128xf32>
    %c6 = arith.constant 6 : index
    %c0_27 = arith.constant 0 : index
    %c0_28 = arith.constant 0 : index
    %43 = vector.load %arg4[%c6, %c0_27, %c0_28] : memref<9x16x4xbf16, #tpu.memory_space<vmem>>, vector<1x16x4xbf16>
    %44 = vector.shape_cast %43 : vector<1x16x4xbf16> to vector<16x4xbf16>
    %45 = vector.extract_strided_slice %11 {offsets = [0, 145], sizes = [4, 128], strides = [1, 1]} : vector<4x384xbf16> to vector<4x128xbf16>
    %cst_29 = arith.constant dense<0.000000e+00> : vector<16x128xf32>
    %46 = tpu.matmul %44, %45, %cst_29 {dimension_numbers = #tpu.dot_dimension_numbers<[1], [0], [0], [1], [0, 0, 1, 1], [], []>} : vector<16x4xbf16>, vector<4x128xbf16>, vector<16x128xf32> -> vector<16x128xf32>
    %47 = arith.addf %42, %46 : vector<16x128xf32>
    %c7 = arith.constant 7 : index
    %c0_30 = arith.constant 0 : index
    %c0_31 = arith.constant 0 : index
    %48 = vector.load %arg4[%c7, %c0_30, %c0_31] : memref<9x16x4xbf16, #tpu.memory_space<vmem>>, vector<1x16x4xbf16>
    %49 = vector.shape_cast %48 : vector<1x16x4xbf16> to vector<16x4xbf16>
    %50 = vector.extract_strided_slice %11 {offsets = [0, 146], sizes = [4, 128], strides = [1, 1]} : vector<4x384xbf16> to vector<4x128xbf16>
    %cst_32 = arith.constant dense<0.000000e+00> : vector<16x128xf32>
    %51 = tpu.matmul %49, %50, %cst_32 {dimension_numbers = #tpu.dot_dimension_numbers<[1], [0], [0], [1], [0, 0, 1, 1], [], []>} : vector<16x4xbf16>, vector<4x128xbf16>, vector<16x128xf32> -> vector<16x128xf32>
    %52 = arith.addf %47, %51 : vector<16x128xf32>
    %c8 = arith.constant 8 : index
    %c0_33 = arith.constant 0 : index
    %c0_34 = arith.constant 0 : index
    %53 = vector.load %arg4[%c8, %c0_33, %c0_34] : memref<9x16x4xbf16, #tpu.memory_space<vmem>>, vector<1x16x4xbf16>
    %54 = vector.shape_cast %53 : vector<1x16x4xbf16> to vector<16x4xbf16>
    %55 = vector.extract_strided_slice %11 {offsets = [0, 147], sizes = [4, 128], strides = [1, 1]} : vector<4x384xbf16> to vector<4x128xbf16>
    %cst_35 = arith.constant dense<0.000000e+00> : vector<16x128xf32>
    %56 = tpu.matmul %54, %55, %cst_35 {dimension_numbers = #tpu.dot_dimension_numbers<[1], [0], [0], [1], [0, 0, 1, 1], [], []>} : vector<16x4xbf16>, vector<4x128xbf16>, vector<16x128xf32> -> vector<16x128xf32>
    %57 = arith.addf %52, %56 : vector<16x128xf32>
    %58 = arith.truncf %57 : vector<16x128xf32> to vector<16x128xbf16>
    %c0_36 = arith.constant 0 : index
    %c0_37 = arith.constant 0 : index
    %c0_38 = arith.constant 0 : index
    %c0_39 = arith.constant 0 : index
    %59 = vector.load %arg5[%c0_36, %c0_37, %c0_38, %c0_39] : memref<1x1x16x128xbf16, #tpu.memory_space<vmem>>, vector<1x1x16x128xbf16>
    %60 = vector.shape_cast %59 : vector<1x1x16x128xbf16> to vector<16x128xbf16>
    %61 = vector.shape_cast %58 : vector<16x128xbf16> to vector<1x1x16x128xbf16>
    tpu.vector_store %arg5[%c0_36, %c0_37, %c0_38, %c0_39], %61 {strides = array<i32>} : memref<1x1x16x128xbf16, #tpu.memory_space<vmem>>, vector<1x1x16x128xbf16>,
    %c1_i32_40 = arith.constant 1 : i32
    %62 = arith.addi %arg1, %c1_i32_40 : i32
    %63 = arith.index_cast %62 : i32 to index
    %c0_41 = arith.constant 0 : index
    %c0_42 = arith.constant 0 : index
    %64 = vector.load %arg3[%63, %c0_41, %c0_42] : memref<5x1x128xf32, #tpu.memory_space<vmem>>, vector<1x1x128xf32>
    %65 = vector.shape_cast %64 : vector<1x1x128xf32> to vector<1x128xf32>
    %cst_43 = arith.constant 0.000000e+00 : f32
    %66 = vector.broadcast %cst_43 : f32 to vector<1x128xf32>
    %67 = arith.cmpf ogt, %65, %66 : vector<1x128xf32>
    %cst_44 = arith.constant 0.000000e+00 : f32
    %68 = vector.shape_cast %67 : vector<1x128xi1> to vector<1x128xi1>
    %69 = vector.broadcast %68 : vector<1x128xi1> to vector<16x128xi1>
    %70 = vector.broadcast %cst_44 : f32 to vector<16x128xf32>
    %71 = arith.select %69, %57, %70 : vector<16x128xi1>, vector<16x128xf32>
    %cst_45 = arith.constant dense<0.000000e+00> : vector<16xf32>
    %72 = vector.multi_reduction <add>, %71, %cst_45 [1] : vector<16x128xf32> to vector<16xf32>
    %73 = vector.shape_cast %72 : vector<16xf32> to vector<16x1xf32>
    %c0_46 = arith.constant 0 : index
    %c0_47 = arith.constant 0 : index
    %c0_48 = arith.constant 0 : index
    %c0_49 = arith.constant 0 : index
    %74 = vector.load %arg6[%c0_46, %c0_47, %c0_48, %c0_49] : memref<1x1x16x2xf32, #tpu.memory_space<vmem>>, vector<1x1x16x1xf32>
    %75 = vector.shape_cast %74 : vector<1x1x16x1xf32> to vector<16x1xf32>
    %76 = vector.shape_cast %73 : vector<16x1xf32> to vector<1x1x16x1xf32>
    tpu.vector_store %arg6[%c0_46, %c0_47, %c0_48, %c0_49], %76 {strides = array<i32>} : memref<1x1x16x2xf32, #tpu.memory_space<vmem>>, vector<1x1x16x1xf32>,
    %77 = arith.mulf %71, %71 : vector<16x128xf32>
    %cst_50 = arith.constant dense<0.000000e+00> : vector<16xf32>
    %78 = vector.multi_reduction <add>, %77, %cst_50 [1] : vector<16x128xf32> to vector<16xf32>
    %79 = vector.shape_cast %78 : vector<16xf32> to vector<16x1xf32>
    %c0_51 = arith.constant 0 : index
    %c0_52 = arith.constant 0 : index
    %c0_53 = arith.constant 0 : index
    %c1_54 = arith.constant 1 : index
    %80 = vector.load %arg6[%c0_51, %c0_52, %c0_53, %c1_54] : memref<1x1x16x2xf32, #tpu.memory_space<vmem>>, vector<1x1x16x1xf32>
    %81 = vector.shape_cast %80 : vector<1x1x16x1xf32> to vector<16x1xf32>
    %82 = vector.shape_cast %79 : vector<16x1xf32> to vector<1x1x16x1xf32>
    tpu.vector_store %arg6[%c0_51, %c0_52, %c0_53, %c1_54], %82 {strides = array<i32>} : memref<1x1x16x2xf32, #tpu.memory_space<vmem>>, vector<1x1x16x1xf32>,
    return
  }
  func.func @transform_0(%arg0: i32, %arg1: i32) -> (i32, i32, i32, i32) {
    %c0_i32 = arith.constant 0 : i32
    %c0_i32_0 = arith.constant 0 : i32
    %c0_i32_1 = arith.constant 0 : i32
    %c0_i32_2 = arith.constant 0 : i32
    return %arg0, %c0_i32, %c0_i32_0, %c0_i32_1 : i32, i32, i32, i32
  }
  func.func @transform_1(%arg0: i32, %arg1: i32) -> (i32, i32, i32) {
    %c0_i32 = arith.constant 0 : i32
    %c0_i32_0 = arith.constant 0 : i32
    %c0_i32_1 = arith.constant 0 : i32
    %c0_i32_2 = arith.constant 0 : i32
    return %c0_i32, %c0_i32_0, %c0_i32_1 : i32, i32, i32
  }
  func.func @transform_2(%arg0: i32, %arg1: i32) -> (i32, i32, i32) {
    %c0_i32 = arith.constant 0 : i32
    %c0_i32_0 = arith.constant 0 : i32
    %c0_i32_1 = arith.constant 0 : i32
    %c0_i32_2 = arith.constant 0 : i32
    return %c0_i32, %c0_i32_0, %c0_i32_1 : i32, i32, i32
  }
  func.func @transform_3(%arg0: i32, %arg1: i32) -> (i32, i32, i32, i32) {
    %c1_i32 = arith.constant 1 : i32
    %0 = arith.addi %arg1, %c1_i32 : i32
    %c0_i32 = arith.constant 0 : i32
    %c0_i32_0 = arith.constant 0 : i32
    %c0_i32_1 = arith.constant 0 : i32
    return %arg0, %0, %c0_i32, %c0_i32_0 : i32, i32, i32, i32
  }
  func.func @transform_4(%arg0: i32, %arg1: i32) -> (i32, i32, i32, i32) {
    %c0_i32 = arith.constant 0 : i32
    %c0_i32_0 = arith.constant 0 : i32
    %c0_i32_1 = arith.constant 0 : i32
    return %arg0, %arg1, %c0_i32, %c0_i32_0 : i32, i32, i32, i32
  }
}

module attributes {stable_mosaic.version = 11 : i64} {
  func.func @kernel(%arg0: i32, %arg1: i32, %arg2: memref<1x5x16x128xbf16, #tpu.memory_space<vmem>>, %arg3: memref<5x1x128xf32, #tpu.memory_space<vmem>>, %arg4: memref<16x1xf32, #tpu.memory_space<vmem>>, %arg5: memref<16x1xf32, #tpu.memory_space<vmem>>, %arg6: memref<16x144xbf16, #tpu.memory_space<vmem>>, %arg7: memref<1x1x16x128xbf16, #tpu.memory_space<vmem>>, %arg8: memref<1x1x16x2xf32, #tpu.memory_space<vmem>>) attributes {dimension_semantics = [#tpu.dimension_semantics<parallel>, #tpu.dimension_semantics<parallel>], iteration_bounds = array<i64: 2, 3>, scalar_prefetch = 0 : i64, scratch_operands = 0 : i64, tpu.core_type = #tpu.core_type<tc>, window_params = [{transform_indices = @transform_0, window_bounds = array<i64: 1, 5, 16, 128>}, {pipeline_mode = #tpu.pipeline_mode<synchronous>, transform_indices = @transform_1, window_bounds = array<i64: 5, 1, 128>}, {pipeline_mode = #tpu.pipeline_mode<synchronous>, transform_indices = @transform_2, window_bounds = array<i64: 16, 1>}, {pipeline_mode = #tpu.pipeline_mode<synchronous>, transform_indices = @transform_3, window_bounds = array<i64: 16, 1>}, {pipeline_mode = #tpu.pipeline_mode<synchronous>, transform_indices = @transform_4, window_bounds = array<i64: 16, 144>}, {transform_indices = @transform_5, window_bounds = array<i64: 1, 1, 16, 128>}, {transform_indices = @transform_6, window_bounds = array<i64: 1, 1, 16, 2>}]} {
    %c0 = arith.constant 0 : index
    %0 = arith.index_cast %arg1 : i32 to index
    %c0_0 = arith.constant 0 : index
    %c0_1 = arith.constant 0 : index
    %1 = vector.load %arg2[%c0, %0, %c0_0, %c0_1] : memref<1x5x16x128xbf16, #tpu.memory_space<vmem>>, vector<1x1x16x128xbf16>
    %2 = vector.shape_cast %1 : vector<1x1x16x128xbf16> to vector<16x128xbf16>
    %c1_i32 = arith.constant 1 : i32
    %3 = arith.addi %arg1, %c1_i32 : i32
    %c0_2 = arith.constant 0 : index
    %4 = arith.index_cast %3 : i32 to index
    %c0_3 = arith.constant 0 : index
    %c0_4 = arith.constant 0 : index
    %5 = vector.load %arg2[%c0_2, %4, %c0_3, %c0_4] : memref<1x5x16x128xbf16, #tpu.memory_space<vmem>>, vector<1x1x16x128xbf16>
    %6 = vector.shape_cast %5 : vector<1x1x16x128xbf16> to vector<16x128xbf16>
    %c2_i32 = arith.constant 2 : i32
    %7 = arith.addi %arg1, %c2_i32 : i32
    %c0_5 = arith.constant 0 : index
    %8 = arith.index_cast %7 : i32 to index
    %c0_6 = arith.constant 0 : index
    %c0_7 = arith.constant 0 : index
    %9 = vector.load %arg2[%c0_5, %8, %c0_6, %c0_7] : memref<1x5x16x128xbf16, #tpu.memory_space<vmem>>, vector<1x1x16x128xbf16>
    %10 = vector.shape_cast %9 : vector<1x1x16x128xbf16> to vector<16x128xbf16>
    %11 = tpu.concatenate %2, %6, %10 in 1 : vector<16x128xbf16>, vector<16x128xbf16>, vector<16x128xbf16> -> vector<16x384xbf16>
    %12 = arith.extf %11 : vector<16x384xbf16> to vector<16x384xf32>
    %13 = arith.index_cast %arg1 : i32 to index
    %c0_8 = arith.constant 0 : index
    %c0_9 = arith.constant 0 : index
    %14 = vector.load %arg3[%13, %c0_8, %c0_9] : memref<5x1x128xf32, #tpu.memory_space<vmem>>, vector<1x1x128xf32>
    %15 = vector.shape_cast %14 : vector<1x1x128xf32> to vector<1x128xf32>
    %c1_i32_10 = arith.constant 1 : i32
    %16 = arith.addi %arg1, %c1_i32_10 : i32
    %17 = arith.index_cast %16 : i32 to index
    %c0_11 = arith.constant 0 : index
    %c0_12 = arith.constant 0 : index
    %18 = vector.load %arg3[%17, %c0_11, %c0_12] : memref<5x1x128xf32, #tpu.memory_space<vmem>>, vector<1x1x128xf32>
    %19 = vector.shape_cast %18 : vector<1x1x128xf32> to vector<1x128xf32>
    %c2_i32_13 = arith.constant 2 : i32
    %20 = arith.addi %arg1, %c2_i32_13 : i32
    %21 = arith.index_cast %20 : i32 to index
    %c0_14 = arith.constant 0 : index
    %c0_15 = arith.constant 0 : index
    %22 = vector.load %arg3[%21, %c0_14, %c0_15] : memref<5x1x128xf32, #tpu.memory_space<vmem>>, vector<1x1x128xf32>
    %23 = vector.shape_cast %22 : vector<1x1x128xf32> to vector<1x128xf32>
    %24 = tpu.concatenate %15, %19, %23 in 1 : vector<1x128xf32>, vector<1x128xf32>, vector<1x128xf32> -> vector<1x384xf32>
    %cst = arith.constant 0.000000e+00 : f32
    %25 = vector.broadcast %cst : f32 to vector<1x384xf32>
    %26 = arith.cmpf ogt, %24, %25 : vector<1x384xf32>
    %c0_16 = arith.constant 0 : index
    %c0_17 = arith.constant 0 : index
    %27 = vector.load %arg4[%c0_16, %c0_17] : memref<16x1xf32, #tpu.memory_space<vmem>>, vector<16x1xf32>
    %28 = vector.broadcast %27 : vector<16x1xf32> to vector<16x384xf32>
    %29 = arith.mulf %12, %28 : vector<16x384xf32>
    %c0_18 = arith.constant 0 : index
    %c0_19 = arith.constant 0 : index
    %30 = vector.load %arg5[%c0_18, %c0_19] : memref<16x1xf32, #tpu.memory_space<vmem>>, vector<16x1xf32>
    %31 = vector.broadcast %30 : vector<16x1xf32> to vector<16x384xf32>
    %32 = arith.addf %29, %31 : vector<16x384xf32>
    %cst_20 = arith.constant 0.000000e+00 : f32
    %33 = vector.broadcast %cst_20 : f32 to vector<16x384xf32>
    %34 = arith.maximumf %32, %33 : vector<16x384xf32>
    %cst_21 = arith.constant 0.000000e+00 : f32
    %35 = vector.shape_cast %26 : vector<1x384xi1> to vector<1x384xi1>
    %36 = vector.broadcast %35 : vector<1x384xi1> to vector<16x384xi1>
    %37 = vector.broadcast %cst_21 : f32 to vector<16x384xf32>
    %38 = arith.select %36, %34, %37 : vector<16x384xi1>, vector<16x384xf32>
    %39 = arith.truncf %38 : vector<16x384xf32> to vector<16x384xbf16>
    %40 = vector.extract_strided_slice %39 {offsets = [0, 109], sizes = [16, 128], strides = [1, 1]} : vector<16x384xbf16> to vector<16x128xbf16>
    %41 = vector.extract_strided_slice %39 {offsets = [0, 110], sizes = [16, 128], strides = [1, 1]} : vector<16x384xbf16> to vector<16x128xbf16>
    %42 = vector.extract_strided_slice %39 {offsets = [0, 111], sizes = [16, 128], strides = [1, 1]} : vector<16x384xbf16> to vector<16x128xbf16>
    %43 = vector.extract_strided_slice %39 {offsets = [0, 127], sizes = [16, 128], strides = [1, 1]} : vector<16x384xbf16> to vector<16x128xbf16>
    %44 = vector.extract_strided_slice %39 {offsets = [0, 128], sizes = [16, 128], strides = [1, 1]} : vector<16x384xbf16> to vector<16x128xbf16>
    %45 = vector.extract_strided_slice %39 {offsets = [0, 129], sizes = [16, 128], strides = [1, 1]} : vector<16x384xbf16> to vector<16x128xbf16>
    %46 = vector.extract_strided_slice %39 {offsets = [0, 145], sizes = [16, 128], strides = [1, 1]} : vector<16x384xbf16> to vector<16x128xbf16>
    %47 = vector.extract_strided_slice %39 {offsets = [0, 146], sizes = [16, 128], strides = [1, 1]} : vector<16x384xbf16> to vector<16x128xbf16>
    %48 = vector.extract_strided_slice %39 {offsets = [0, 147], sizes = [16, 128], strides = [1, 1]} : vector<16x384xbf16> to vector<16x128xbf16>
    %49 = tpu.concatenate %40, %41, %42, %43, %44, %45, %46, %47, %48 in 0 : vector<16x128xbf16>, vector<16x128xbf16>, vector<16x128xbf16>, vector<16x128xbf16>, vector<16x128xbf16>, vector<16x128xbf16>, vector<16x128xbf16>, vector<16x128xbf16>, vector<16x128xbf16> -> vector<144x128xbf16>
    %c0_22 = arith.constant 0 : index
    %c0_23 = arith.constant 0 : index
    %50 = vector.load %arg6[%c0_22, %c0_23] : memref<16x144xbf16, #tpu.memory_space<vmem>>, vector<16x144xbf16>
    %cst_24 = arith.constant dense<0.000000e+00> : vector<16x128xf32>
    %51 = tpu.matmul %50, %49, %cst_24 {dimension_numbers = #tpu.dot_dimension_numbers<[1], [0], [0], [1], [0, 0, 1, 1], [], []>} : vector<16x144xbf16>, vector<144x128xbf16>, vector<16x128xf32> -> vector<16x128xf32>
    %52 = arith.truncf %51 : vector<16x128xf32> to vector<16x128xbf16>
    %c0_25 = arith.constant 0 : index
    %c0_26 = arith.constant 0 : index
    %c0_27 = arith.constant 0 : index
    %c0_28 = arith.constant 0 : index
    %53 = vector.load %arg7[%c0_25, %c0_26, %c0_27, %c0_28] : memref<1x1x16x128xbf16, #tpu.memory_space<vmem>>, vector<1x1x16x128xbf16>
    %54 = vector.shape_cast %53 : vector<1x1x16x128xbf16> to vector<16x128xbf16>
    %55 = vector.shape_cast %52 : vector<16x128xbf16> to vector<1x1x16x128xbf16>
    tpu.vector_store %arg7[%c0_25, %c0_26, %c0_27, %c0_28], %55 {strides = array<i32>} : memref<1x1x16x128xbf16, #tpu.memory_space<vmem>>, vector<1x1x16x128xbf16>,
    %c1_i32_29 = arith.constant 1 : i32
    %56 = arith.addi %arg1, %c1_i32_29 : i32
    %57 = arith.index_cast %56 : i32 to index
    %c0_30 = arith.constant 0 : index
    %c0_31 = arith.constant 0 : index
    %58 = vector.load %arg3[%57, %c0_30, %c0_31] : memref<5x1x128xf32, #tpu.memory_space<vmem>>, vector<1x1x128xf32>
    %59 = vector.shape_cast %58 : vector<1x1x128xf32> to vector<1x128xf32>
    %cst_32 = arith.constant 0.000000e+00 : f32
    %60 = vector.broadcast %cst_32 : f32 to vector<1x128xf32>
    %61 = arith.cmpf ogt, %59, %60 : vector<1x128xf32>
    %cst_33 = arith.constant 0.000000e+00 : f32
    %62 = vector.shape_cast %61 : vector<1x128xi1> to vector<1x128xi1>
    %63 = vector.broadcast %62 : vector<1x128xi1> to vector<16x128xi1>
    %64 = vector.broadcast %cst_33 : f32 to vector<16x128xf32>
    %65 = arith.select %63, %51, %64 : vector<16x128xi1>, vector<16x128xf32>
    %cst_34 = arith.constant dense<0.000000e+00> : vector<16xf32>
    %66 = vector.multi_reduction <add>, %65, %cst_34 [1] : vector<16x128xf32> to vector<16xf32>
    %67 = vector.shape_cast %66 : vector<16xf32> to vector<16x1xf32>
    %c0_35 = arith.constant 0 : index
    %c0_36 = arith.constant 0 : index
    %c0_37 = arith.constant 0 : index
    %c0_38 = arith.constant 0 : index
    %68 = vector.load %arg8[%c0_35, %c0_36, %c0_37, %c0_38] : memref<1x1x16x2xf32, #tpu.memory_space<vmem>>, vector<1x1x16x1xf32>
    %69 = vector.shape_cast %68 : vector<1x1x16x1xf32> to vector<16x1xf32>
    %70 = vector.shape_cast %67 : vector<16x1xf32> to vector<1x1x16x1xf32>
    tpu.vector_store %arg8[%c0_35, %c0_36, %c0_37, %c0_38], %70 {strides = array<i32>} : memref<1x1x16x2xf32, #tpu.memory_space<vmem>>, vector<1x1x16x1xf32>,
    %71 = arith.mulf %65, %65 : vector<16x128xf32>
    %cst_39 = arith.constant dense<0.000000e+00> : vector<16xf32>
    %72 = vector.multi_reduction <add>, %71, %cst_39 [1] : vector<16x128xf32> to vector<16xf32>
    %73 = vector.shape_cast %72 : vector<16xf32> to vector<16x1xf32>
    %c0_40 = arith.constant 0 : index
    %c0_41 = arith.constant 0 : index
    %c0_42 = arith.constant 0 : index
    %c1 = arith.constant 1 : index
    %74 = vector.load %arg8[%c0_40, %c0_41, %c0_42, %c1] : memref<1x1x16x2xf32, #tpu.memory_space<vmem>>, vector<1x1x16x1xf32>
    %75 = vector.shape_cast %74 : vector<1x1x16x1xf32> to vector<16x1xf32>
    %76 = vector.shape_cast %73 : vector<16x1xf32> to vector<1x1x16x1xf32>
    tpu.vector_store %arg8[%c0_40, %c0_41, %c0_42, %c1], %76 {strides = array<i32>} : memref<1x1x16x2xf32, #tpu.memory_space<vmem>>, vector<1x1x16x1xf32>,
    return
  }
  func.func @transform_0(%arg0: i32, %arg1: i32) -> (i32, i32, i32, i32) {
    %c0_i32 = arith.constant 0 : i32
    %c0_i32_0 = arith.constant 0 : i32
    %c0_i32_1 = arith.constant 0 : i32
    %c0_i32_2 = arith.constant 0 : i32
    return %arg0, %c0_i32, %c0_i32_0, %c0_i32_1 : i32, i32, i32, i32
  }
  func.func @transform_1(%arg0: i32, %arg1: i32) -> (i32, i32, i32) {
    %c0_i32 = arith.constant 0 : i32
    %c0_i32_0 = arith.constant 0 : i32
    %c0_i32_1 = arith.constant 0 : i32
    %c0_i32_2 = arith.constant 0 : i32
    return %c0_i32, %c0_i32_0, %c0_i32_1 : i32, i32, i32
  }
  func.func @transform_2(%arg0: i32, %arg1: i32) -> (i32, i32) {
    %c0_i32 = arith.constant 0 : i32
    %c0_i32_0 = arith.constant 0 : i32
    %c0_i32_1 = arith.constant 0 : i32
    return %c0_i32, %c0_i32_0 : i32, i32
  }
  func.func @transform_3(%arg0: i32, %arg1: i32) -> (i32, i32) {
    %c0_i32 = arith.constant 0 : i32
    %c0_i32_0 = arith.constant 0 : i32
    %c0_i32_1 = arith.constant 0 : i32
    return %c0_i32, %c0_i32_0 : i32, i32
  }
  func.func @transform_4(%arg0: i32, %arg1: i32) -> (i32, i32) {
    %c0_i32 = arith.constant 0 : i32
    %c0_i32_0 = arith.constant 0 : i32
    %c0_i32_1 = arith.constant 0 : i32
    return %c0_i32, %c0_i32_0 : i32, i32
  }
  func.func @transform_5(%arg0: i32, %arg1: i32) -> (i32, i32, i32, i32) {
    %c1_i32 = arith.constant 1 : i32
    %0 = arith.addi %arg1, %c1_i32 : i32
    %c0_i32 = arith.constant 0 : i32
    %c0_i32_0 = arith.constant 0 : i32
    %c0_i32_1 = arith.constant 0 : i32
    return %arg0, %0, %c0_i32, %c0_i32_0 : i32, i32, i32, i32
  }
  func.func @transform_6(%arg0: i32, %arg1: i32) -> (i32, i32, i32, i32) {
    %c0_i32 = arith.constant 0 : i32
    %c0_i32_0 = arith.constant 0 : i32
    %c0_i32_1 = arith.constant 0 : i32
    return %arg0, %arg1, %c0_i32, %c0_i32_0 : i32, i32, i32, i32
  }
}

module attributes {stable_mosaic.version = 11 : i64} {
  func.func @kernel(%arg0: i32, %arg1: i32, %arg2: memref<1x5x16x128xbf16, #tpu.memory_space<vmem>>, %arg3: memref<5x1x128xf32, #tpu.memory_space<vmem>>, %arg4: memref<16x1xf32, #tpu.memory_space<vmem>>, %arg5: memref<16x1xf32, #tpu.memory_space<vmem>>, %arg6: memref<2xf32, #tpu.memory_space<smem>>, %arg7: memref<19xf32, #tpu.memory_space<smem>>, %arg8: memref<1x1x4x128xbf16, #tpu.memory_space<vmem>>, %arg9: memref<16x4xbf16, #tpu.memory_space<vmem>>, %arg10: memref<16x1xf32, #tpu.memory_space<vmem>>, %arg11: memref<1x1x16x128xf32, #tpu.memory_space<vmem>>) attributes {dimension_semantics = [#tpu.dimension_semantics<parallel>, #tpu.dimension_semantics<parallel>], iteration_bounds = array<i64: 2, 3>, scalar_prefetch = 0 : i64, scratch_operands = 0 : i64, tpu.core_type = #tpu.core_type<tc>, window_params = [{transform_indices = @transform_0, window_bounds = array<i64: 1, 5, 16, 128>}, {pipeline_mode = #tpu.pipeline_mode<synchronous>, transform_indices = @transform_1, window_bounds = array<i64: 5, 1, 128>}, {pipeline_mode = #tpu.pipeline_mode<synchronous>, transform_indices = @transform_2, window_bounds = array<i64: 16, 1>}, {pipeline_mode = #tpu.pipeline_mode<synchronous>, transform_indices = @transform_3, window_bounds = array<i64: 16, 1>}, {transform_indices = @transform_4, window_bounds = array<i64: 2>}, {transform_indices = @transform_5, window_bounds = array<i64: 19>}, {transform_indices = @transform_6, window_bounds = array<i64: 1, 1, 4, 128>}, {pipeline_mode = #tpu.pipeline_mode<synchronous>, transform_indices = @transform_7, window_bounds = array<i64: 16, 4>}, {pipeline_mode = #tpu.pipeline_mode<synchronous>, transform_indices = @transform_8, window_bounds = array<i64: 16, 1>}, {transform_indices = @transform_9, window_bounds = array<i64: 1, 1, 16, 128>}]} {
    %c0 = arith.constant 0 : index
    %0 = arith.index_cast %arg1 : i32 to index
    %c0_0 = arith.constant 0 : index
    %c0_1 = arith.constant 0 : index
    %1 = vector.load %arg2[%c0, %0, %c0_0, %c0_1] : memref<1x5x16x128xbf16, #tpu.memory_space<vmem>>, vector<1x1x16x128xbf16>
    %2 = vector.shape_cast %1 : vector<1x1x16x128xbf16> to vector<16x128xbf16>
    %c1_i32 = arith.constant 1 : i32
    %3 = arith.addi %arg1, %c1_i32 : i32
    %c0_2 = arith.constant 0 : index
    %4 = arith.index_cast %3 : i32 to index
    %c0_3 = arith.constant 0 : index
    %c0_4 = arith.constant 0 : index
    %5 = vector.load %arg2[%c0_2, %4, %c0_3, %c0_4] : memref<1x5x16x128xbf16, #tpu.memory_space<vmem>>, vector<1x1x16x128xbf16>
    %6 = vector.shape_cast %5 : vector<1x1x16x128xbf16> to vector<16x128xbf16>
    %c2_i32 = arith.constant 2 : i32
    %7 = arith.addi %arg1, %c2_i32 : i32
    %c0_5 = arith.constant 0 : index
    %8 = arith.index_cast %7 : i32 to index
    %c0_6 = arith.constant 0 : index
    %c0_7 = arith.constant 0 : index
    %9 = vector.load %arg2[%c0_5, %8, %c0_6, %c0_7] : memref<1x5x16x128xbf16, #tpu.memory_space<vmem>>, vector<1x1x16x128xbf16>
    %10 = vector.shape_cast %9 : vector<1x1x16x128xbf16> to vector<16x128xbf16>
    %11 = tpu.concatenate %2, %6, %10 in 1 : vector<16x128xbf16>, vector<16x128xbf16>, vector<16x128xbf16> -> vector<16x384xbf16>
    %12 = arith.extf %11 : vector<16x384xbf16> to vector<16x384xf32>
    %13 = arith.index_cast %arg1 : i32 to index
    %c0_8 = arith.constant 0 : index
    %c0_9 = arith.constant 0 : index
    %14 = vector.load %arg3[%13, %c0_8, %c0_9] : memref<5x1x128xf32, #tpu.memory_space<vmem>>, vector<1x1x128xf32>
    %15 = vector.shape_cast %14 : vector<1x1x128xf32> to vector<1x128xf32>
    %c1_i32_10 = arith.constant 1 : i32
    %16 = arith.addi %arg1, %c1_i32_10 : i32
    %17 = arith.index_cast %16 : i32 to index
    %c0_11 = arith.constant 0 : index
    %c0_12 = arith.constant 0 : index
    %18 = vector.load %arg3[%17, %c0_11, %c0_12] : memref<5x1x128xf32, #tpu.memory_space<vmem>>, vector<1x1x128xf32>
    %19 = vector.shape_cast %18 : vector<1x1x128xf32> to vector<1x128xf32>
    %c2_i32_13 = arith.constant 2 : i32
    %20 = arith.addi %arg1, %c2_i32_13 : i32
    %21 = arith.index_cast %20 : i32 to index
    %c0_14 = arith.constant 0 : index
    %c0_15 = arith.constant 0 : index
    %22 = vector.load %arg3[%21, %c0_14, %c0_15] : memref<5x1x128xf32, #tpu.memory_space<vmem>>, vector<1x1x128xf32>
    %23 = vector.shape_cast %22 : vector<1x1x128xf32> to vector<1x128xf32>
    %24 = tpu.concatenate %15, %19, %23 in 1 : vector<1x128xf32>, vector<1x128xf32>, vector<1x128xf32> -> vector<1x384xf32>
    %cst = arith.constant 0.000000e+00 : f32
    %25 = vector.broadcast %cst : f32 to vector<1x384xf32>
    %26 = arith.cmpf ogt, %24, %25 : vector<1x384xf32>
    %c0_16 = arith.constant 0 : index
    %c0_17 = arith.constant 0 : index
    %27 = vector.load %arg4[%c0_16, %c0_17] : memref<16x1xf32, #tpu.memory_space<vmem>>, vector<16x1xf32>
    %28 = vector.broadcast %27 : vector<16x1xf32> to vector<16x384xf32>
    %29 = arith.mulf %12, %28 : vector<16x384xf32>
    %c0_18 = arith.constant 0 : index
    %c0_19 = arith.constant 0 : index
    %30 = vector.load %arg5[%c0_18, %c0_19] : memref<16x1xf32, #tpu.memory_space<vmem>>, vector<16x1xf32>
    %31 = vector.broadcast %30 : vector<16x1xf32> to vector<16x384xf32>
    %32 = arith.addf %29, %31 : vector<16x384xf32>
    %cst_20 = arith.constant 0.000000e+00 : f32
    %33 = vector.broadcast %cst_20 : f32 to vector<16x384xf32>
    %34 = arith.maximumf %32, %33 : vector<16x384xf32>
    %cst_21 = arith.constant 0.000000e+00 : f32
    %35 = vector.shape_cast %26 : vector<1x384xi1> to vector<1x384xi1>
    %36 = vector.broadcast %35 : vector<1x384xi1> to vector<16x384xi1>
    %37 = vector.broadcast %cst_21 : f32 to vector<16x384xf32>
    %38 = arith.select %36, %34, %37 : vector<16x384xi1>, vector<16x384xf32>
    %cst_22 = arith.constant 0.000000e+00 : f32
    %39 = vector.broadcast %cst_22 : f32 to vector<1x128xf32>
    %c18 = arith.constant 18 : index
    %40 = memref.load %arg7[%c18] : memref<19xf32, #tpu.memory_space<smem>>
    %41 = vector.broadcast %40 : f32 to vector<1x128xf32>
    %42 = arith.addf %39, %41 : vector<1x128xf32>
    %43 = vector.extract_strided_slice %38 {offsets = [0, 109], sizes = [16, 128], strides = [1, 1]} : vector<16x384xf32> to vector<16x128xf32>
    %c0_23 = arith.constant 0 : index
    %44 = memref.load %arg7[%c0_23] : memref<19xf32, #tpu.memory_space<smem>>
    %cst_24 = arith.constant dense<0.000000e+00> : vector<128xf32>
    %45 = vector.multi_reduction <add>, %43, %cst_24 [0] : vector<16x128xf32> to vector<128xf32>
    %46 = vector.shape_cast %45 : vector<128xf32> to vector<1x128xf32>
    %cst_25 = arith.constant 6.250000e-02 : f32
    %47 = vector.broadcast %cst_25 : f32 to vector<1x128xf32>
    %48 = arith.mulf %46, %47 : vector<1x128xf32>
    %49 = vector.broadcast %44 : f32 to vector<1x128xf32>
    %50 = arith.mulf %49, %48 : vector<1x128xf32>
    %51 = arith.addf %42, %50 : vector<1x128xf32>
    %c9 = arith.constant 9 : index
    %52 = memref.load %arg7[%c9] : memref<19xf32, #tpu.memory_space<smem>>
    %cst_26 = arith.constant dense<0xFF800000> : vector<128xf32>
    %53 = vector.multi_reduction <maximumf>, %43, %cst_26 [0] : vector<16x128xf32> to vector<128xf32>
    %54 = vector.shape_cast %53 : vector<128xf32> to vector<1x128xf32>
    %55 = vector.broadcast %52 : f32 to vector<1x128xf32>
    %56 = arith.mulf %55, %54 : vector<1x128xf32>
    %57 = arith.addf %51, %56 : vector<1x128xf32>
    %58 = vector.extract_strided_slice %38 {offsets = [0, 110], sizes = [16, 128], strides = [1, 1]} : vector<16x384xf32> to vector<16x128xf32>
    %c1 = arith.constant 1 : index
    %59 = memref.load %arg7[%c1] : memref<19xf32, #tpu.memory_space<smem>>
    %cst_27 = arith.constant dense<0.000000e+00> : vector<128xf32>
    %60 = vector.multi_reduction <add>, %58, %cst_27 [0] : vector<16x128xf32> to vector<128xf32>
    %61 = vector.shape_cast %60 : vector<128xf32> to vector<1x128xf32>
    %cst_28 = arith.constant 6.250000e-02 : f32
    %62 = vector.broadcast %cst_28 : f32 to vector<1x128xf32>
    %63 = arith.mulf %61, %62 : vector<1x128xf32>
    %64 = vector.broadcast %59 : f32 to vector<1x128xf32>
    %65 = arith.mulf %64, %63 : vector<1x128xf32>
    %66 = arith.addf %57, %65 : vector<1x128xf32>
    %c10 = arith.constant 10 : index
    %67 = memref.load %arg7[%c10] : memref<19xf32, #tpu.memory_space<smem>>
    %cst_29 = arith.constant dense<0xFF800000> : vector<128xf32>
    %68 = vector.multi_reduction <maximumf>, %58, %cst_29 [0] : vector<16x128xf32> to vector<128xf32>
    %69 = vector.shape_cast %68 : vector<128xf32> to vector<1x128xf32>
    %70 = vector.broadcast %67 : f32 to vector<1x128xf32>
    %71 = arith.mulf %70, %69 : vector<1x128xf32>
    %72 = arith.addf %66, %71 : vector<1x128xf32>
    %73 = vector.extract_strided_slice %38 {offsets = [0, 111], sizes = [16, 128], strides = [1, 1]} : vector<16x384xf32> to vector<16x128xf32>
    %c2 = arith.constant 2 : index
    %74 = memref.load %arg7[%c2] : memref<19xf32, #tpu.memory_space<smem>>
    %cst_30 = arith.constant dense<0.000000e+00> : vector<128xf32>
    %75 = vector.multi_reduction <add>, %73, %cst_30 [0] : vector<16x128xf32> to vector<128xf32>
    %76 = vector.shape_cast %75 : vector<128xf32> to vector<1x128xf32>
    %cst_31 = arith.constant 6.250000e-02 : f32
    %77 = vector.broadcast %cst_31 : f32 to vector<1x128xf32>
    %78 = arith.mulf %76, %77 : vector<1x128xf32>
    %79 = vector.broadcast %74 : f32 to vector<1x128xf32>
    %80 = arith.mulf %79, %78 : vector<1x128xf32>
    %81 = arith.addf %72, %80 : vector<1x128xf32>
    %c11 = arith.constant 11 : index
    %82 = memref.load %arg7[%c11] : memref<19xf32, #tpu.memory_space<smem>>
    %cst_32 = arith.constant dense<0xFF800000> : vector<128xf32>
    %83 = vector.multi_reduction <maximumf>, %73, %cst_32 [0] : vector<16x128xf32> to vector<128xf32>
    %84 = vector.shape_cast %83 : vector<128xf32> to vector<1x128xf32>
    %85 = vector.broadcast %82 : f32 to vector<1x128xf32>
    %86 = arith.mulf %85, %84 : vector<1x128xf32>
    %87 = arith.addf %81, %86 : vector<1x128xf32>
    %88 = vector.extract_strided_slice %38 {offsets = [0, 127], sizes = [16, 128], strides = [1, 1]} : vector<16x384xf32> to vector<16x128xf32>
    %c3 = arith.constant 3 : index
    %89 = memref.load %arg7[%c3] : memref<19xf32, #tpu.memory_space<smem>>
    %cst_33 = arith.constant dense<0.000000e+00> : vector<128xf32>
    %90 = vector.multi_reduction <add>, %88, %cst_33 [0] : vector<16x128xf32> to vector<128xf32>
    %91 = vector.shape_cast %90 : vector<128xf32> to vector<1x128xf32>
    %cst_34 = arith.constant 6.250000e-02 : f32
    %92 = vector.broadcast %cst_34 : f32 to vector<1x128xf32>
    %93 = arith.mulf %91, %92 : vector<1x128xf32>
    %94 = vector.broadcast %89 : f32 to vector<1x128xf32>
    %95 = arith.mulf %94, %93 : vector<1x128xf32>
    %96 = arith.addf %87, %95 : vector<1x128xf32>
    %c12 = arith.constant 12 : index
    %97 = memref.load %arg7[%c12] : memref<19xf32, #tpu.memory_space<smem>>
    %cst_35 = arith.constant dense<0xFF800000> : vector<128xf32>
    %98 = vector.multi_reduction <maximumf>, %88, %cst_35 [0] : vector<16x128xf32> to vector<128xf32>
    %99 = vector.shape_cast %98 : vector<128xf32> to vector<1x128xf32>
    %100 = vector.broadcast %97 : f32 to vector<1x128xf32>
    %101 = arith.mulf %100, %99 : vector<1x128xf32>
    %102 = arith.addf %96, %101 : vector<1x128xf32>
    %103 = vector.extract_strided_slice %38 {offsets = [0, 128], sizes = [16, 128], strides = [1, 1]} : vector<16x384xf32> to vector<16x128xf32>
    %c4 = arith.constant 4 : index
    %104 = memref.load %arg7[%c4] : memref<19xf32, #tpu.memory_space<smem>>
    %cst_36 = arith.constant dense<0.000000e+00> : vector<128xf32>
    %105 = vector.multi_reduction <add>, %103, %cst_36 [0] : vector<16x128xf32> to vector<128xf32>
    %106 = vector.shape_cast %105 : vector<128xf32> to vector<1x128xf32>
    %cst_37 = arith.constant 6.250000e-02 : f32
    %107 = vector.broadcast %cst_37 : f32 to vector<1x128xf32>
    %108 = arith.mulf %106, %107 : vector<1x128xf32>
    %109 = vector.broadcast %104 : f32 to vector<1x128xf32>
    %110 = arith.mulf %109, %108 : vector<1x128xf32>
    %111 = arith.addf %102, %110 : vector<1x128xf32>
    %c13 = arith.constant 13 : index
    %112 = memref.load %arg7[%c13] : memref<19xf32, #tpu.memory_space<smem>>
    %cst_38 = arith.constant dense<0xFF800000> : vector<128xf32>
    %113 = vector.multi_reduction <maximumf>, %103, %cst_38 [0] : vector<16x128xf32> to vector<128xf32>
    %114 = vector.shape_cast %113 : vector<128xf32> to vector<1x128xf32>
    %115 = vector.broadcast %112 : f32 to vector<1x128xf32>
    %116 = arith.mulf %115, %114 : vector<1x128xf32>
    %117 = arith.addf %111, %116 : vector<1x128xf32>
    %118 = vector.extract_strided_slice %38 {offsets = [0, 129], sizes = [16, 128], strides = [1, 1]} : vector<16x384xf32> to vector<16x128xf32>
    %c5 = arith.constant 5 : index
    %119 = memref.load %arg7[%c5] : memref<19xf32, #tpu.memory_space<smem>>
    %cst_39 = arith.constant dense<0.000000e+00> : vector<128xf32>
    %120 = vector.multi_reduction <add>, %118, %cst_39 [0] : vector<16x128xf32> to vector<128xf32>
    %121 = vector.shape_cast %120 : vector<128xf32> to vector<1x128xf32>
    %cst_40 = arith.constant 6.250000e-02 : f32
    %122 = vector.broadcast %cst_40 : f32 to vector<1x128xf32>
    %123 = arith.mulf %121, %122 : vector<1x128xf32>
    %124 = vector.broadcast %119 : f32 to vector<1x128xf32>
    %125 = arith.mulf %124, %123 : vector<1x128xf32>
    %126 = arith.addf %117, %125 : vector<1x128xf32>
    %c14 = arith.constant 14 : index
    %127 = memref.load %arg7[%c14] : memref<19xf32, #tpu.memory_space<smem>>
    %cst_41 = arith.constant dense<0xFF800000> : vector<128xf32>
    %128 = vector.multi_reduction <maximumf>, %118, %cst_41 [0] : vector<16x128xf32> to vector<128xf32>
    %129 = vector.shape_cast %128 : vector<128xf32> to vector<1x128xf32>
    %130 = vector.broadcast %127 : f32 to vector<1x128xf32>
    %131 = arith.mulf %130, %129 : vector<1x128xf32>
    %132 = arith.addf %126, %131 : vector<1x128xf32>
    %133 = vector.extract_strided_slice %38 {offsets = [0, 145], sizes = [16, 128], strides = [1, 1]} : vector<16x384xf32> to vector<16x128xf32>
    %c6 = arith.constant 6 : index
    %134 = memref.load %arg7[%c6] : memref<19xf32, #tpu.memory_space<smem>>
    %cst_42 = arith.constant dense<0.000000e+00> : vector<128xf32>
    %135 = vector.multi_reduction <add>, %133, %cst_42 [0] : vector<16x128xf32> to vector<128xf32>
    %136 = vector.shape_cast %135 : vector<128xf32> to vector<1x128xf32>
    %cst_43 = arith.constant 6.250000e-02 : f32
    %137 = vector.broadcast %cst_43 : f32 to vector<1x128xf32>
    %138 = arith.mulf %136, %137 : vector<1x128xf32>
    %139 = vector.broadcast %134 : f32 to vector<1x128xf32>
    %140 = arith.mulf %139, %138 : vector<1x128xf32>
    %141 = arith.addf %132, %140 : vector<1x128xf32>
    %c15 = arith.constant 15 : index
    %142 = memref.load %arg7[%c15] : memref<19xf32, #tpu.memory_space<smem>>
    %cst_44 = arith.constant dense<0xFF800000> : vector<128xf32>
    %143 = vector.multi_reduction <maximumf>, %133, %cst_44 [0] : vector<16x128xf32> to vector<128xf32>
    %144 = vector.shape_cast %143 : vector<128xf32> to vector<1x128xf32>
    %145 = vector.broadcast %142 : f32 to vector<1x128xf32>
    %146 = arith.mulf %145, %144 : vector<1x128xf32>
    %147 = arith.addf %141, %146 : vector<1x128xf32>
    %148 = vector.extract_strided_slice %38 {offsets = [0, 146], sizes = [16, 128], strides = [1, 1]} : vector<16x384xf32> to vector<16x128xf32>
    %c7 = arith.constant 7 : index
    %149 = memref.load %arg7[%c7] : memref<19xf32, #tpu.memory_space<smem>>
    %cst_45 = arith.constant dense<0.000000e+00> : vector<128xf32>
    %150 = vector.multi_reduction <add>, %148, %cst_45 [0] : vector<16x128xf32> to vector<128xf32>
    %151 = vector.shape_cast %150 : vector<128xf32> to vector<1x128xf32>
    %cst_46 = arith.constant 6.250000e-02 : f32
    %152 = vector.broadcast %cst_46 : f32 to vector<1x128xf32>
    %153 = arith.mulf %151, %152 : vector<1x128xf32>
    %154 = vector.broadcast %149 : f32 to vector<1x128xf32>
    %155 = arith.mulf %154, %153 : vector<1x128xf32>
    %156 = arith.addf %147, %155 : vector<1x128xf32>
    %c16 = arith.constant 16 : index
    %157 = memref.load %arg7[%c16] : memref<19xf32, #tpu.memory_space<smem>>
    %cst_47 = arith.constant dense<0xFF800000> : vector<128xf32>
    %158 = vector.multi_reduction <maximumf>, %148, %cst_47 [0] : vector<16x128xf32> to vector<128xf32>
    %159 = vector.shape_cast %158 : vector<128xf32> to vector<1x128xf32>
    %160 = vector.broadcast %157 : f32 to vector<1x128xf32>
    %161 = arith.mulf %160, %159 : vector<1x128xf32>
    %162 = arith.addf %156, %161 : vector<1x128xf32>
    %163 = vector.extract_strided_slice %38 {offsets = [0, 147], sizes = [16, 128], strides = [1, 1]} : vector<16x384xf32> to vector<16x128xf32>
    %c8 = arith.constant 8 : index
    %164 = memref.load %arg7[%c8] : memref<19xf32, #tpu.memory_space<smem>>
    %cst_48 = arith.constant dense<0.000000e+00> : vector<128xf32>
    %165 = vector.multi_reduction <add>, %163, %cst_48 [0] : vector<16x128xf32> to vector<128xf32>
    %166 = vector.shape_cast %165 : vector<128xf32> to vector<1x128xf32>
    %cst_49 = arith.constant 6.250000e-02 : f32
    %167 = vector.broadcast %cst_49 : f32 to vector<1x128xf32>
    %168 = arith.mulf %166, %167 : vector<1x128xf32>
    %169 = vector.broadcast %164 : f32 to vector<1x128xf32>
    %170 = arith.mulf %169, %168 : vector<1x128xf32>
    %171 = arith.addf %162, %170 : vector<1x128xf32>
    %c17 = arith.constant 17 : index
    %172 = memref.load %arg7[%c17] : memref<19xf32, #tpu.memory_space<smem>>
    %cst_50 = arith.constant dense<0xFF800000> : vector<128xf32>
    %173 = vector.multi_reduction <maximumf>, %163, %cst_50 [0] : vector<16x128xf32> to vector<128xf32>
    %174 = vector.shape_cast %173 : vector<128xf32> to vector<1x128xf32>
    %175 = vector.broadcast %172 : f32 to vector<1x128xf32>
    %176 = arith.mulf %175, %174 : vector<1x128xf32>
    %177 = arith.addf %171, %176 : vector<1x128xf32>
    %178 = arith.negf %177 : vector<1x128xf32>
    %179 = math.exp %178 : vector<1x128xf32>
    %cst_51 = arith.constant 1.000000e+00 : f32
    %180 = vector.broadcast %cst_51 : f32 to vector<1x128xf32>
    %181 = arith.addf %180, %179 : vector<1x128xf32>
    %182 = arith.divf %180, %181 : vector<1x128xf32>
    %183 = vector.extract_strided_slice %38 {offsets = [0, 128], sizes = [16, 128], strides = [1, 1]} : vector<16x384xf32> to vector<16x128xf32>
    %c0_52 = arith.constant 0 : index
    %c0_53 = arith.constant 0 : index
    %184 = vector.load %arg9[%c0_52, %c0_53] : memref<16x4xbf16, #tpu.memory_space<vmem>>, vector<16x4xbf16>
    %c0_54 = arith.constant 0 : index
    %c0_55 = arith.constant 0 : index
    %c0_56 = arith.constant 0 : index
    %c0_57 = arith.constant 0 : index
    %185 = vector.load %arg8[%c0_54, %c0_55, %c0_56, %c0_57] : memref<1x1x4x128xbf16, #tpu.memory_space<vmem>>, vector<1x1x4x128xbf16>
    %186 = vector.shape_cast %185 : vector<1x1x4x128xbf16> to vector<4x128xbf16>
    %cst_58 = arith.constant dense<0.000000e+00> : vector<16x128xf32>
    %187 = tpu.matmul %184, %186, %cst_58 {dimension_numbers = #tpu.dot_dimension_numbers<[1], [0], [0], [1], [0, 0, 1, 1], [], []>} : vector<16x4xbf16>, vector<4x128xbf16>, vector<16x128xf32> -> vector<16x128xf32>
    %c0_59 = arith.constant 0 : index
    %c0_60 = arith.constant 0 : index
    %188 = vector.load %arg10[%c0_59, %c0_60] : memref<16x1xf32, #tpu.memory_space<vmem>>, vector<16x1xf32>
    %189 = vector.broadcast %188 : vector<16x1xf32> to vector<16x128xf32>
    %190 = arith.addf %187, %189 : vector<16x128xf32>
    %191 = arith.index_cast %arg0 : i32 to index
    %192 = memref.load %arg6[%191] : memref<2xf32, #tpu.memory_space<smem>>
    %193 = vector.broadcast %192 : f32 to vector<1x128xf32>
    %194 = arith.addf %193, %182 : vector<1x128xf32>
    %195 = vector.broadcast %194 : vector<1x128xf32> to vector<16x128xf32>
    %196 = arith.mulf %183, %195 : vector<16x128xf32>
    %197 = arith.addf %196, %190 : vector<16x128xf32>
    %c0_61 = arith.constant 0 : index
    %c0_62 = arith.constant 0 : index
    %c0_63 = arith.constant 0 : index
    %c0_64 = arith.constant 0 : index
    %198 = vector.load %arg11[%c0_61, %c0_62, %c0_63, %c0_64] : memref<1x1x16x128xf32, #tpu.memory_space<vmem>>, vector<1x1x16x128xf32>
    %199 = vector.shape_cast %198 : vector<1x1x16x128xf32> to vector<16x128xf32>
    %200 = vector.shape_cast %197 : vector<16x128xf32> to vector<1x1x16x128xf32>
    tpu.vector_store %arg11[%c0_61, %c0_62, %c0_63, %c0_64], %200 {strides = array<i32>} : memref<1x1x16x128xf32, #tpu.memory_space<vmem>>, vector<1x1x16x128xf32>,
    return
  }
  func.func @transform_0(%arg0: i32, %arg1: i32) -> (i32, i32, i32, i32) {
    %c0_i32 = arith.constant 0 : i32
    %c0_i32_0 = arith.constant 0 : i32
    %c0_i32_1 = arith.constant 0 : i32
    %c0_i32_2 = arith.constant 0 : i32
    return %arg0, %c0_i32, %c0_i32_0, %c0_i32_1 : i32, i32, i32, i32
  }
  func.func @transform_1(%arg0: i32, %arg1: i32) -> (i32, i32, i32) {
    %c0_i32 = arith.constant 0 : i32
    %c0_i32_0 = arith.constant 0 : i32
    %c0_i32_1 = arith.constant 0 : i32
    %c0_i32_2 = arith.constant 0 : i32
    return %c0_i32, %c0_i32_0, %c0_i32_1 : i32, i32, i32
  }
  func.func @transform_2(%arg0: i32, %arg1: i32) -> (i32, i32) {
    %c0_i32 = arith.constant 0 : i32
    %c0_i32_0 = arith.constant 0 : i32
    %c0_i32_1 = arith.constant 0 : i32
    return %c0_i32, %c0_i32_0 : i32, i32
  }
  func.func @transform_3(%arg0: i32, %arg1: i32) -> (i32, i32) {
    %c0_i32 = arith.constant 0 : i32
    %c0_i32_0 = arith.constant 0 : i32
    %c0_i32_1 = arith.constant 0 : i32
    return %c0_i32, %c0_i32_0 : i32, i32
  }
  func.func @transform_4(%arg0: i32, %arg1: i32) -> i32 {
    %c0_i32 = arith.constant 0 : i32
    %c0_i32_0 = arith.constant 0 : i32
    return %c0_i32 : i32
  }
  func.func @transform_5(%arg0: i32, %arg1: i32) -> i32 {
    %c0_i32 = arith.constant 0 : i32
    %c0_i32_0 = arith.constant 0 : i32
    return %c0_i32 : i32
  }
  func.func @transform_6(%arg0: i32, %arg1: i32) -> (i32, i32, i32, i32) {
    %c1_i32 = arith.constant 1 : i32
    %0 = arith.addi %arg1, %c1_i32 : i32
    %c0_i32 = arith.constant 0 : i32
    %c0_i32_0 = arith.constant 0 : i32
    %c0_i32_1 = arith.constant 0 : i32
    return %arg0, %0, %c0_i32, %c0_i32_0 : i32, i32, i32, i32
  }
  func.func @transform_7(%arg0: i32, %arg1: i32) -> (i32, i32) {
    %c0_i32 = arith.constant 0 : i32
    %c0_i32_0 = arith.constant 0 : i32
    %c0_i32_1 = arith.constant 0 : i32
    return %c0_i32, %c0_i32_0 : i32, i32
  }
  func.func @transform_8(%arg0: i32, %arg1: i32) -> (i32, i32) {
    %c0_i32 = arith.constant 0 : i32
    %c0_i32_0 = arith.constant 0 : i32
    %c0_i32_1 = arith.constant 0 : i32
    return %c0_i32, %c0_i32_0 : i32, i32
  }
  func.func @transform_9(%arg0: i32, %arg1: i32) -> (i32, i32, i32, i32) {
    %c0_i32 = arith.constant 0 : i32
    %0 = arith.addi %arg1, %c0_i32 : i32
    %c0_i32_0 = arith.constant 0 : i32
    %c0_i32_1 = arith.constant 0 : i32
    %c0_i32_2 = arith.constant 0 : i32
    return %arg0, %0, %c0_i32_0, %c0_i32_1 : i32, i32, i32, i32
  }
}

</mosaic_0001>

<llo_original>
// kernel: squeeze.25
$region0: #{squeeze.25}
  %s0 = inlined_call_operand.vmem [shape: f32[3,3], index: 0, kind: input, shape index: {}]
  %s1 = inlined_call_operand.vmem [shape: f32[9], index: 1, kind: output, shape index: {}]
  $region1: #{squeeze.25} parent=0
    #allocation0 [shape = 'u8[4096]{0}', space=vmem, size = 0x1000, scoped, tag = 'scoped mem for output reshape']
    #allocation1 [shape = 'u8[4096]{0}', space=vmem, size = 0x1000, scoped, tag = 'scoped mem for input reshape']
    %s3 = sshll.u32 1, 4
    %s4 = ssub.s32 %s3, 1
    %v5 = vld [vmem:[%s0] sm:%s4]
    %6 = vst [vmem:[#allocation1] sm:%s4] %v5
    %v7 = vld [vmem:[#allocation1] sm:$0x1]
    %vm8 = vcmask 23552
    %9 = vst.msk [vmem:[#allocation0] sm:$0x1] %vm8, %v7
    %s10 = scalar_lea.vmem [#allocation1], 2
    %v11 = vld [vmem:[%s10] sm:$0x1]
    %12 = vrot.lane.b32.xlu0 %v11, 6
    %v13 = vpop.permute.xlu0 %12
    %vm14 = vcmask 72752
    %15 = vst.msk [vmem:[#allocation0] sm:$0x1] %vm14, %v13
    %s16 = scalar_lea.vmem [#allocation1], 1
    %v17 = vld [vmem:[%s16] sm:$0x1]
    %18 = vrot.lane.b32.xlu0 %v17, 3
    %v19 = vpop.permute.xlu0 %18
    %vm20 = vcmask 48152
    %21 = vst.msk [vmem:[#allocation0] sm:$0x1] %vm20, %v19
    %s23 = sshll.u32 1, 1
    %s24 = ssub.s32 %s23, 1
    %v26 = vld [vmem:[#allocation0] sm:%s24]
    %s27 = sshll.u32 1, 1
    %s28 = ssub.s32 %s27, 1
    %29 = vst [vmem:[%s1] sm:%s28] %v26

// kernel: double_conv_forward.3
$region0: #{double_conv_forward.3}
  #allocation0 [shape = 'u32[]', space=smem, size = 0x4, offset = 0x4, fixed_abs, tag = 'smem constant byte address 0x4 - core index']
  #allocation1 [shape = 'u32[144,128]{1,0:T(1,128)}', space=vmem, size = 0x12000, scoped, tag = 'internal scratch']
  %s0 = inlined_call_operand.vmem [shape: bf16[2,5,4,128], index: 0, kind: input, shape index: {}]
  %s1 = inlined_call_operand.vmem [shape: f32[5,1,128], index: 1, kind: input, shape index: {}]
  %s2 = inlined_call_operand.vmem [shape: bf16[9,16,4], index: 2, kind: input, shape index: {}]
  %s3 = inlined_call_operand.vmem [shape: bf16[2,5,16,128], index: 3, kind: output, shape index: {0}]
  %s4 = inlined_call_operand.vmem [shape: f32[2,3,16,2], index: 4, kind: output, shape index: {1}]
  %5 = xla_tuple %s3, %s4
  %s6 = sld [smem:[#allocation0]]
  $region53: #{double_conv_forward.3} parent=0
    _
  %s8 = ssub.s32 1, %s6
  %s9 = scalar_select 0, %s8, %s6
  loop: start=0, step=1, limit=8
  $region2: #{double_conv_forward.3} parent=0 // loop_pre_header
    _
  $region3: #{double_conv_forward.3} parent=0 // loop_header
    %s11 = sphi 0, %s15
    %p12 = scmp.ge.s32.totalorder %s11, 8
    %s18 = sphi 0, %s30
    %s19 = sphi 0, %s26
    %s20 = sphi 0, %s18
    %s21 = sphi 0, %s19
    %s22 = sphi 0, %s20
    %s23 = sphi 0, %s21
    %s33 = sphi 0, %s35
    %s36 = sphi 0, %s33
    %s37 = sphi 0, %s36
    %s53 = sphi 0, %s37
    %s57 = sphi 0, %s57
    %s59 = sphi 0, %s57
    %s60 = sphi 0, %s59
    %s74 = sphi 0, %s60
    %s78 = sphi 0, %s78
    %s80 = sphi 0, %s78
    %s81 = sphi 0, %s80
    %s95 = sphi 0, %s81
    %s105 = sphi 0, %s107
    %s108 = sphi 0, %s105
    %s109 = sphi 0, %s108
    %s125 = sphi 0, %s109
    %s133 = sphi 0, %s135
    %s136 = sphi 0, %s133
    %s137 = sphi 0, %s136
    %s153 = sphi 0, %s137
  $region4: #{double_conv_forward.3} parent=0 // loop_header_branch
    %14 = sbr.rel (%p12) target = $region8
  $region5: #{double_conv_forward.3} parent=0 // loop_body
    %s16 = ssub.s32 %s11, 1
    %s17 = ssub.s32 %s11, 2
    %s24 = sadd.s32 1, %s19
    %p25 = scmp.ge.s32.totalorder %s24, 3
    %s26 = scalar_select %p25, 0, %s24
    %s27 = sadd.s32 1, %s18
    %s28 = scalar_select %p25, %s27, %s18
    %p29 = scmp.ge.s32.totalorder %s28, 2
    %s30 = scalar_select %p29, 0, %s28
    %s31 = ssub.s32 %s18, %s30
    %p32 = scmp.eq.s32.totalorder %s31, 0
    %s34 = sadd.s32 %s33, 1
    %s35 = scalar_select %p32, %s33, %s34
    %p38 = pneg %p32
    %p39 = scmp.eq.s32.totalorder %s11, 5
    %p40 = por %p38, %p39
    %p41 = scmp.ne.s32.totalorder %s33, %s36
    %p42 = scmp.eq.s32.totalorder %s11, 0
    %p43 = por %p41, %p42
    %p44 = scmp.ne.s32.totalorder %s33, %s36
    %p45 = scmp.eq.s32.totalorder %s16, 5
    %p46 = por %p44, %p45
    %p47 = scmp.ne.s32.totalorder %s36, %s37
    %p48 = scmp.eq.s32.totalorder %s16, 0
    %p49 = por %p47, %p48
    %p50 = scmp.ne.s32.totalorder %s36, %s37
    %p51 = scmp.eq.s32.totalorder %s17, 5
    %p52 = por %p50, %p51
    %p54 = scmp.ne.s32.totalorder %s37, %s53
    %p55 = scmp.eq.s32.totalorder %s17, 0
    %p56 = por %p54, %p55
    %s58 = sadd.s32 %s57, 1
    %p61 = scmp.eq.s32.totalorder %s11, 5
    %p62 = scmp.ne.s32.totalorder %s57, %s59
    %p63 = scmp.eq.s32.totalorder %s11, 0
    %p64 = por %p62, %p63
    %p65 = scmp.ne.s32.totalorder %s57, %s59
    %p66 = scmp.eq.s32.totalorder %s16, 5
    %p67 = por %p65, %p66
    %p68 = scmp.ne.s32.totalorder %s59, %s60
    %p69 = scmp.eq.s32.totalorder %s16, 0
    %p70 = por %p68, %p69
    %p71 = scmp.ne.s32.totalorder %s59, %s60
    %p72 = scmp.eq.s32.totalorder %s17, 5
    %p73 = por %p71, %p72
    %p75 = scmp.ne.s32.totalorder %s60, %s74
    %p76 = scmp.eq.s32.totalorder %s17, 0
    %p77 = por %p75, %p76
    %s79 = sadd.s32 %s78, 1
    %p82 = scmp.eq.s32.totalorder %s11, 5
    %p83 = scmp.ne.s32.totalorder %s78, %s80
    %p84 = scmp.eq.s32.totalorder %s11, 0
    %p85 = por %p83, %p84
    %p86 = scmp.ne.s32.totalorder %s78, %s80
    %p87 = scmp.eq.s32.totalorder %s16, 5
    %p88 = por %p86, %p87
    %p89 = scmp.ne.s32.totalorder %s80, %s81
    %p90 = scmp.eq.s32.totalorder %s16, 0
    %p91 = por %p89, %p90
    %p92 = scmp.ne.s32.totalorder %s80, %s81
    %p93 = scmp.eq.s32.totalorder %s17, 5
    %p94 = por %p92, %p93
    %p96 = scmp.ne.s32.totalorder %s81, %s95
    %p97 = scmp.eq.s32.totalorder %s17, 0
    %p98 = por %p96, %p97
    %s99 = sadd.s32 %s19, 1
    %s100 = sadd.s32 %s26, 1
    %s101 = ssub.s32 %s18, %s30
    %s102 = ssub.s32 %s99, %s100
    %s103 = sor.u32 %s101, %s102
    %p104 = scmp.eq.s32.totalorder %s103, 0
    %s106 = sadd.s32 %s105, 1
    %s107 = scalar_select %p104, %s105, %s106
    %p110 = pneg %p104
    %p111 = scmp.eq.s32.totalorder %s11, 5
    %p112 = por %p110, %p111
    %p113 = scmp.ne.s32.totalorder %s105, %s108
    %p114 = scmp.eq.s32.totalorder %s11, 0
    %p115 = por %p113, %p114
    %p116 = scmp.ne.s32.totalorder %s105, %s108
    %p117 = scmp.eq.s32.totalorder %s16, 5
    %p118 = por %p116, %p117
    %p119 = scmp.ne.s32.totalorder %s108, %s109
    %p120 = scmp.eq.s32.totalorder %s16, 0
    %p121 = por %p119, %p120
    %p122 = scmp.ne.s32.totalorder %s108, %s109
    %p123 = scmp.eq.s32.totalorder %s17, 5
    %p124 = por %p122, %p123
    %p126 = scmp.ne.s32.totalorder %s109, %s125
    %p127 = scmp.eq.s32.totalorder %s17, 0
    %p128 = por %p126, %p127
    %s129 = ssub.s32 %s18, %s30
    %s130 = ssub.s32 %s19, %s26
    %s131 = sor.u32 %s129, %s130
    %p132 = scmp.eq.s32.totalorder %s131, 0
    %s134 = sadd.s32 %s133, 1
    %s135 = scalar_select %p132, %s133, %s134
    %p138 = pneg %p132
    %p139 = scmp.eq.s32.totalorder %s11, 5
    %p140 = por %p138, %p139
    %p141 = scmp.ne.s32.totalorder %s133, %s136
    %p142 = scmp.eq.s32.totalorder %s11, 0
    %p143 = por %p141, %p142
    %p144 = scmp.ne.s32.totalorder %s133, %s136
    %p145 = scmp.eq.s32.totalorder %s16, 5
    %p146 = por %p144, %p145
    %p147 = scmp.ne.s32.totalorder %s136, %s137
    %p148 = scmp.eq.s32.totalorder %s16, 0
    %p149 = por %p147, %p148
    %p150 = scmp.ne.s32.totalorder %s136, %s137
    %p151 = scmp.eq.s32.totalorder %s17, 5
    %p152 = por %p150, %p151
    %p154 = scmp.ne.s32.totalorder %s137, %s153
    %p155 = scmp.eq.s32.totalorder %s17, 0
    %p156 = por %p154, %p155
    %p157 = scmp.le.s32.totalorder 1, %s11
    %p158 = scmp.lt.s32.totalorder %s11, 7
    %p159 = pnand %p157, %p158
    %p160 = pneg %p159
    // Predicated region
    $region9: #{double_conv_forward.3} parent=5 // pred_check
      _
    $region10: #{double_conv_forward.3} parent=5 // pred_check_branch
      %162 = sbr.rel (%p159) target = $region12
    $region11: #{double_conv_forward.3} parent=5 // pred_region
      %s163 = ssub.s32 %s11, 1
      // Predicated region
      $region13: #{double_conv_forward.3} parent=11 // pred_check
        %p164 = pneg %p70
      $region14: #{double_conv_forward.3} parent=11 // pred_check_branch
        %166 = sbr.rel (%p164) target = $region16
      $region15: #{double_conv_forward.3} parent=11 // pred_region
        _
      $region16: #{double_conv_forward.3} parent=11 // pred_fallthru
        _
      // Predicated region
      $region17: #{double_conv_forward.3} parent=11 // pred_check
        %p167 = pneg %p91
      $region18: #{double_conv_forward.3} parent=11 // pred_check_branch
        %169 = sbr.rel (%p167) target = $region20
      $region19: #{double_conv_forward.3} parent=11 // pred_region
        _
      $region20: #{double_conv_forward.3} parent=11 // pred_fallthru
        _
    $region12: #{double_conv_forward.3} parent=5 // pred_fallthru
      _
    %p170 = scmp.lt.s32.totalorder %s11, 6
    // Predicated region
    $region21: #{double_conv_forward.3} parent=5 // pred_check
      %p171 = pneg %p170
    $region22: #{double_conv_forward.3} parent=5 // pred_check_branch
      %173 = sbr.rel (%p171) target = $region24
    $region23: #{double_conv_forward.3} parent=5 // pred_region
      // Predicated region
      $region25: #{double_conv_forward.3} parent=23 // pred_check
        %p174 = pneg %p43
      $region26: #{double_conv_forward.3} parent=23 // pred_check_branch
        %176 = sbr.rel (%p174) target = $region28
      $region27: #{double_conv_forward.3} parent=23 // pred_region
        %p177 = scmp.lt.s32.totalorder %s18, 1
        %s178 = scalar_select %p177, %s18, 1
        %s179 = smul.addr %s178, 5
        %s180 = smul.addr %s179, 2
        %s181 = scalar_lea.vmem %s0, %s180
      $region28: #{double_conv_forward.3} parent=23 // pred_fallthru
        _
    $region24: #{double_conv_forward.3} parent=5 // pred_fallthru
      _
    %p182 = scmp.le.s32.totalorder 1, %s11
    %p183 = scmp.lt.s32.totalorder %s11, 7
    %p184 = pnand %p182, %p183
    %p185 = pneg %p184
    // Predicated region
    $region29: #{double_conv_forward.3} parent=5 // pred_check
      _
    $region30: #{double_conv_forward.3} parent=5 // pred_check_branch
      %187 = sbr.rel (%p184) target = $region32
    $region31: #{double_conv_forward.3} parent=5 // pred_region
      %s188 = ssub.s32 %s11, 1
      %p189 = scmp.lt.s32.totalorder %s20, 1
      %s190 = scalar_select %p189, %s20, 1
      %s191 = smul.addr %s190, 5
      %s192 = smul.addr %s191, 2
      %s193 = scalar_lea.vmem %s0, %s192
      %p194 = pneg %p49
      %p195 = pneg %p46
      %p196 = pneg %p70
      %p197 = pneg %p67
      %p198 = pneg %p91
      %p199 = pneg %p88
      %p200 = pneg %p121
      %p201 = pneg %p118
      %s202 = sadd.s32 %s21, 1
      %p203 = scmp.lt.s32.totalorder %s20, 1
      %s204 = scalar_select %p203, %s20, 1
      %p205 = scmp.lt.s32.totalorder %s202, 4
      %s206 = scalar_select %p205, %s202, 4
      %s207 = smul.addr %s206, 2
      %s208 = smul.addr %s204, 10
      %s209 = sadd.s32 %s207, %s208
      %s210 = smul.addr %s209, 4
      %s211 = scalar_lea.vmem %s3, %s210
      %p212 = pneg %p149
      %p213 = pneg %p146
      %p214 = scmp.lt.s32.totalorder %s20, 1
      %s215 = scalar_select %p214, %s20, 1
      %p216 = scmp.lt.s32.totalorder %s21, 2
      %s217 = scalar_select %p216, %s21, 2
      %s218 = smul.addr %s217, 2
      %s219 = smul.addr %s215, 6
      %s220 = sadd.s32 %s218, %s219
      %s221 = smul.addr %s220, 8
      %s222 = scalar_lea.vmem %s4, %s221
      %p223 = scmp.lt.s32.totalorder %s20, 1
      %s224 = scalar_select %p223, %s20, 1
      %s225 = smul.addr %s224, 5
      %s226 = smul.addr %s225, 2
      %s227 = scalar_lea.vmem %s0, %s226
      %s228 = sadd.s32 %s21, 1
      %p229 = scmp.lt.s32.totalorder %s20, 1
      %s230 = scalar_select %p229, %s20, 1
      %p231 = scmp.lt.s32.totalorder %s228, 4
      %s232 = scalar_select %p231, %s228, 4
      %s233 = smul.addr %s232, 2
      %s234 = smul.addr %s230, 10
      %s235 = sadd.s32 %s233, %s234
      %s236 = smul.addr %s235, 4
      %s237 = scalar_lea.vmem %s3, %s236
      %s238 = sadd.s32 %s21, 1
      %p239 = scmp.lt.s32.totalorder %s20, 1
      %s240 = scalar_select %p239, %s20, 1
      %p241 = scmp.lt.s32.totalorder %s21, 2
      %s242 = scalar_select %p241, %s21, 2
      %s243 = smul.addr %s242, 2
      %s244 = smul.addr %s240, 6
      %s245 = sadd.s32 %s243, %s244
      %s246 = smul.addr %s245, 8
      %s247 = scalar_lea.vmem %s4, %s246
      %s249 = smul.addr %s21, 2
      %s250 = scalar_lea.vmem %s227, %s249
      %v251 = vld [vmem:[%s250] sm:$0x3]
      %s252 = sadd.s32 %s21, 1
      %s253 = smul.addr %s252, 2
      %s254 = scalar_lea.vmem %s227, %s253
      %v255 = vld [vmem:[%s254] sm:$0x3]
      %s256 = sadd.s32 %s21, 2
      %s257 = smul.addr %s256, 2
      %s258 = scalar_lea.vmem %s227, %s257
      %v259 = vld [vmem:[%s258] sm:$0x3]
      %v260 = vld [vmem:[%s2] sm:$0xf]
      %v261 = vld [vmem:[%s2 + $0x4] sm:$0xf]
      %s262 = scalar_lea.vmem %s2, 8
      %v263 = vld [vmem:[%s262] sm:$0xf]
      %v264 = vld [vmem:[%s262 + $0x4] sm:$0xf]
      %v267 = vunpack.c.l.b16 %v263
      %v268 = vunpack.c.l.b16 %v264
      %v269 = vpack.c.b16 %v268, %v267
      %272 = vrot.lane.b32.xlu0 %v251, 18
      %v273 = vpop.permute.xlu0 %272
      %274 = vrot.lane.b32.xlu0 %v255, 18
      %v275 = vpop.permute.xlu0 %274
      %vm276 = vcmask 146432
      %v277 = vsel %vm276, %v273, %v275
      %vm278 = vcmask 31744
      %v280 = vsel %vm278, %v269, 0
      %vm282 = vcmask 1041408
      %v284 = vsel %vm282, %v277, 0
      %286 = vmatprep.subr.bf16.mxu0 0
      %287 = vmatpush1.bf16.msra.mxu0 0
      %288 = vmatprep.subr.bf16.mxu0 0
      %289 = vmatpush1.bf16.msra.mxu0 0
      %290 = vmatprep.subr.bf16.mxu0 0
      %291 = vmatpush1.bf16.msra.mxu0 0
      %292 = vmatprep.subr.bf16.mxu0 0
      %293 = vmatpush1.bf16.msra.mxu0 0
      %294 = vmatprep.subr.bf16.mxu0 0
      %295 = vmatpush1.bf16.msra.mxu0 0
      %296 = vmatprep.subr.bf16.mxu0 0
      %297 = vmatpush1.bf16.msra.mxu0 0
      %298 = vmatprep.subr.bf16.mxu0 0
      %299 = vmatpush1.bf16.msra.mxu0 0
      %300 = vmatprep.subr.bf16.mxu0 0
      %301 = vmatpush1.bf16.msra.mxu0 %v284
      %302 = vmatprep.subr.bf16.mxu0 0
      %303 = vmatpush2.bf16.msra.mxu0 0
      %304 = vmatprep.subr.bf16.mxu0 0
      %305 = vmatpush2.bf16.msra.mxu0 0
      %306 = vmatprep.subr.bf16.mxu0 0
      %307 = vmatpush2.bf16.msra.mxu0 0
      %308 = vmatprep.subr.bf16.mxu0 0
      %309 = vmatpush2.bf16.msra.mxu0 0
      %310 = vmatprep.subr.bf16.mxu0 0
      %311 = vmatpush2.bf16.msra.mxu0 0
      %312 = vmatprep.subr.bf16.mxu0 0
      %313 = vmatpush2.bf16.msra.mxu0 0
      %314 = vmatprep.subr.bf16.mxu0 0
      %315 = vmatpush2.bf16.msra.mxu0 0
      %316 = vmatprep.subr.bf16.mxu0 0
      %317 = vmatpush2.bf16.msra.mxu0 0
      %318 = vmatprep.mubr.bf16.mxu0 0
      %319 = vmatmul.mubr.bf16.gmra.mxu0 %v280
      %v320 = vpop.f32.mrf.mxu0
      %v321 = vadd.f32 0.0, %v320
      %v322 = vpop.f32.mrf.mxu0
      %v323 = vpop.f32.mrf.mxu0
      %v324 = vadd.f32 0.0, %v323
      %v325 = vpop.f32.mrf.mxu0
      %326 = vdwg.mxu0
      %v329 = vunpack.c.l.b16 %v260
      %v330 = vunpack.c.l.b16 %v261
      %v331 = vpack.c.b16 %v330, %v329
      %332 = vrot.lane.b32.xlu0 %v251, 19
      %v333 = vpop.permute.xlu0 %332
      %334 = vrot.lane.b32.xlu0 %v255, 19
      %v335 = vpop.permute.xlu0 %334
      %vm336 = vcmask 154624
      %v337 = vsel %vm336, %v333, %v335
      %v339 = vsel %vm278, %v331, 0
      %v342 = vsel %vm282, %v337, 0
      %344 = vmatprep.subr.bf16.mxu0 0
      %345 = vmatpush1.bf16.msra.mxu0 0
      %346 = vmatprep.subr.bf16.mxu0 0
      %347 = vmatpush1.bf16.msra.mxu0 0
      %348 = vmatprep.subr.bf16.mxu0 0
      %349 = vmatpush1.bf16.msra.mxu0 0
      %350 = vmatprep.subr.bf16.mxu0 0
      %351 = vmatpush1.bf16.msra.mxu0 0
      %352 = vmatprep.subr.bf16.mxu0 0
      %353 = vmatpush1.bf16.msra.mxu0 0
      %354 = vmatprep.subr.bf16.mxu0 0
      %355 = vmatpush1.bf16.msra.mxu0 0
      %356 = vmatprep.subr.bf16.mxu0 0
      %357 = vmatpush1.bf16.msra.mxu0 0
      %358 = vmatprep.subr.bf16.mxu0 0
      %359 = vmatpush1.bf16.msra.mxu0 %v342
      %360 = vmatprep.subr.bf16.mxu0 0
      %361 = vmatpush2.bf16.msra.mxu0 0
      %362 = vmatprep.subr.bf16.mxu0 0
      %363 = vmatpush2.bf16.msra.mxu0 0
      %364 = vmatprep.subr.bf16.mxu0 0
      %365 = vmatpush2.bf16.msra.mxu0 0
      %366 = vmatprep.subr.bf16.mxu0 0
      %367 = vmatpush2.bf16.msra.mxu0 0
      %368 = vmatprep.subr.bf16.mxu0 0
      %369 = vmatpush2.bf16.msra.mxu0 0
      %370 = vmatprep.subr.bf16.mxu0 0
      %371 = vmatpush2.bf16.msra.mxu0 0
      %372 = vmatprep.subr.bf16.mxu0 0
      %373 = vmatpush2.bf16.msra.mxu0 0
      %374 = vmatprep.subr.bf16.mxu0 0
      %375 = vmatpush2.bf16.msra.mxu0 0
      %376 = vmatprep.mubr.bf16.mxu0 0
      %377 = vmatmul.mubr.bf16.gmra.mxu0 %v339
      %v378 = vpop.f32.mrf.mxu0
      %v379 = vadd.f32 %v321, %v378
      %v380 = vpop.f32.mrf.mxu0
      %v381 = vpop.f32.mrf.mxu0
      %v382 = vadd.f32 %v324, %v381
      %v383 = vpop.f32.mrf.mxu0
      %384 = vdwg.mxu0
      %s385 = scalar_lea.vmem %s2, 16
      %v386 = vld [vmem:[%s385] sm:$0xf]
      %v387 = vld [vmem:[%s385 + $0x4] sm:$0xf]
      %v390 = vunpack.c.l.b16 %v386
      %v391 = vunpack.c.l.b16 %v387
      %v392 = vpack.c.b16 %v391, %v390
      %393 = vrot.lane.b32.xlu0 %v251, 17
      %v394 = vpop.permute.xlu0 %393
      %395 = vrot.lane.b32.xlu0 %v255, 17
      %v396 = vpop.permute.xlu0 %395
      %vm397 = vcmask 138240
      %v398 = vsel %vm397, %v394, %v396
      %v400 = vsel %vm278, %v392, 0
      %v403 = vsel %vm282, %v398, 0
      %405 = vmatprep.subr.bf16.mxu0 0
      %406 = vmatpush1.bf16.msra.mxu0 0
      %407 = vmatprep.subr.bf16.mxu0 0
      %408 = vmatpush1.bf16.msra.mxu0 0
      %409 = vmatprep.subr.bf16.mxu0 0
      %410 = vmatpush1.bf16.msra.mxu0 0
      %411 = vmatprep.subr.bf16.mxu0 0
      %412 = vmatpush1.bf16.msra.mxu0 0
      %413 = vmatprep.subr.bf16.mxu0 0
      %414 = vmatpush1.bf16.msra.mxu0 0
      %415 = vmatprep.subr.bf16.mxu0 0
      %416 = vmatpush1.bf16.msra.mxu0 0
      %417 = vmatprep.subr.bf16.mxu0 0
      %418 = vmatpush1.bf16.msra.mxu0 0
      %419 = vmatprep.subr.bf16.mxu0 0
      %420 = vmatpush1.bf16.msra.mxu0 %v403
      %421 = vmatprep.subr.bf16.mxu0 0
      %422 = vmatpush2.bf16.msra.mxu0 0
      %423 = vmatprep.subr.bf16.mxu0 0
      %424 = vmatpush2.bf16.msra.mxu0 0
      %425 = vmatprep.subr.bf16.mxu0 0
      %426 = vmatpush2.bf16.msra.mxu0 0
      %427 = vmatprep.subr.bf16.mxu0 0
      %428 = vmatpush2.bf16.msra.mxu0 0
      %429 = vmatprep.subr.bf16.mxu0 0
      %430 = vmatpush2.bf16.msra.mxu0 0
      %431 = vmatprep.subr.bf16.mxu0 0
      %432 = vmatpush2.bf16.msra.mxu0 0
      %433 = vmatprep.subr.bf16.mxu0 0
      %434 = vmatpush2.bf16.msra.mxu0 0
      %435 = vmatprep.subr.bf16.mxu0 0
      %436 = vmatpush2.bf16.msra.mxu0 0
      %437 = vmatprep.mubr.bf16.mxu0 0
      %438 = vmatmul.mubr.bf16.gmra.mxu0 %v400
      %v439 = vpop.f32.mrf.mxu0
      %v440 = vadd.f32 0.0, %v439
      %v441 = vpop.f32.mrf.mxu0
      %v442 = vpop.f32.mrf.mxu0
      %v443 = vadd.f32 0.0, %v442
      %v444 = vpop.f32.mrf.mxu0
      %445 = vdwg.mxu0
      %v446 = vadd.f32 %v379, %v440
      %v447 = vadd.f32 %v382, %v443
      %s448 = scalar_lea.vmem %s2, 24
      %v449 = vld [vmem:[%s448] sm:$0xf]
      %v450 = vld [vmem:[%s448 + $0x4] sm:$0xf]
      %v453 = vunpack.c.l.b16 %v449
      %v454 = vunpack.c.l.b16 %v450
      %v455 = vpack.c.b16 %v454, %v453
      %456 = vrot.lane.b32.xlu0 %v251, 1
      %v457 = vpop.permute.xlu0 %456
      %458 = vrot.lane.b32.xlu0 %v255, 1
      %v459 = vpop.permute.xlu0 %458
      %vm460 = vcmask 7168
      %v461 = vsel %vm460, %v457, %v459
      %v463 = vsel %vm278, %v455, 0
      %v466 = vsel %vm282, %v461, 0
      %468 = vmatprep.subr.bf16.mxu0 0
      %469 = vmatpush1.bf16.msra.mxu0 0
      %470 = vmatprep.subr.bf16.mxu0 0
      %471 = vmatpush1.bf16.msra.mxu0 0
      %472 = vmatprep.subr.bf16.mxu0 0
      %473 = vmatpush1.bf16.msra.mxu0 0
      %474 = vmatprep.subr.bf16.mxu0 0
      %475 = vmatpush1.bf16.msra.mxu0 0
      %476 = vmatprep.subr.bf16.mxu0 0
      %477 = vmatpush1.bf16.msra.mxu0 0
      %478 = vmatprep.subr.bf16.mxu0 0
      %479 = vmatpush1.bf16.msra.mxu0 0
      %480 = vmatprep.subr.bf16.mxu0 0
      %481 = vmatpush1.bf16.msra.mxu0 0
      %482 = vmatprep.subr.bf16.mxu0 0
      %483 = vmatpush1.bf16.msra.mxu0 %v466
      %484 = vmatprep.subr.bf16.mxu0 0
      %485 = vmatpush2.bf16.msra.mxu0 0
      %486 = vmatprep.subr.bf16.mxu0 0
      %487 = vmatpush2.bf16.msra.mxu0 0
      %488 = vmatprep.subr.bf16.mxu0 0
      %489 = vmatpush2.bf16.msra.mxu0 0
      %490 = vmatprep.subr.bf16.mxu0 0
      %491 = vmatpush2.bf16.msra.mxu0 0
      %492 = vmatprep.subr.bf16.mxu0 0
      %493 = vmatpush2.bf16.msra.mxu0 0
      %494 = vmatprep.subr.bf16.mxu0 0
      %495 = vmatpush2.bf16.msra.mxu0 0
      %496 = vmatprep.subr.bf16.mxu0 0
      %497 = vmatpush2.bf16.msra.mxu0 0
      %498 = vmatprep.subr.bf16.mxu0 0
      %499 = vmatpush2.bf16.msra.mxu0 0
      %500 = vmatprep.mubr.bf16.mxu0 0
      %501 = vmatmul.mubr.bf16.gmra.mxu0 %v463
      %v502 = vpop.f32.mrf.mxu0
      %v503 = vadd.f32 0.0, %v502
      %v504 = vpop.f32.mrf.mxu0
      %v505 = vpop.f32.mrf.mxu0
      %v506 = vadd.f32 0.0, %v505
      %v507 = vpop.f32.mrf.mxu0
      %508 = vdwg.mxu0
      %v509 = vadd.f32 %v446, %v503
      %v510 = vadd.f32 %v447, %v506
      %s511 = scalar_lea.vmem %s2, 32
      %v512 = vld [vmem:[%s511] sm:$0xf]
      %v513 = vld [vmem:[%s511 + $0x4] sm:$0xf]
      %v516 = vunpack.c.l.b16 %v512
      %v517 = vunpack.c.l.b16 %v513
      %v518 = vpack.c.b16 %v517, %v516
      %v520 = vsel %vm278, %v518, 0
      %v523 = vsel %vm282, %v255, 0
      %525 = vmatprep.subr.bf16.mxu0 0
      %526 = vmatpush1.bf16.msra.mxu0 0
      %527 = vmatprep.subr.bf16.mxu0 0
      %528 = vmatpush1.bf16.msra.mxu0 0
      %529 = vmatprep.subr.bf16.mxu0 0
      %530 = vmatpush1.bf16.msra.mxu0 0
      %531 = vmatprep.subr.bf16.mxu0 0
      %532 = vmatpush1.bf16.msra.mxu0 0
      %533 = vmatprep.subr.bf16.mxu0 0
      %534 = vmatpush1.bf16.msra.mxu0 0
      %535 = vmatprep.subr.bf16.mxu0 0
      %536 = vmatpush1.bf16.msra.mxu0 0
      %537 = vmatprep.subr.bf16.mxu0 0
      %538 = vmatpush1.bf16.msra.mxu0 0
      %539 = vmatprep.subr.bf16.mxu0 0
      %540 = vmatpush1.bf16.msra.mxu0 %v523
      %541 = vmatprep.subr.bf16.mxu0 0
      %542 = vmatpush2.bf16.msra.mxu0 0
      %543 = vmatprep.subr.bf16.mxu0 0
      %544 = vmatpush2.bf16.msra.mxu0 0
      %545 = vmatprep.subr.bf16.mxu0 0
      %546 = vmatpush2.bf16.msra.mxu0 0
      %547 = vmatprep.subr.bf16.mxu0 0
      %548 = vmatpush2.bf16.msra.mxu0 0
      %549 = vmatprep.subr.bf16.mxu0 0
      %550 = vmatpush2.bf16.msra.mxu0 0
      %551 = vmatprep.subr.bf16.mxu0 0
      %552 = vmatpush2.bf16.msra.mxu0 0
      %553 = vmatprep.subr.bf16.mxu0 0
      %554 = vmatpush2.bf16.msra.mxu0 0
      %555 = vmatprep.subr.bf16.mxu0 0
      %556 = vmatpush2.bf16.msra.mxu0 0
      %557 = vmatprep.mubr.bf16.mxu0 0
      %558 = vmatmul.mubr.bf16.gmra.mxu0 %v520
      %v559 = vpop.f32.mrf.mxu0
      %v560 = vadd.f32 0.0, %v559
      %v561 = vpop.f32.mrf.mxu0
      %v562 = vpop.f32.mrf.mxu0
      %v563 = vadd.f32 0.0, %v562
      %v564 = vpop.f32.mrf.mxu0
      %565 = vdwg.mxu0
      %v566 = vadd.f32 %v509, %v560
      %v567 = vadd.f32 %v510, %v563
      %s568 = scalar_lea.vmem %s2, 40
      %v569 = vld [vmem:[%s568] sm:$0xf]
      %v570 = vld [vmem:[%s568 + $0x4] sm:$0xf]
      %v573 = vunpack.c.l.b16 %v569
      %v574 = vunpack.c.l.b16 %v570
      %v575 = vpack.c.b16 %v574, %v573
      %577 = vrot.lane.b32.xlu0 %v255, 127
      %v578 = vpop.permute.xlu0 %577
      %579 = vrot.lane.b32.xlu0 %v259, 127
      %v580 = vpop.permute.xlu0 %579
      %vm581 = vcmask 1039360
      %v582 = vsel %vm581, %v578, %v580
      %v584 = vsel %vm278, %v575, 0
      %v587 = vsel %vm282, %v582, 0
      %589 = vmatprep.subr.bf16.mxu0 0
      %590 = vmatpush1.bf16.msra.mxu0 0
      %591 = vmatprep.subr.bf16.mxu0 0
      %592 = vmatpush1.bf16.msra.mxu0 0
      %593 = vmatprep.subr.bf16.mxu0 0
      %594 = vmatpush1.bf16.msra.mxu0 0
      %595 = vmatprep.subr.bf16.mxu0 0
      %596 = vmatpush1.bf16.msra.mxu0 0
      %597 = vmatprep.subr.bf16.mxu0 0
      %598 = vmatpush1.bf16.msra.mxu0 0
      %599 = vmatprep.subr.bf16.mxu0 0
      %600 = vmatpush1.bf16.msra.mxu0 0
      %601 = vmatprep.subr.bf16.mxu0 0
      %602 = vmatpush1.bf16.msra.mxu0 0
      %603 = vmatprep.subr.bf16.mxu0 0
      %604 = vmatpush1.bf16.msra.mxu0 %v587
      %605 = vmatprep.subr.bf16.mxu0 0
      %606 = vmatpush2.bf16.msra.mxu0 0
      %607 = vmatprep.subr.bf16.mxu0 0
      %608 = vmatpush2.bf16.msra.mxu0 0
      %609 = vmatprep.subr.bf16.mxu0 0
      %610 = vmatpush2.bf16.msra.mxu0 0
      %611 = vmatprep.subr.bf16.mxu0 0
      %612 = vmatpush2.bf16.msra.mxu0 0
      %613 = vmatprep.subr.bf16.mxu0 0
      %614 = vmatpush2.bf16.msra.mxu0 0
      %615 = vmatprep.subr.bf16.mxu0 0
      %616 = vmatpush2.bf16.msra.mxu0 0
      %617 = vmatprep.subr.bf16.mxu0 0
      %618 = vmatpush2.bf16.msra.mxu0 0
      %619 = vmatprep.subr.bf16.mxu0 0
      %620 = vmatpush2.bf16.msra.mxu0 0
      %621 = vmatprep.mubr.bf16.mxu0 0
      %622 = vmatmul.mubr.bf16.gmra.mxu0 %v584
      %v623 = vpop.f32.mrf.mxu0
      %v624 = vadd.f32 0.0, %v623
      %v625 = vpop.f32.mrf.mxu0
      %v626 = vpop.f32.mrf.mxu0
      %v627 = vadd.f32 0.0, %v626
      %v628 = vpop.f32.mrf.mxu0
      %629 = vdwg.mxu0
      %v630 = vadd.f32 %v566, %v624
      %v631 = vadd.f32 %v567, %v627
      %s632 = scalar_lea.vmem %s2, 48
      %v633 = vld [vmem:[%s632] sm:$0xf]
      %v634 = vld [vmem:[%s632 + $0x4] sm:$0xf]
      %v637 = vunpack.c.l.b16 %v633
      %v638 = vunpack.c.l.b16 %v634
      %v639 = vpack.c.b16 %v638, %v637
      %640 = vrot.lane.b32.xlu0 %v255, 111
      %v641 = vpop.permute.xlu0 %640
      %642 = vrot.lane.b32.xlu0 %v259, 111
      %v643 = vpop.permute.xlu0 %642
      %vm644 = vcmask 908288
      %v645 = vsel %vm644, %v641, %v643
      %v647 = vsel %vm278, %v639, 0
      %v650 = vsel %vm282, %v645, 0
      %652 = vmatprep.subr.bf16.mxu0 0
      %653 = vmatpush1.bf16.msra.mxu0 0
      %654 = vmatprep.subr.bf16.mxu0 0
      %655 = vmatpush1.bf16.msra.mxu0 0
      %656 = vmatprep.subr.bf16.mxu0 0
      %657 = vmatpush1.bf16.msra.mxu0 0
      %658 = vmatprep.subr.bf16.mxu0 0
      %659 = vmatpush1.bf16.msra.mxu0 0
      %660 = vmatprep.subr.bf16.mxu0 0
      %661 = vmatpush1.bf16.msra.mxu0 0
      %662 = vmatprep.subr.bf16.mxu0 0
      %663 = vmatpush1.bf16.msra.mxu0 0
      %664 = vmatprep.subr.bf16.mxu0 0
      %665 = vmatpush1.bf16.msra.mxu0 0
      %666 = vmatprep.subr.bf16.mxu0 0
      %667 = vmatpush1.bf16.msra.mxu0 %v650
      %668 = vmatprep.subr.bf16.mxu0 0
      %669 = vmatpush2.bf16.msra.mxu0 0
      %670 = vmatprep.subr.bf16.mxu0 0
      %671 = vmatpush2.bf16.msra.mxu0 0
      %672 = vmatprep.subr.bf16.mxu0 0
      %673 = vmatpush2.bf16.msra.mxu0 0
      %674 = vmatprep.subr.bf16.mxu0 0
      %675 = vmatpush2.bf16.msra.mxu0 0
      %676 = vmatprep.subr.bf16.mxu0 0
      %677 = vmatpush2.bf16.msra.mxu0 0
      %678 = vmatprep.subr.bf16.mxu0 0
      %679 = vmatpush2.bf16.msra.mxu0 0
      %680 = vmatprep.subr.bf16.mxu0 0
      %681 = vmatpush2.bf16.msra.mxu0 0
      %682 = vmatprep.subr.bf16.mxu0 0
      %683 = vmatpush2.bf16.msra.mxu0 0
      %684 = vmatprep.mubr.bf16.mxu0 0
      %685 = vmatmul.mubr.bf16.gmra.mxu0 %v647
      %v686 = vpop.f32.mrf.mxu0
      %v687 = vadd.f32 0.0, %v686
      %v688 = vpop.f32.mrf.mxu0
      %v689 = vpop.f32.mrf.mxu0
      %v690 = vadd.f32 0.0, %v689
      %v691 = vpop.f32.mrf.mxu0
      %692 = vdwg.mxu0
      %v693 = vadd.f32 %v630, %v687
      %v694 = vadd.f32 %v631, %v690
      %s695 = scalar_lea.vmem %s2, 56
      %v696 = vld [vmem:[%s695] sm:$0xf]
      %v697 = vld [vmem:[%s695 + $0x4] sm:$0xf]
      %v700 = vunpack.c.l.b16 %v696
      %v701 = vunpack.c.l.b16 %v697
      %v702 = vpack.c.b16 %v701, %v700
      %703 = vrot.lane.b32.xlu0 %v255, 110
      %v704 = vpop.permute.xlu0 %703
      %705 = vrot.lane.b32.xlu0 %v259, 110
      %v706 = vpop.permute.xlu0 %705
      %vm707 = vcmask 900096
      %v708 = vsel %vm707, %v704, %v706
      %v710 = vsel %vm278, %v702, 0
      %v713 = vsel %vm282, %v708, 0
      %715 = vmatprep.subr.bf16.mxu0 0
      %716 = vmatpush1.bf16.msra.mxu0 0
      %717 = vmatprep.subr.bf16.mxu0 0
      %718 = vmatpush1.bf16.msra.mxu0 0
      %719 = vmatprep.subr.bf16.mxu0 0
      %720 = vmatpush1.bf16.msra.mxu0 0
      %721 = vmatprep.subr.bf16.mxu0 0
      %722 = vmatpush1.bf16.msra.mxu0 0
      %723 = vmatprep.subr.bf16.mxu0 0
      %724 = vmatpush1.bf16.msra.mxu0 0
      %725 = vmatprep.subr.bf16.mxu0 0
      %726 = vmatpush1.bf16.msra.mxu0 0
      %727 = vmatprep.subr.bf16.mxu0 0
      %728 = vmatpush1.bf16.msra.mxu0 0
      %729 = vmatprep.subr.bf16.mxu0 0
      %730 = vmatpush1.bf16.msra.mxu0 %v713
      %731 = vmatprep.subr.bf16.mxu0 0
      %732 = vmatpush2.bf16.msra.mxu0 0
      %733 = vmatprep.subr.bf16.mxu0 0
      %734 = vmatpush2.bf16.msra.mxu0 0
      %735 = vmatprep.subr.bf16.mxu0 0
      %736 = vmatpush2.bf16.msra.mxu0 0
      %737 = vmatprep.subr.bf16.mxu0 0
      %738 = vmatpush2.bf16.msra.mxu0 0
      %739 = vmatprep.subr.bf16.mxu0 0
      %740 = vmatpush2.bf16.msra.mxu0 0
      %741 = vmatprep.subr.bf16.mxu0 0
      %742 = vmatpush2.bf16.msra.mxu0 0
      %743 = vmatprep.subr.bf16.mxu0 0
      %744 = vmatpush2.bf16.msra.mxu0 0
      %745 = vmatprep.subr.bf16.mxu0 0
      %746 = vmatpush2.bf16.msra.mxu0 0
      %747 = vmatprep.mubr.bf16.mxu0 0
      %748 = vmatmul.mubr.bf16.gmra.mxu0 %v710
      %v749 = vpop.f32.mrf.mxu0
      %v750 = vadd.f32 0.0, %v749
      %v751 = vpop.f32.mrf.mxu0
      %v752 = vpop.f32.mrf.mxu0
      %v753 = vadd.f32 0.0, %v752
      %v754 = vpop.f32.mrf.mxu0
      %755 = vdwg.mxu0
      %v756 = vadd.f32 %v693, %v750
      %v757 = vadd.f32 %v694, %v753
      %s758 = scalar_lea.vmem %s2, 64
      %v759 = vld [vmem:[%s758] sm:$0xf]
      %v760 = vld [vmem:[%s758 + $0x4] sm:$0xf]
      %v763 = vunpack.c.l.b16 %v759
      %v764 = vunpack.c.l.b16 %v760
      %v765 = vpack.c.b16 %v764, %v763
      %766 = vrot.lane.b32.xlu0 %v255, 109
      %v767 = vpop.permute.xlu0 %766
      %768 = vrot.lane.b32.xlu0 %v259, 109
      %v769 = vpop.permute.xlu0 %768
      %vm770 = vcmask 891904
      %v771 = vsel %vm770, %v767, %v769
      %v773 = vsel %vm278, %v765, 0
      %v776 = vsel %vm282, %v771, 0
      %778 = vmatprep.subr.bf16.mxu0 0
      %779 = vmatpush1.bf16.msra.mxu0 0
      %780 = vmatprep.subr.bf16.mxu0 0
      %781 = vmatpush1.bf16.msra.mxu0 0
      %782 = vmatprep.subr.bf16.mxu0 0
      %783 = vmatpush1.bf16.msra.mxu0 0
      %784 = vmatprep.subr.bf16.mxu0 0
      %785 = vmatpush1.bf16.msra.mxu0 0
      %786 = vmatprep.subr.bf16.mxu0 0
      %787 = vmatpush1.bf16.msra.mxu0 0
      %788 = vmatprep.subr.bf16.mxu0 0
      %789 = vmatpush1.bf16.msra.mxu0 0
      %790 = vmatprep.subr.bf16.mxu0 0
      %791 = vmatpush1.bf16.msra.mxu0 0
      %792 = vmatprep.subr.bf16.mxu0 0
      %793 = vmatpush1.bf16.msra.mxu0 %v776
      %794 = vmatprep.subr.bf16.mxu0 0
      %795 = vmatpush2.bf16.msra.mxu0 0
      %796 = vmatprep.subr.bf16.mxu0 0
      %797 = vmatpush2.bf16.msra.mxu0 0
      %798 = vmatprep.subr.bf16.mxu0 0
      %799 = vmatpush2.bf16.msra.mxu0 0
      %800 = vmatprep.subr.bf16.mxu0 0
      %801 = vmatpush2.bf16.msra.mxu0 0
      %802 = vmatprep.subr.bf16.mxu0 0
      %803 = vmatpush2.bf16.msra.mxu0 0
      %804 = vmatprep.subr.bf16.mxu0 0
      %805 = vmatpush2.bf16.msra.mxu0 0
      %806 = vmatprep.subr.bf16.mxu0 0
      %807 = vmatpush2.bf16.msra.mxu0 0
      %808 = vmatprep.subr.bf16.mxu0 0
      %809 = vmatpush2.bf16.msra.mxu0 0
      %810 = vmatprep.mubr.bf16.mxu0 0
      %811 = vmatmul.mubr.bf16.gmra.mxu0 %v773
      %v812 = vpop.f32.mrf.mxu0
      %v813 = vadd.f32 0.0, %v812
      %v814 = vpop.f32.mrf.mxu0
      %v815 = vpop.f32.mrf.mxu0
      %v816 = vadd.f32 0.0, %v815
      %v817 = vpop.f32.mrf.mxu0
      %818 = vdwg.mxu0
      %v819 = vadd.f32 %v756, %v813
      %v820 = vadd.f32 %v757, %v816
      %v821 = vpack.c.bf16 %v820, %v819
      %v823 = vunpack.c.l.b16 %v821
      %v824 = vunpack.c.h.b16 %v821
      %v825 = vpack.c.b16 %v823, %v823
      %v826 = vpack.c.b16 %v824, %v824
      %829 = vst [vmem:[%s237] sm:$0xf] %v825
      %830 = vst [vmem:[%s237 + $0x4] sm:$0xf] %v826
      %s831 = scalar_lea.vmem %s1, %s252
      %v832 = vld [vmem:[%s831] sm:$0x1]
      %vm833 = vcmp.gt.f32.partialorder %v832, 0.0
      %v834 = vsel %vm833, 1, 0
      %v835 = vlaneseq
      %v836 = vshrl.u32 %v835, 7
      %v837 = vsub.s32 0, %v836
      %v838 = vrot.slane %v834, %v837
      %vm839 = vcmp.eq.s32.totalorder %v838, 1
      %v840 = vsel %vm839, %v819, 0.0
      %v841 = vsel %vm839, %v820, 0.0
      %842 = vadd.xlane.f32.xlu0 %v840
      %v843 = vpop.xlane.xlu0 %842
      %844 = vadd.xlane.f32.xlu0 %v841
      %v845 = vpop.xlane.xlu0 %844
      %vm846 = vcmask 7168
      %847 = vst.msk [vmem:[%s247] sm:$0xff] %vm846, %v843
      %848 = vst.msk [vmem:[%s247 + $0x8] sm:$0xff] %vm846, %v845
      %v849 = vmul.f32 %v840, %v840
      %v850 = vmul.f32 %v841, %v841
      %851 = vadd.xlane.f32.xlu0 %v849
      %v852 = vpop.xlane.xlu0 %851
      %853 = vadd.xlane.f32.xlu0 %v850
      %v854 = vpop.xlane.xlu0 %853
      %vm855 = vcmask 15368
      %856 = vst.msk [vmem:[%s247] sm:$0xff] %vm855, %v852
      %857 = vst.msk [vmem:[%s247 + $0x8] sm:$0xff] %vm855, %v854
      %s858 = sadd.s32 %s21, 1
      %p859 = scmp.lt.s32.totalorder %s20, 1
      %s860 = scalar_select %p859, %s20, 1
      %p861 = scmp.lt.s32.totalorder %s858, 4
      %s862 = scalar_select %p861, %s858, 4
      %s863 = smul.addr %s862, 2
      %s864 = smul.addr %s860, 10
      %s865 = sadd.s32 %s863, %s864
      %s866 = smul.addr %s865, 4
      %s867 = scalar_lea.vmem %s3, %s866
      %p868 = scmp.lt.s32.totalorder %s20, 1
      %s869 = scalar_select %p868, %s20, 1
      %p870 = scmp.lt.s32.totalorder %s21, 2
      %s871 = scalar_select %p870, %s21, 2
      %s872 = smul.addr %s871, 2
      %s873 = smul.addr %s869, 6
      %s874 = sadd.s32 %s872, %s873
      %s875 = smul.addr %s874, 8
      %s876 = scalar_lea.vmem %s4, %s875
      // Predicated region
      $region33: #{double_conv_forward.3} parent=31 // pred_check
        %p877 = pneg %p118
      $region34: #{double_conv_forward.3} parent=31 // pred_check_branch
        %879 = sbr.rel (%p877) target = $region36
      $region35: #{double_conv_forward.3} parent=31 // pred_region
        %s880 = sadd.s32 %s21, 1
      $region36: #{double_conv_forward.3} parent=31 // pred_fallthru
        _
      // Predicated region
      $region37: #{double_conv_forward.3} parent=31 // pred_check
        %p881 = pneg %p146
      $region38: #{double_conv_forward.3} parent=31 // pred_check_branch
        %883 = sbr.rel (%p881) target = $region40
      $region39: #{double_conv_forward.3} parent=31 // pred_region
        _
      $region40: #{double_conv_forward.3} parent=31 // pred_fallthru
        _
    $region32: #{double_conv_forward.3} parent=5 // pred_fallthru
      _
    %p884 = scmp.le.s32.totalorder 2, %s11
    // Predicated region
    $region41: #{double_conv_forward.3} parent=5 // pred_check
      %p885 = pneg %p884
    $region42: #{double_conv_forward.3} parent=5 // pred_check_branch
      %887 = sbr.rel (%p885) target = $region44
    $region43: #{double_conv_forward.3} parent=5 // pred_region
      %s888 = ssub.s32 %s11, 2
      // Predicated region
      $region45: #{double_conv_forward.3} parent=43 // pred_check
        %p889 = pneg %p124
      $region46: #{double_conv_forward.3} parent=43 // pred_check_branch
        %891 = sbr.rel (%p889) target = $region48
      $region47: #{double_conv_forward.3} parent=43 // pred_region
        %s892 = sadd.s32 %s23, 1
        %p893 = scmp.lt.s32.totalorder %s22, 1
        %s894 = scalar_select %p893, %s22, 1
        %p895 = scmp.lt.s32.totalorder %s892, 4
        %s896 = scalar_select %p895, %s892, 4
        %s897 = smul.addr %s896, 2
        %s898 = smul.addr %s894, 10
        %s899 = sadd.s32 %s897, %s898
        %s900 = smul.addr %s899, 4
        %s901 = scalar_lea.vmem %s3, %s900
      $region48: #{double_conv_forward.3} parent=43 // pred_fallthru
        _
      // Predicated region
      $region49: #{double_conv_forward.3} parent=43 // pred_check
        %p902 = pneg %p152
      $region50: #{double_conv_forward.3} parent=43 // pred_check_branch
        %904 = sbr.rel (%p902) target = $region52
      $region51: #{double_conv_forward.3} parent=43 // pred_region
        %p905 = scmp.lt.s32.totalorder %s22, 1
        %s906 = scalar_select %p905, %s22, 1
        %p907 = scmp.lt.s32.totalorder %s23, 2
        %s908 = scalar_select %p907, %s23, 2
        %s909 = smul.addr %s908, 2
        %s910 = smul.addr %s906, 6
        %s911 = sadd.s32 %s909, %s910
        %s912 = smul.addr %s911, 8
        %s913 = scalar_lea.vmem %s4, %s912
      $region52: #{double_conv_forward.3} parent=43 // pred_fallthru
        _
    $region44: #{double_conv_forward.3} parent=5 // pred_fallthru
      _
  $region6: #{double_conv_forward.3} parent=0 // loop_footer
    %s15 = sadd.s32 1, %s11
  $region7: #{double_conv_forward.3} parent=0 // loop_footer_branch
    %10 = sbr.rel target = $region3
  $region8: #{double_conv_forward.3} parent=0 // loop_exit
    _

// kernel: double_conv_forward.4
$region0: #{double_conv_forward.4}
  #allocation0 [shape = 'u32[]', space=smem, size = 0x4, offset = 0x4, fixed_abs, tag = 'smem constant byte address 0x4 - core index']
  #allocation1 [shape = 'u32[144,128]{1,0:T(1,128)}', space=vmem, size = 0x12000, scoped, tag = 'internal scratch']
  %s0 = inlined_call_operand.vmem [shape: bf16[2,5,16,128], index: 0, kind: input, shape index: {}]
  %s1 = inlined_call_operand.vmem [shape: f32[5,1,128], index: 1, kind: input, shape index: {}]
  %s2 = inlined_call_operand.vmem [shape: f32[16,1], index: 2, kind: input, shape index: {}]
  %s3 = inlined_call_operand.vmem [shape: f32[16,1], index: 3, kind: input, shape index: {}]
  %s4 = inlined_call_operand.vmem [shape: bf16[16,144], index: 4, kind: input, shape index: {}]
  %s5 = inlined_call_operand.vmem [shape: bf16[2,5,16,128], index: 5, kind: output, shape index: {0}]
  %s6 = inlined_call_operand.vmem [shape: f32[2,3,16,2], index: 6, kind: output, shape index: {1}]
  %7 = xla_tuple %s5, %s6
  %s8 = sld [smem:[#allocation0]]
  $region61: #{double_conv_forward.4} parent=0
    _
  %s10 = ssub.s32 1, %s8
  %s11 = scalar_select 0, %s10, %s8
  loop: start=0, step=1, limit=8
  $region2: #{double_conv_forward.4} parent=0 // loop_pre_header
    _
  $region3: #{double_conv_forward.4} parent=0 // loop_header
    %s13 = sphi 0, %s17
    %p14 = scmp.ge.s32.totalorder %s13, 8
    %s20 = sphi 0, %s32
    %s21 = sphi 0, %s28
    %s22 = sphi 0, %s20
    %s23 = sphi 0, %s21
    %s24 = sphi 0, %s22
    %s25 = sphi 0, %s23
    %s35 = sphi 0, %s37
    %s38 = sphi 0, %s35
    %s39 = sphi 0, %s38
    %s55 = sphi 0, %s39
    %s59 = sphi 0, %s59
    %s61 = sphi 0, %s59
    %s62 = sphi 0, %s61
    %s76 = sphi 0, %s62
    %s80 = sphi 0, %s80
    %s82 = sphi 0, %s80
    %s83 = sphi 0, %s82
    %s97 = sphi 0, %s83
    %s101 = sphi 0, %s101
    %s103 = sphi 0, %s101
    %s104 = sphi 0, %s103
    %s118 = sphi 0, %s104
    %s122 = sphi 0, %s122
    %s124 = sphi 0, %s122
    %s125 = sphi 0, %s124
    %s139 = sphi 0, %s125
    %s149 = sphi 0, %s151
    %s152 = sphi 0, %s149
    %s153 = sphi 0, %s152
    %s169 = sphi 0, %s153
    %s177 = sphi 0, %s179
    %s180 = sphi 0, %s177
    %s181 = sphi 0, %s180
    %s197 = sphi 0, %s181
  $region4: #{double_conv_forward.4} parent=0 // loop_header_branch
    %16 = sbr.rel (%p14) target = $region8
  $region5: #{double_conv_forward.4} parent=0 // loop_body
    %s18 = ssub.s32 %s13, 1
    %s19 = ssub.s32 %s13, 2
    %s26 = sadd.s32 1, %s21
    %p27 = scmp.ge.s32.totalorder %s26, 3
    %s28 = scalar_select %p27, 0, %s26
    %s29 = sadd.s32 1, %s20
    %s30 = scalar_select %p27, %s29, %s20
    %p31 = scmp.ge.s32.totalorder %s30, 2
    %s32 = scalar_select %p31, 0, %s30
    %s33 = ssub.s32 %s20, %s32
    %p34 = scmp.eq.s32.totalorder %s33, 0
    %s36 = sadd.s32 %s35, 1
    %s37 = scalar_select %p34, %s35, %s36
    %p40 = pneg %p34
    %p41 = scmp.eq.s32.totalorder %s13, 5
    %p42 = por %p40, %p41
    %p43 = scmp.ne.s32.totalorder %s35, %s38
    %p44 = scmp.eq.s32.totalorder %s13, 0
    %p45 = por %p43, %p44
    %p46 = scmp.ne.s32.totalorder %s35, %s38
    %p47 = scmp.eq.s32.totalorder %s18, 5
    %p48 = por %p46, %p47
    %p49 = scmp.ne.s32.totalorder %s38, %s39
    %p50 = scmp.eq.s32.totalorder %s18, 0
    %p51 = por %p49, %p50
    %p52 = scmp.ne.s32.totalorder %s38, %s39
    %p53 = scmp.eq.s32.totalorder %s19, 5
    %p54 = por %p52, %p53
    %p56 = scmp.ne.s32.totalorder %s39, %s55
    %p57 = scmp.eq.s32.totalorder %s19, 0
    %p58 = por %p56, %p57
    %s60 = sadd.s32 %s59, 1
    %p63 = scmp.eq.s32.totalorder %s13, 5
    %p64 = scmp.ne.s32.totalorder %s59, %s61
    %p65 = scmp.eq.s32.totalorder %s13, 0
    %p66 = por %p64, %p65
    %p67 = scmp.ne.s32.totalorder %s59, %s61
    %p68 = scmp.eq.s32.totalorder %s18, 5
    %p69 = por %p67, %p68
    %p70 = scmp.ne.s32.totalorder %s61, %s62
    %p71 = scmp.eq.s32.totalorder %s18, 0
    %p72 = por %p70, %p71
    %p73 = scmp.ne.s32.totalorder %s61, %s62
    %p74 = scmp.eq.s32.totalorder %s19, 5
    %p75 = por %p73, %p74
    %p77 = scmp.ne.s32.totalorder %s62, %s76
    %p78 = scmp.eq.s32.totalorder %s19, 0
    %p79 = por %p77, %p78
    %s81 = sadd.s32 %s80, 1
    %p84 = scmp.eq.s32.totalorder %s13, 5
    %p85 = scmp.ne.s32.totalorder %s80, %s82
    %p86 = scmp.eq.s32.totalorder %s13, 0
    %p87 = por %p85, %p86
    %p88 = scmp.ne.s32.totalorder %s80, %s82
    %p89 = scmp.eq.s32.totalorder %s18, 5
    %p90 = por %p88, %p89
    %p91 = scmp.ne.s32.totalorder %s82, %s83
    %p92 = scmp.eq.s32.totalorder %s18, 0
    %p93 = por %p91, %p92
    %p94 = scmp.ne.s32.totalorder %s82, %s83
    %p95 = scmp.eq.s32.totalorder %s19, 5
    %p96 = por %p94, %p95
    %p98 = scmp.ne.s32.totalorder %s83, %s97
    %p99 = scmp.eq.s32.totalorder %s19, 0
    %p100 = por %p98, %p99
    %s102 = sadd.s32 %s101, 1
    %p105 = scmp.eq.s32.totalorder %s13, 5
    %p106 = scmp.ne.s32.totalorder %s101, %s103
    %p107 = scmp.eq.s32.totalorder %s13, 0
    %p108 = por %p106, %p107
    %p109 = scmp.ne.s32.totalorder %s101, %s103
    %p110 = scmp.eq.s32.totalorder %s18, 5
    %p111 = por %p109, %p110
    %p112 = scmp.ne.s32.totalorder %s103, %s104
    %p113 = scmp.eq.s32.totalorder %s18, 0
    %p114 = por %p112, %p113
    %p115 = scmp.ne.s32.totalorder %s103, %s104
    %p116 = scmp.eq.s32.totalorder %s19, 5
    %p117 = por %p115, %p116
    %p119 = scmp.ne.s32.totalorder %s104, %s118
    %p120 = scmp.eq.s32.totalorder %s19, 0
    %p121 = por %p119, %p120
    %s123 = sadd.s32 %s122, 1
    %p126 = scmp.eq.s32.totalorder %s13, 5
    %p127 = scmp.ne.s32.totalorder %s122, %s124
    %p128 = scmp.eq.s32.totalorder %s13, 0
    %p129 = por %p127, %p128
    %p130 = scmp.ne.s32.totalorder %s122, %s124
    %p131 = scmp.eq.s32.totalorder %s18, 5
    %p132 = por %p130, %p131
    %p133 = scmp.ne.s32.totalorder %s124, %s125
    %p134 = scmp.eq.s32.totalorder %s18, 0
    %p135 = por %p133, %p134
    %p136 = scmp.ne.s32.totalorder %s124, %s125
    %p137 = scmp.eq.s32.totalorder %s19, 5
    %p138 = por %p136, %p137
    %p140 = scmp.ne.s32.totalorder %s125, %s139
    %p141 = scmp.eq.s32.totalorder %s19, 0
    %p142 = por %p140, %p141
    %s143 = sadd.s32 %s21, 1
    %s144 = sadd.s32 %s28, 1
    %s145 = ssub.s32 %s20, %s32
    %s146 = ssub.s32 %s143, %s144
    %s147 = sor.u32 %s145, %s146
    %p148 = scmp.eq.s32.totalorder %s147, 0
    %s150 = sadd.s32 %s149, 1
    %s151 = scalar_select %p148, %s149, %s150
    %p154 = pneg %p148
    %p155 = scmp.eq.s32.totalorder %s13, 5
    %p156 = por %p154, %p155
    %p157 = scmp.ne.s32.totalorder %s149, %s152
    %p158 = scmp.eq.s32.totalorder %s13, 0
    %p159 = por %p157, %p158
    %p160 = scmp.ne.s32.totalorder %s149, %s152
    %p161 = scmp.eq.s32.totalorder %s18, 5
    %p162 = por %p160, %p161
    %p163 = scmp.ne.s32.totalorder %s152, %s153
    %p164 = scmp.eq.s32.totalorder %s18, 0
    %p165 = por %p163, %p164
    %p166 = scmp.ne.s32.totalorder %s152, %s153
    %p167 = scmp.eq.s32.totalorder %s19, 5
    %p168 = por %p166, %p167
    %p170 = scmp.ne.s32.totalorder %s153, %s169
    %p171 = scmp.eq.s32.totalorder %s19, 0
    %p172 = por %p170, %p171
    %s173 = ssub.s32 %s20, %s32
    %s174 = ssub.s32 %s21, %s28
    %s175 = sor.u32 %s173, %s174
    %p176 = scmp.eq.s32.totalorder %s175, 0
    %s178 = sadd.s32 %s177, 1
    %s179 = scalar_select %p176, %s177, %s178
    %p182 = pneg %p176
    %p183 = scmp.eq.s32.totalorder %s13, 5
    %p184 = por %p182, %p183
    %p185 = scmp.ne.s32.totalorder %s177, %s180
    %p186 = scmp.eq.s32.totalorder %s13, 0
    %p187 = por %p185, %p186
    %p188 = scmp.ne.s32.totalorder %s177, %s180
    %p189 = scmp.eq.s32.totalorder %s18, 5
    %p190 = por %p188, %p189
    %p191 = scmp.ne.s32.totalorder %s180, %s181
    %p192 = scmp.eq.s32.totalorder %s18, 0
    %p193 = por %p191, %p192
    %p194 = scmp.ne.s32.totalorder %s180, %s181
    %p195 = scmp.eq.s32.totalorder %s19, 5
    %p196 = por %p194, %p195
    %p198 = scmp.ne.s32.totalorder %s181, %s197
    %p199 = scmp.eq.s32.totalorder %s19, 0
    %p200 = por %p198, %p199
    %p201 = scmp.le.s32.totalorder 1, %s13
    %p202 = scmp.lt.s32.totalorder %s13, 7
    %p203 = pnand %p201, %p202
    %p204 = pneg %p203
    // Predicated region
    $region9: #{double_conv_forward.4} parent=5 // pred_check
      _
    $region10: #{double_conv_forward.4} parent=5 // pred_check_branch
      %206 = sbr.rel (%p203) target = $region12
    $region11: #{double_conv_forward.4} parent=5 // pred_region
      %s207 = ssub.s32 %s13, 1
      // Predicated region
      $region13: #{double_conv_forward.4} parent=11 // pred_check
        %p208 = pneg %p72
      $region14: #{double_conv_forward.4} parent=11 // pred_check_branch
        %210 = sbr.rel (%p208) target = $region16
      $region15: #{double_conv_forward.4} parent=11 // pred_region
        _
      $region16: #{double_conv_forward.4} parent=11 // pred_fallthru
        _
      // Predicated region
      $region17: #{double_conv_forward.4} parent=11 // pred_check
        %p211 = pneg %p93
      $region18: #{double_conv_forward.4} parent=11 // pred_check_branch
        %213 = sbr.rel (%p211) target = $region20
      $region19: #{double_conv_forward.4} parent=11 // pred_region
        _
      $region20: #{double_conv_forward.4} parent=11 // pred_fallthru
        _
      // Predicated region
      $region21: #{double_conv_forward.4} parent=11 // pred_check
        %p214 = pneg %p114
      $region22: #{double_conv_forward.4} parent=11 // pred_check_branch
        %216 = sbr.rel (%p214) target = $region24
      $region23: #{double_conv_forward.4} parent=11 // pred_region
        _
      $region24: #{double_conv_forward.4} parent=11 // pred_fallthru
        _
      // Predicated region
      $region25: #{double_conv_forward.4} parent=11 // pred_check
        %p217 = pneg %p135
      $region26: #{double_conv_forward.4} parent=11 // pred_check_branch
        %219 = sbr.rel (%p217) target = $region28
      $region27: #{double_conv_forward.4} parent=11 // pred_region
        _
      $region28: #{double_conv_forward.4} parent=11 // pred_fallthru
        _
    $region12: #{double_conv_forward.4} parent=5 // pred_fallthru
      _
    %p220 = scmp.lt.s32.totalorder %s13, 6
    // Predicated region
    $region29: #{double_conv_forward.4} parent=5 // pred_check
      %p221 = pneg %p220
    $region30: #{double_conv_forward.4} parent=5 // pred_check_branch
      %223 = sbr.rel (%p221) target = $region32
    $region31: #{double_conv_forward.4} parent=5 // pred_region
      // Predicated region
      $region33: #{double_conv_forward.4} parent=31 // pred_check
        %p224 = pneg %p45
      $region34: #{double_conv_forward.4} parent=31 // pred_check_branch
        %226 = sbr.rel (%p224) target = $region36
      $region35: #{double_conv_forward.4} parent=31 // pred_region
        %p227 = scmp.lt.s32.totalorder %s20, 1
        %s228 = scalar_select %p227, %s20, 1
        %s229 = smul.addr %s228, 10
        %s230 = smul.addr %s229, 4
        %s231 = scalar_lea.vmem %s0, %s230
      $region36: #{double_conv_forward.4} parent=31 // pred_fallthru
        _
    $region32: #{double_conv_forward.4} parent=5 // pred_fallthru
      _
    %p232 = scmp.le.s32.totalorder 1, %s13
    %p233 = scmp.lt.s32.totalorder %s13, 7
    %p234 = pnand %p232, %p233
    %p235 = pneg %p234
    // Predicated region
    $region37: #{double_conv_forward.4} parent=5 // pred_check
      _
    $region38: #{double_conv_forward.4} parent=5 // pred_check_branch
      %237 = sbr.rel (%p234) target = $region40
    $region39: #{double_conv_forward.4} parent=5 // pred_region
      %s238 = ssub.s32 %s13, 1
      %p239 = scmp.lt.s32.totalorder %s22, 1
      %s240 = scalar_select %p239, %s22, 1
      %s241 = smul.addr %s240, 10
      %s242 = smul.addr %s241, 4
      %s243 = scalar_lea.vmem %s0, %s242
      %p244 = pneg %p51
      %p245 = pneg %p48
      %p246 = pneg %p72
      %p247 = pneg %p69
      %p248 = pneg %p93
      %p249 = pneg %p90
      %p250 = pneg %p114
      %p251 = pneg %p111
      %p252 = pneg %p135
      %p253 = pneg %p132
      %p254 = pneg %p165
      %p255 = pneg %p162
      %s256 = sadd.s32 %s23, 1
      %p257 = scmp.lt.s32.totalorder %s22, 1
      %s258 = scalar_select %p257, %s22, 1
      %p259 = scmp.lt.s32.totalorder %s256, 4
      %s260 = scalar_select %p259, %s256, 4
      %s261 = smul.addr %s260, 2
      %s262 = smul.addr %s258, 10
      %s263 = sadd.s32 %s261, %s262
      %s264 = smul.addr %s263, 4
      %s265 = scalar_lea.vmem %s5, %s264
      %p266 = pneg %p193
      %p267 = pneg %p190
      %p268 = scmp.lt.s32.totalorder %s22, 1
      %s269 = scalar_select %p268, %s22, 1
      %p270 = scmp.lt.s32.totalorder %s23, 2
      %s271 = scalar_select %p270, %s23, 2
      %s272 = smul.addr %s271, 2
      %s273 = smul.addr %s269, 6
      %s274 = sadd.s32 %s272, %s273
      %s275 = smul.addr %s274, 8
      %s276 = scalar_lea.vmem %s6, %s275
      %p277 = scmp.lt.s32.totalorder %s22, 1
      %s278 = scalar_select %p277, %s22, 1
      %s279 = smul.addr %s278, 10
      %s280 = smul.addr %s279, 4
      %s281 = scalar_lea.vmem %s0, %s280
      %s282 = sadd.s32 %s23, 1
      %p283 = scmp.lt.s32.totalorder %s22, 1
      %s284 = scalar_select %p283, %s22, 1
      %p285 = scmp.lt.s32.totalorder %s282, 4
      %s286 = scalar_select %p285, %s282, 4
      %s287 = smul.addr %s286, 2
      %s288 = smul.addr %s284, 10
      %s289 = sadd.s32 %s287, %s288
      %s290 = smul.addr %s289, 4
      %s291 = scalar_lea.vmem %s5, %s290
      %s292 = sadd.s32 %s23, 1
      %p293 = scmp.lt.s32.totalorder %s22, 1
      %s294 = scalar_select %p293, %s22, 1
      %p295 = scmp.lt.s32.totalorder %s23, 2
      %s296 = scalar_select %p295, %s23, 2
      %s297 = smul.addr %s296, 2
      %s298 = smul.addr %s294, 6
      %s299 = sadd.s32 %s297, %s298
      %s300 = smul.addr %s299, 8
      %s301 = scalar_lea.vmem %s6, %s300
      %s303 = smul.u32 %s23, 2
      %s304 = smul.addr %s303, 4
      %s305 = scalar_lea.vmem %s281, %s304
      %v306 = vld [vmem:[%s305] sm:$0xf]
      %v307 = vld [vmem:[%s305 + $0x4] sm:$0xf]
      %s308 = sadd.s32 %s23, 1
      %s309 = smul.u32 %s308, 2
      %s310 = smul.addr %s309, 4
      %s311 = scalar_lea.vmem %s281, %s310
      %v312 = vld [vmem:[%s311] sm:$0xf]
      %v313 = vld [vmem:[%s311 + $0x4] sm:$0xf]
      %s314 = sadd.s32 %s23, 2
      %s315 = smul.u32 %s314, 2
      %s316 = smul.addr %s315, 4
      %s317 = scalar_lea.vmem %s281, %s316
      %v318 = vld [vmem:[%s317] sm:$0xf]
      %v319 = vld [vmem:[%s317 + $0x4] sm:$0xf]
      %v322 = vunpack.c.l.b16 %v306
      %v323 = vunpack.c.l.b16 %v307
      %v324 = vpack.c.b16 %v323, %v322
      %v328 = vunpack.c.l.b16 %v312
      %v329 = vunpack.c.l.b16 %v313
      %v330 = vpack.c.b16 %v329, %v328
      %v334 = vunpack.c.l.b16 %v318
      %v335 = vunpack.c.l.b16 %v319
      %v336 = vpack.c.b16 %v335, %v334
      %v338 = vunpack.c.l.bf16 %v324
      %v339 = vunpack.c.l.bf16 %v330
      %v340 = vunpack.c.l.bf16 %v336
      %v341 = vunpack.c.h.bf16 %v324
      %v342 = vunpack.c.h.bf16 %v330
      %v343 = vunpack.c.h.bf16 %v336
      %s344 = scalar_lea.vmem %s1, %s23
      %v345 = vld [vmem:[%s344] sm:$0x1]
      %s346 = scalar_lea.vmem %s1, %s308
      %v347 = vld [vmem:[%s346] sm:$0x1]
      %s348 = scalar_lea.vmem %s1, %s314
      %v349 = vld [vmem:[%s348] sm:$0x1]
      %vm350 = vcmp.gt.f32.partialorder %v345, 0.0
      %vm351 = vcmp.gt.f32.partialorder %v347, 0.0
      %vm352 = vcmp.gt.f32.partialorder %v349, 0.0
      %v353 = vld [vmem:[%s2] sm:$0xff]
      %v354 = vld [vmem:[%s2 + $0x8] sm:$0xff]
      %356 = vset.pattern.permute.xlu0 0
      %357 = vperm.xlu0 %356, %v353
      %v358 = vpop.permute.xlu0 %357
      %361 = vset.pattern.permute.xlu0 0
      %362 = vperm.xlu0 %361, %v354
      %v363 = vpop.permute.xlu0 %362
      %v365 = vmul.f32 %v338, %v358
      %v366 = vmul.f32 %v339, %v358
      %v367 = vmul.f32 %v340, %v358
      %v368 = vmul.f32 %v341, %v363
      %v369 = vmul.f32 %v342, %v363
      %v370 = vmul.f32 %v343, %v363
      %v371 = vld [vmem:[%s3] sm:$0xff]
      %v372 = vld [vmem:[%s3 + $0x8] sm:$0xff]
      %374 = vset.pattern.permute.xlu0 0
      %375 = vperm.xlu0 %374, %v371
      %v376 = vpop.permute.xlu0 %375
      %379 = vset.pattern.permute.xlu0 0
      %380 = vperm.xlu0 %379, %v372
      %v381 = vpop.permute.xlu0 %380
      %v383 = vadd.f32 %v365, %v376
      %v384 = vadd.f32 %v366, %v376
      %v385 = vadd.f32 %v367, %v376
      %v386 = vadd.f32 %v368, %v381
      %v387 = vadd.f32 %v369, %v381
      %v388 = vadd.f32 %v370, %v381
      %v389 = vmax.f32 %v383, 0.0
      %v390 = vmax.f32 %v384, 0.0
      %v391 = vmax.f32 %v385, 0.0
      %v392 = vmax.f32 %v386, 0.0
      %v393 = vmax.f32 %v387, 0.0
      %v394 = vmax.f32 %v388, 0.0
      %v395 = vsel %vm350, 1, 0
      %v396 = vsel %vm351, 1, 0
      %v397 = vsel %vm352, 1, 0
      %v398 = vlaneseq
      %v399 = vshrl.u32 %v398, 7
      %v400 = vsub.s32 0, %v399
      %v401 = vrot.slane %v395, %v400
      %v402 = vlaneseq
      %v403 = vshrl.u32 %v402, 7
      %v404 = vsub.s32 0, %v403
      %v405 = vrot.slane %v396, %v404
      %v406 = vlaneseq
      %v407 = vshrl.u32 %v406, 7
      %v408 = vsub.s32 0, %v407
      %v409 = vrot.slane %v397, %v408
      %vm410 = vcmp.eq.s32.totalorder %v401, 1
      %vm411 = vcmp.eq.s32.totalorder %v405, 1
      %vm412 = vcmp.eq.s32.totalorder %v409, 1
      %v413 = vsel %vm410, %v389, 0.0
      %v414 = vsel %vm411, %v390, 0.0
      %v415 = vsel %vm412, %v391, 0.0
      %v416 = vsel %vm410, %v392, 0.0
      %v417 = vsel %vm411, %v393, 0.0
      %v418 = vsel %vm412, %v394, 0.0
      %v419 = vpack.c.bf16 %v416, %v413
      %v420 = vpack.c.bf16 %v417, %v414
      %v421 = vpack.c.bf16 %v418, %v415
      %424 = vrot.lane.b32.xlu0 %v419, 127
      %v425 = vpop.permute.xlu0 %424
      %426 = vrot.lane.b32.xlu0 %v420, 127
      %v427 = vpop.permute.xlu0 %426
      %vm428 = vcmask 1039360
      %v429 = vsel %vm428, %v425, %v427
      %430 = vrot.lane.b32.xlu0 %v419, 126
      %v431 = vpop.permute.xlu0 %430
      %432 = vrot.lane.b32.xlu0 %v420, 126
      %v433 = vpop.permute.xlu0 %432
      %vm434 = vcmask 1031168
      %v435 = vsel %vm434, %v431, %v433
      %436 = vrot.lane.b32.xlu0 %v419, 110
      %v437 = vpop.permute.xlu0 %436
      %438 = vrot.lane.b32.xlu0 %v420, 110
      %v439 = vpop.permute.xlu0 %438
      %vm440 = vcmask 900096
      %v441 = vsel %vm440, %v437, %v439
      %442 = vrot.lane.b32.xlu0 %v420, 109
      %v443 = vpop.permute.xlu0 %442
      %445 = vrot.lane.b32.xlu0 %v420, 108
      %v446 = vpop.permute.xlu0 %445
      %447 = vrot.lane.b32.xlu0 %v421, 108
      %v448 = vpop.permute.xlu0 %447
      %vm449 = vcmask 883712
      %v450 = vsel %vm449, %v446, %v448
      %451 = vrot.lane.b32.xlu0 %v420, 92
      %v452 = vpop.permute.xlu0 %451
      %453 = vrot.lane.b32.xlu0 %v421, 92
      %v454 = vpop.permute.xlu0 %453
      %vm455 = vcmask 752640
      %v456 = vsel %vm455, %v452, %v454
      %457 = vrot.lane.b32.xlu0 %v420, 91
      %v458 = vpop.permute.xlu0 %457
      %459 = vrot.lane.b32.xlu0 %v421, 91
      %v460 = vpop.permute.xlu0 %459
      %vm461 = vcmask 744448
      %v462 = vsel %vm461, %v458, %v460
      %463 = vrot.lane.b32.xlu0 %v420, 90
      %v464 = vpop.permute.xlu0 %463
      %465 = vrot.lane.b32.xlu0 %v421, 90
      %v466 = vpop.permute.xlu0 %465
      %vm467 = vcmask 736256
      %v468 = vsel %vm467, %v464, %v466
      %v469 = vld [vmem:[%s4] sm:$0xff]
      %v470 = vld [vmem:[%s4 + $0x8] sm:$0xff]
      %v473 = vunpack.c.l.b16 %v469
      %v474 = vunpack.c.h.b16 %v469
      %v475 = vunpack.c.l.b16 %v470
      %v476 = vunpack.c.h.b16 %v470
      %v477 = vpack.c.b16 %v475, %v473
      %v478 = vpack.c.b16 %v476, %v474
      %480 = vrot.lane.b32.xlu0 %v419, 19
      %v481 = vpop.permute.xlu0 %480
      %482 = vrot.lane.b32.xlu0 %v420, 19
      %v483 = vpop.permute.xlu0 %482
      %484 = vrot.lane.b32.xlu0 %v429, 19
      %v485 = vpop.permute.xlu0 %484
      %486 = vrot.lane.b32.xlu0 %v427, 19
      %v487 = vpop.permute.xlu0 %486
      %488 = vrot.lane.b32.xlu0 %v435, 19
      %v489 = vpop.permute.xlu0 %488
      %490 = vrot.lane.b32.xlu0 %v433, 19
      %v491 = vpop.permute.xlu0 %490
      %492 = vrot.lane.b32.xlu0 %v441, 19
      %v493 = vpop.permute.xlu0 %492
      %494 = vrot.lane.b32.xlu0 %v439, 19
      %v495 = vpop.permute.xlu0 %494
      %496 = vrot.lane.b32.xlu0 %v443, 19
      %v497 = vpop.permute.xlu0 %496
      %498 = vrot.lane.b32.xlu0 %v446, 19
      %v499 = vpop.permute.xlu0 %498
      %500 = vrot.lane.b32.xlu0 %v450, 19
      %v501 = vpop.permute.xlu0 %500
      %502 = vrot.lane.b32.xlu0 %v452, 19
      %v503 = vpop.permute.xlu0 %502
      %504 = vrot.lane.b32.xlu0 %v456, 19
      %v505 = vpop.permute.xlu0 %504
      %506 = vrot.lane.b32.xlu0 %v458, 19
      %v507 = vpop.permute.xlu0 %506
      %508 = vrot.lane.b32.xlu0 %v462, 19
      %v509 = vpop.permute.xlu0 %508
      %510 = vrot.lane.b32.xlu0 %v464, 19
      %v511 = vpop.permute.xlu0 %510
      %512 = vrot.lane.b32.xlu0 %v468, 19
      %v513 = vpop.permute.xlu0 %512
      %vm514 = vcmask 154624
      %v515 = vsel %vm514, %v481, %v483
      %v516 = vsel %vm514, %v485, %v487
      %v517 = vsel %vm514, %v489, %v491
      %v518 = vsel %vm514, %v493, %v495
      %v519 = vsel %vm514, %v499, %v501
      %v520 = vsel %vm514, %v503, %v505
      %v521 = vsel %vm514, %v507, %v509
      %v522 = vsel %vm514, %v511, %v513
      %vm532 = vcmask 130048
      %v534 = vsel %vm532, %v478, 0
      %536 = vmatprep.subr.bf16.mxu0 0
      %537 = vmatpush1.bf16.msra.mxu0 %v521
      %538 = vmatprep.subr.bf16.mxu0 0
      %539 = vmatpush1.bf16.msra.mxu0 %v520
      %540 = vmatprep.subr.bf16.mxu0 0
      %541 = vmatpush1.bf16.msra.mxu0 %v519
      %542 = vmatprep.subr.bf16.mxu0 0
      %543 = vmatpush1.bf16.msra.mxu0 %v497
      %544 = vmatprep.subr.bf16.mxu0 0
      %545 = vmatpush1.bf16.msra.mxu0 %v518
      %546 = vmatprep.subr.bf16.mxu0 0
      %547 = vmatpush1.bf16.msra.mxu0 %v517
      %548 = vmatprep.subr.bf16.mxu0 0
      %549 = vmatpush1.bf16.msra.mxu0 %v516
      %550 = vmatprep.subr.bf16.mxu0 0
      %551 = vmatpush1.bf16.msra.mxu0 %v515
      %552 = vmatprep.subr.bf16.mxu0 0
      %553 = vmatpush2.bf16.msra.mxu0 0
      %554 = vmatprep.subr.bf16.mxu0 0
      %555 = vmatpush2.bf16.msra.mxu0 0
      %556 = vmatprep.subr.bf16.mxu0 0
      %557 = vmatpush2.bf16.msra.mxu0 0
      %558 = vmatprep.subr.bf16.mxu0 0
      %559 = vmatpush2.bf16.msra.mxu0 0
      %560 = vmatprep.subr.bf16.mxu0 0
      %561 = vmatpush2.bf16.msra.mxu0 0
      %562 = vmatprep.subr.bf16.mxu0 0
      %563 = vmatpush2.bf16.msra.mxu0 0
      %564 = vmatprep.subr.bf16.mxu0 0
      %565 = vmatpush2.bf16.msra.mxu0 0
      %566 = vmatprep.subr.bf16.mxu0 0
      %567 = vmatpush2.bf16.msra.mxu0 %v522
      %568 = vmatprep.mubr.bf16.mxu0 %v534
      %569 = vmatmul.mubr.bf16.gmra.mxu0 %v477
      %v570 = vpop.f32.mrf.mxu0
      %v571 = vadd.f32 0.0, %v570
      %v572 = vpop.f32.mrf.mxu0
      %v573 = vpop.f32.mrf.mxu0
      %v574 = vadd.f32 0.0, %v573
      %v575 = vpop.f32.mrf.mxu0
      %576 = vdwg.mxu0
      %v577 = vpack.c.bf16 %v574, %v571
      %v579 = vunpack.c.l.b16 %v577
      %v580 = vunpack.c.h.b16 %v577
      %v581 = vpack.c.b16 %v579, %v579
      %v582 = vpack.c.b16 %v580, %v580
      %585 = vst [vmem:[%s291] sm:$0xf] %v581
      %586 = vst [vmem:[%s291 + $0x4] sm:$0xf] %v582
      %v587 = vld [vmem:[%s346] sm:$0x1]
      %vm588 = vcmp.gt.f32.partialorder %v587, 0.0
      %v589 = vsel %vm588, 1, 0
      %v590 = vlaneseq
      %v591 = vshrl.u32 %v590, 7
      %v592 = vsub.s32 0, %v591
      %v593 = vrot.slane %v589, %v592
      %vm594 = vcmp.eq.s32.totalorder %v593, 1
      %v595 = vsel %vm594, %v571, 0.0
      %v596 = vsel %vm594, %v574, 0.0
      %597 = vadd.xlane.f32.xlu0 %v595
      %v598 = vpop.xlane.xlu0 %597
      %599 = vadd.xlane.f32.xlu0 %v596
      %v600 = vpop.xlane.xlu0 %599
      %vm601 = vcmask 7168
      %602 = vst.msk [vmem:[%s301] sm:$0xff] %vm601, %v598
      %603 = vst.msk [vmem:[%s301 + $0x8] sm:$0xff] %vm601, %v600
      %v604 = vmul.f32 %v595, %v595
      %v605 = vmul.f32 %v596, %v596
      %606 = vadd.xlane.f32.xlu0 %v604
      %v607 = vpop.xlane.xlu0 %606
      %608 = vadd.xlane.f32.xlu0 %v605
      %v609 = vpop.xlane.xlu0 %608
      %vm610 = vcmask 15368
      %611 = vst.msk [vmem:[%s301] sm:$0xff] %vm610, %v607
      %612 = vst.msk [vmem:[%s301 + $0x8] sm:$0xff] %vm610, %v609
      %s613 = sadd.s32 %s23, 1
      %p614 = scmp.lt.s32.totalorder %s22, 1
      %s615 = scalar_select %p614, %s22, 1
      %p616 = scmp.lt.s32.totalorder %s613, 4
      %s617 = scalar_select %p616, %s613, 4
      %s618 = smul.addr %s617, 2
      %s619 = smul.addr %s615, 10
      %s620 = sadd.s32 %s618, %s619
      %s621 = smul.addr %s620, 4
      %s622 = scalar_lea.vmem %s5, %s621
      %p623 = scmp.lt.s32.totalorder %s22, 1
      %s624 = scalar_select %p623, %s22, 1
      %p625 = scmp.lt.s32.totalorder %s23, 2
      %s626 = scalar_select %p625, %s23, 2
      %s627 = smul.addr %s626, 2
      %s628 = smul.addr %s624, 6
      %s629 = sadd.s32 %s627, %s628
      %s630 = smul.addr %s629, 8
      %s631 = scalar_lea.vmem %s6, %s630
      // Predicated region
      $region41: #{double_conv_forward.4} parent=39 // pred_check
        %p632 = pneg %p162
      $region42: #{double_conv_forward.4} parent=39 // pred_check_branch
        %634 = sbr.rel (%p632) target = $region44
      $region43: #{double_conv_forward.4} parent=39 // pred_region
        %s635 = sadd.s32 %s23, 1
      $region44: #{double_conv_forward.4} parent=39 // pred_fallthru
        _
      // Predicated region
      $region45: #{double_conv_forward.4} parent=39 // pred_check
        %p636 = pneg %p190
      $region46: #{double_conv_forward.4} parent=39 // pred_check_branch
        %638 = sbr.rel (%p636) target = $region48
      $region47: #{double_conv_forward.4} parent=39 // pred_region
        _
      $region48: #{double_conv_forward.4} parent=39 // pred_fallthru
        _
    $region40: #{double_conv_forward.4} parent=5 // pred_fallthru
      _
    %p639 = scmp.le.s32.totalorder 2, %s13
    // Predicated region
    $region49: #{double_conv_forward.4} parent=5 // pred_check
      %p640 = pneg %p639
    $region50: #{double_conv_forward.4} parent=5 // pred_check_branch
      %642 = sbr.rel (%p640) target = $region52
    $region51: #{double_conv_forward.4} parent=5 // pred_region
      %s643 = ssub.s32 %s13, 2
      // Predicated region
      $region53: #{double_conv_forward.4} parent=51 // pred_check
        %p644 = pneg %p168
      $region54: #{double_conv_forward.4} parent=51 // pred_check_branch
        %646 = sbr.rel (%p644) target = $region56
      $region55: #{double_conv_forward.4} parent=51 // pred_region
        %s647 = sadd.s32 %s25, 1
        %p648 = scmp.lt.s32.totalorder %s24, 1
        %s649 = scalar_select %p648, %s24, 1
        %p650 = scmp.lt.s32.totalorder %s647, 4
        %s651 = scalar_select %p650, %s647, 4
        %s652 = smul.addr %s651, 2
        %s653 = smul.addr %s649, 10
        %s654 = sadd.s32 %s652, %s653
        %s655 = smul.addr %s654, 4
        %s656 = scalar_lea.vmem %s5, %s655
      $region56: #{double_conv_forward.4} parent=51 // pred_fallthru
        _
      // Predicated region
      $region57: #{double_conv_forward.4} parent=51 // pred_check
        %p657 = pneg %p196
      $region58: #{double_conv_forward.4} parent=51 // pred_check_branch
        %659 = sbr.rel (%p657) target = $region60
      $region59: #{double_conv_forward.4} parent=51 // pred_region
        %p660 = scmp.lt.s32.totalorder %s24, 1
        %s661 = scalar_select %p660, %s24, 1
        %p662 = scmp.lt.s32.totalorder %s25, 2
        %s663 = scalar_select %p662, %s25, 2
        %s664 = smul.addr %s663, 2
        %s665 = smul.addr %s661, 6
        %s666 = sadd.s32 %s664, %s665
        %s667 = smul.addr %s666, 8
        %s668 = scalar_lea.vmem %s6, %s667
      $region60: #{double_conv_forward.4} parent=51 // pred_fallthru
        _
    $region52: #{double_conv_forward.4} parent=5 // pred_fallthru
      _
  $region6: #{double_conv_forward.4} parent=0 // loop_footer
    %s17 = sadd.s32 1, %s13
  $region7: #{double_conv_forward.4} parent=0 // loop_footer_branch
    %12 = sbr.rel target = $region3
  $region8: #{double_conv_forward.4} parent=0 // loop_exit
    _

// kernel: double_conv_forward.5
$region0: #{double_conv_forward.5}
  #allocation0 [shape = 'u32[]', space=smem, size = 0x4, offset = 0x4, fixed_abs, tag = 'smem constant byte address 0x4 - core index']
  #allocation1 [shape = 'u32[144,128]{1,0:T(1,128)}', space=vmem, size = 0x12000, scoped, tag = 'internal scratch']
  %s0 = inlined_call_operand.vmem [shape: bf16[2,5,16,128], index: 0, kind: input, shape index: {}]
  %s1 = inlined_call_operand.vmem [shape: f32[5,1,128], index: 1, kind: input, shape index: {}]
  %s2 = inlined_call_operand.vmem [shape: f32[16,1], index: 2, kind: input, shape index: {}]
  %s3 = inlined_call_operand.vmem [shape: f32[16,1], index: 3, kind: input, shape index: {}]
  %s4 = inlined_call_operand.vmem [shape: f32[2], index: 4, kind: input, shape index: {}]
  %s5 = inlined_call_operand.vmem [shape: f32[19], index: 5, kind: input, shape index: {}]
  %s6 = inlined_call_operand.vmem [shape: bf16[2,5,4,128], index: 6, kind: input, shape index: {}]
  %s7 = inlined_call_operand.vmem [shape: bf16[16,4], index: 7, kind: input, shape index: {}]
  %s8 = inlined_call_operand.vmem [shape: f32[16,1], index: 8, kind: input, shape index: {}]
  %s9 = inlined_call_operand.vmem [shape: f32[2,3,16,128], index: 9, kind: output, shape index: {}]
  %s10 = sld [smem:[#allocation0]]
  $region77: #{double_conv_forward.5} parent=0
    _
  %s12 = ssub.s32 1, %s10
  %s13 = scalar_select 0, %s12, %s10
  $region1: #{double_conv_forward.5} parent=0
    #allocation2 [shape = 'u8[512]{0}', space=smem, size = 0x200, scoped, tag = 'input window, operand 4, single buffered']
    #allocation3 [shape = 's32[2]{0}', space=sflag, size = 0x8, scoped, tag = 'scoped memory for double_conv_forward.5']
    #allocation4 [shape = 'u8[512]{0}', space=smem, size = 0x200, scoped, tag = 'input window, operand 5, single buffered']
    #allocation5 [shape = 's32[1]{0}', space=sflag, size = 0x4, scoped, tag = 'scoped memory for double_conv_forward.5']
    %14 = vsyncpa [#allocation3], 0
    %15 = vsyncpa [#allocation5], 0
    loop: start=0, step=1, limit=8
    $region2: #{double_conv_forward.5} parent=1 // loop_pre_header
      _
    $region3: #{double_conv_forward.5} parent=1 // loop_header
      %s17 = sphi 0, %s21
      %p18 = scmp.ge.s32.totalorder %s17, 8
      %s24 = sphi 0, %s36
      %s25 = sphi 0, %s32
      %s26 = sphi 0, %s24
      %s27 = sphi 0, %s25
      %s28 = sphi 0, %s26
      %s29 = sphi 0, %s27
      %s39 = sphi 0, %s41
      %s42 = sphi 0, %s39
      %s43 = sphi 0, %s42
      %s59 = sphi 0, %s43
      %s63 = sphi 0, %s63
      %s65 = sphi 0, %s63
      %s66 = sphi 0, %s65
      %s80 = sphi 0, %s66
      %s84 = sphi 0, %s84
      %s86 = sphi 0, %s84
      %s87 = sphi 0, %s86
      %s101 = sphi 0, %s87
      %s105 = sphi 0, %s105
      %s107 = sphi 0, %s105
      %s108 = sphi 0, %s107
      %s122 = sphi 0, %s108
      %s126 = sphi 0, %s126
      %s128 = sphi 0, %s126
      %s129 = sphi 0, %s128
      %s143 = sphi 0, %s129
      %s147 = sphi 0, %s147
      %s149 = sphi 0, %s147
      %s150 = sphi 0, %s149
      %s164 = sphi 0, %s150
      %s174 = sphi 0, %s176
      %s177 = sphi 0, %s174
      %s178 = sphi 0, %s177
      %s194 = sphi 0, %s178
      %s198 = sphi 0, %s198
      %s200 = sphi 0, %s198
      %s201 = sphi 0, %s200
      %s215 = sphi 0, %s201
      %s219 = sphi 0, %s219
      %s221 = sphi 0, %s219
      %s222 = sphi 0, %s221
      %s236 = sphi 0, %s222
      %s244 = sphi 0, %s246
      %s247 = sphi 0, %s244
      %s248 = sphi 0, %s247
      %s264 = sphi 0, %s248
    $region4: #{double_conv_forward.5} parent=1 // loop_header_branch
      %20 = sbr.rel (%p18) target = $region8
    $region5: #{double_conv_forward.5} parent=1 // loop_body
      %s22 = ssub.s32 %s17, 1
      %s23 = ssub.s32 %s17, 2
      %s30 = sadd.s32 1, %s25
      %p31 = scmp.ge.s32.totalorder %s30, 3
      %s32 = scalar_select %p31, 0, %s30
      %s33 = sadd.s32 1, %s24
      %s34 = scalar_select %p31, %s33, %s24
      %p35 = scmp.ge.s32.totalorder %s34, 2
      %s36 = scalar_select %p35, 0, %s34
      %s37 = ssub.s32 %s24, %s36
      %p38 = scmp.eq.s32.totalorder %s37, 0
      %s40 = sadd.s32 %s39, 1
      %s41 = scalar_select %p38, %s39, %s40
      %p44 = pneg %p38
      %p45 = scmp.eq.s32.totalorder %s17, 5
      %p46 = por %p44, %p45
      %p47 = scmp.ne.s32.totalorder %s39, %s42
      %p48 = scmp.eq.s32.totalorder %s17, 0
      %p49 = por %p47, %p48
      %p50 = scmp.ne.s32.totalorder %s39, %s42
      %p51 = scmp.eq.s32.totalorder %s22, 5
      %p52 = por %p50, %p51
      %p53 = scmp.ne.s32.totalorder %s42, %s43
      %p54 = scmp.eq.s32.totalorder %s22, 0
      %p55 = por %p53, %p54
      %p56 = scmp.ne.s32.totalorder %s42, %s43
      %p57 = scmp.eq.s32.totalorder %s23, 5
      %p58 = por %p56, %p57
      %p60 = scmp.ne.s32.totalorder %s43, %s59
      %p61 = scmp.eq.s32.totalorder %s23, 0
      %p62 = por %p60, %p61
      %s64 = sadd.s32 %s63, 1
      %p67 = scmp.eq.s32.totalorder %s17, 5
      %p68 = scmp.ne.s32.totalorder %s63, %s65
      %p69 = scmp.eq.s32.totalorder %s17, 0
      %p70 = por %p68, %p69
      %p71 = scmp.ne.s32.totalorder %s63, %s65
      %p72 = scmp.eq.s32.totalorder %s22, 5
      %p73 = por %p71, %p72
      %p74 = scmp.ne.s32.totalorder %s65, %s66
      %p75 = scmp.eq.s32.totalorder %s22, 0
      %p76 = por %p74, %p75
      %p77 = scmp.ne.s32.totalorder %s65, %s66
      %p78 = scmp.eq.s32.totalorder %s23, 5
      %p79 = por %p77, %p78
      %p81 = scmp.ne.s32.totalorder %s66, %s80
      %p82 = scmp.eq.s32.totalorder %s23, 0
      %p83 = por %p81, %p82
      %s85 = sadd.s32 %s84, 1
      %p88 = scmp.eq.s32.totalorder %s17, 5
      %p89 = scmp.ne.s32.totalorder %s84, %s86
      %p90 = scmp.eq.s32.totalorder %s17, 0
      %p91 = por %p89, %p90
      %p92 = scmp.ne.s32.totalorder %s84, %s86
      %p93 = scmp.eq.s32.totalorder %s22, 5
      %p94 = por %p92, %p93
      %p95 = scmp.ne.s32.totalorder %s86, %s87
      %p96 = scmp.eq.s32.totalorder %s22, 0
      %p97 = por %p95, %p96
      %p98 = scmp.ne.s32.totalorder %s86, %s87
      %p99 = scmp.eq.s32.totalorder %s23, 5
      %p100 = por %p98, %p99
      %p102 = scmp.ne.s32.totalorder %s87, %s101
      %p103 = scmp.eq.s32.totalorder %s23, 0
      %p104 = por %p102, %p103
      %s106 = sadd.s32 %s105, 1
      %p109 = scmp.eq.s32.totalorder %s17, 5
      %p110 = scmp.ne.s32.totalorder %s105, %s107
      %p111 = scmp.eq.s32.totalorder %s17, 0
      %p112 = por %p110, %p111
      %p113 = scmp.ne.s32.totalorder %s105, %s107
      %p114 = scmp.eq.s32.totalorder %s22, 5
      %p115 = por %p113, %p114
      %p116 = scmp.ne.s32.totalorder %s107, %s108
      %p117 = scmp.eq.s32.totalorder %s22, 0
      %p118 = por %p116, %p117
      %p119 = scmp.ne.s32.totalorder %s107, %s108
      %p120 = scmp.eq.s32.totalorder %s23, 5
      %p121 = por %p119, %p120
      %p123 = scmp.ne.s32.totalorder %s108, %s122
      %p124 = scmp.eq.s32.totalorder %s23, 0
      %p125 = por %p123, %p124
      %s127 = sadd.s32 %s126, 1
      %p130 = scmp.eq.s32.totalorder %s17, 5
      %p131 = scmp.ne.s32.totalorder %s126, %s128
      %p132 = scmp.eq.s32.totalorder %s17, 0
      %p133 = por %p131, %p132
      %p134 = scmp.ne.s32.totalorder %s126, %s128
      %p135 = scmp.eq.s32.totalorder %s22, 5
      %p136 = por %p134, %p135
      %p137 = scmp.ne.s32.totalorder %s128, %s129
      %p138 = scmp.eq.s32.totalorder %s22, 0
      %p139 = por %p137, %p138
      %p140 = scmp.ne.s32.totalorder %s128, %s129
      %p141 = scmp.eq.s32.totalorder %s23, 5
      %p142 = por %p140, %p141
      %p144 = scmp.ne.s32.totalorder %s129, %s143
      %p145 = scmp.eq.s32.totalorder %s23, 0
      %p146 = por %p144, %p145
      %s148 = sadd.s32 %s147, 1
      %p151 = scmp.eq.s32.totalorder %s17, 5
      %p152 = scmp.ne.s32.totalorder %s147, %s149
      %p153 = scmp.eq.s32.totalorder %s17, 0
      %p154 = por %p152, %p153
      %p155 = scmp.ne.s32.totalorder %s147, %s149
      %p156 = scmp.eq.s32.totalorder %s22, 5
      %p157 = por %p155, %p156
      %p158 = scmp.ne.s32.totalorder %s149, %s150
      %p159 = scmp.eq.s32.totalorder %s22, 0
      %p160 = por %p158, %p159
      %p161 = scmp.ne.s32.totalorder %s149, %s150
      %p162 = scmp.eq.s32.totalorder %s23, 5
      %p163 = por %p161, %p162
      %p165 = scmp.ne.s32.totalorder %s150, %s164
      %p166 = scmp.eq.s32.totalorder %s23, 0
      %p167 = por %p165, %p166
      %s168 = sadd.s32 %s25, 1
      %s169 = sadd.s32 %s32, 1
      %s170 = ssub.s32 %s24, %s36
      %s171 = ssub.s32 %s168, %s169
      %s172 = sor.u32 %s170, %s171
      %p173 = scmp.eq.s32.totalorder %s172, 0
      %s175 = sadd.s32 %s174, 1
      %s176 = scalar_select %p173, %s174, %s175
      %p179 = pneg %p173
      %p180 = scmp.eq.s32.totalorder %s17, 5
      %p181 = por %p179, %p180
      %p182 = scmp.ne.s32.totalorder %s174, %s177
      %p183 = scmp.eq.s32.totalorder %s17, 0
      %p184 = por %p182, %p183
      %p185 = scmp.ne.s32.totalorder %s174, %s177
      %p186 = scmp.eq.s32.totalorder %s22, 5
      %p187 = por %p185, %p186
      %p188 = scmp.ne.s32.totalorder %s177, %s178
      %p189 = scmp.eq.s32.totalorder %s22, 0
      %p190 = por %p188, %p189
      %p191 = scmp.ne.s32.totalorder %s177, %s178
      %p192 = scmp.eq.s32.totalorder %s23, 5
      %p193 = por %p191, %p192
      %p195 = scmp.ne.s32.totalorder %s178, %s194
      %p196 = scmp.eq.s32.totalorder %s23, 0
      %p197 = por %p195, %p196
      %s199 = sadd.s32 %s198, 1
      %p202 = scmp.eq.s32.totalorder %s17, 5
      %p203 = scmp.ne.s32.totalorder %s198, %s200
      %p204 = scmp.eq.s32.totalorder %s17, 0
      %p205 = por %p203, %p204
      %p206 = scmp.ne.s32.totalorder %s198, %s200
      %p207 = scmp.eq.s32.totalorder %s22, 5
      %p208 = por %p206, %p207
      %p209 = scmp.ne.s32.totalorder %s200, %s201
      %p210 = scmp.eq.s32.totalorder %s22, 0
      %p211 = por %p209, %p210
      %p212 = scmp.ne.s32.totalorder %s200, %s201
      %p213 = scmp.eq.s32.totalorder %s23, 5
      %p214 = por %p212, %p213
      %p216 = scmp.ne.s32.totalorder %s201, %s215
      %p217 = scmp.eq.s32.totalorder %s23, 0
      %p218 = por %p216, %p217
      %s220 = sadd.s32 %s219, 1
      %p223 = scmp.eq.s32.totalorder %s17, 5
      %p224 = scmp.ne.s32.totalorder %s219, %s221
      %p225 = scmp.eq.s32.totalorder %s17, 0
      %p226 = por %p224, %p225
      %p227 = scmp.ne.s32.totalorder %s219, %s221
      %p228 = scmp.eq.s32.totalorder %s22, 5
      %p229 = por %p227, %p228
      %p230 = scmp.ne.s32.totalorder %s221, %s222
      %p231 = scmp.eq.s32.totalorder %s22, 0
      %p232 = por %p230, %p231
      %p233 = scmp.ne.s32.totalorder %s221, %s222
      %p234 = scmp.eq.s32.totalorder %s23, 5
      %p235 = por %p233, %p234
      %p237 = scmp.ne.s32.totalorder %s222, %s236
      %p238 = scmp.eq.s32.totalorder %s23, 0
      %p239 = por %p237, %p238
      %s240 = ssub.s32 %s24, %s36
      %s241 = ssub.s32 %s25, %s32
      %s242 = sor.u32 %s240, %s241
      %p243 = scmp.eq.s32.totalorder %s242, 0
      %s245 = sadd.s32 %s244, 1
      %s246 = scalar_select %p243, %s244, %s245
      %p249 = pneg %p243
      %p250 = scmp.eq.s32.totalorder %s17, 5
      %p251 = por %p249, %p250
      %p252 = scmp.ne.s32.totalorder %s244, %s247
      %p253 = scmp.eq.s32.totalorder %s17, 0
      %p254 = por %p252, %p253
      %p255 = scmp.ne.s32.totalorder %s244, %s247
      %p256 = scmp.eq.s32.totalorder %s22, 5
      %p257 = por %p255, %p256
      %p258 = scmp.ne.s32.totalorder %s247, %s248
      %p259 = scmp.eq.s32.totalorder %s22, 0
      %p260 = por %p258, %p259
      %p261 = scmp.ne.s32.totalorder %s247, %s248
      %p262 = scmp.eq.s32.totalorder %s23, 5
      %p263 = por %p261, %p262
      %p265 = scmp.ne.s32.totalorder %s248, %s264
      %p266 = scmp.eq.s32.totalorder %s23, 0
      %p267 = por %p265, %p266
      %p268 = scmp.le.s32.totalorder 1, %s17
      %p269 = scmp.lt.s32.totalorder %s17, 7
      %p270 = pnand %p268, %p269
      %p271 = pneg %p270
      // Predicated region
      $region9: #{double_conv_forward.5} parent=5 // pred_check
        _
      $region10: #{double_conv_forward.5} parent=5 // pred_check_branch
        %273 = sbr.rel (%p270) target = $region12
      $region11: #{double_conv_forward.5} parent=5 // pred_region
        %s274 = ssub.s32 %s17, 1
        // Predicated region
        $region13: #{double_conv_forward.5} parent=11 // pred_check
          %p275 = pneg %p76
        $region14: #{double_conv_forward.5} parent=11 // pred_check_branch
          %277 = sbr.rel (%p275) target = $region16
        $region15: #{double_conv_forward.5} parent=11 // pred_region
          _
        $region16: #{double_conv_forward.5} parent=11 // pred_fallthru
          _
        // Predicated region
        $region17: #{double_conv_forward.5} parent=11 // pred_check
          %p278 = pneg %p97
        $region18: #{double_conv_forward.5} parent=11 // pred_check_branch
          %280 = sbr.rel (%p278) target = $region20
        $region19: #{double_conv_forward.5} parent=11 // pred_region
          _
        $region20: #{double_conv_forward.5} parent=11 // pred_fallthru
          _
        // Predicated region
        $region21: #{double_conv_forward.5} parent=11 // pred_check
          %p281 = pneg %p118
        $region22: #{double_conv_forward.5} parent=11 // pred_check_branch
          %283 = sbr.rel (%p281) target = $region24
        $region23: #{double_conv_forward.5} parent=11 // pred_region
          _
        $region24: #{double_conv_forward.5} parent=11 // pred_fallthru
          _
        // Predicated region
        $region25: #{double_conv_forward.5} parent=11 // pred_check
          %p284 = pneg %p139
        $region26: #{double_conv_forward.5} parent=11 // pred_check_branch
          %286 = sbr.rel (%p284) target = $region28
        $region27: #{double_conv_forward.5} parent=11 // pred_region
          %s288 = ssub.s32 16, 16
          %289 = vsyncadd [#allocation3], %s288
          %s291 = sshll.u32 %s4, 4
          %s292 = int_to_ptr.vmem [resolvable:$true] %s291
          %294 = dma.vmem_to_smem %s292, 16, [#allocation2], [#allocation3]
        $region28: #{double_conv_forward.5} parent=11 // pred_fallthru
          _
        // Predicated region
        $region29: #{double_conv_forward.5} parent=11 // pred_check
          %p295 = pneg %p160
        $region30: #{double_conv_forward.5} parent=11 // pred_check_branch
          %297 = sbr.rel (%p295) target = $region32
        $region31: #{double_conv_forward.5} parent=11 // pred_region
          %s299 = ssub.s32 16, 16
          %300 = vsyncadd [#allocation5], %s299
          %s302 = sshll.u32 %s5, 4
          %s303 = int_to_ptr.vmem [resolvable:$true] %s302
          %305 = dma.vmem_to_smem %s303, 16, [#allocation4], [#allocation5]
        $region32: #{double_conv_forward.5} parent=11 // pred_fallthru
          _
        // Predicated region
        $region33: #{double_conv_forward.5} parent=11 // pred_check
          %p306 = pneg %p211
        $region34: #{double_conv_forward.5} parent=11 // pred_check_branch
          %308 = sbr.rel (%p306) target = $region36
        $region35: #{double_conv_forward.5} parent=11 // pred_region
          _
        $region36: #{double_conv_forward.5} parent=11 // pred_fallthru
          _
        // Predicated region
        $region37: #{double_conv_forward.5} parent=11 // pred_check
          %p309 = pneg %p232
        $region38: #{double_conv_forward.5} parent=11 // pred_check_branch
          %311 = sbr.rel (%p309) target = $region40
        $region39: #{double_conv_forward.5} parent=11 // pred_region
          _
        $region40: #{double_conv_forward.5} parent=11 // pred_fallthru
          _
      $region12: #{double_conv_forward.5} parent=5 // pred_fallthru
        _
      %p312 = scmp.lt.s32.totalorder %s17, 6
      // Predicated region
      $region41: #{double_conv_forward.5} parent=5 // pred_check
        %p313 = pneg %p312
      $region42: #{double_conv_forward.5} parent=5 // pred_check_branch
        %315 = sbr.rel (%p313) target = $region44
      $region43: #{double_conv_forward.5} parent=5 // pred_region
        // Predicated region
        $region45: #{double_conv_forward.5} parent=43 // pred_check
          %p316 = pneg %p49
        $region46: #{double_conv_forward.5} parent=43 // pred_check_branch
          %318 = sbr.rel (%p316) target = $region48
        $region47: #{double_conv_forward.5} parent=43 // pred_region
          %p319 = scmp.lt.s32.totalorder %s24, 1
          %s320 = scalar_select %p319, %s24, 1
          %s321 = smul.addr %s320, 10
          %s322 = smul.addr %s321, 4
          %s323 = scalar_lea.vmem %s0, %s322
        $region48: #{double_conv_forward.5} parent=43 // pred_fallthru
          _
        // Predicated region
        $region49: #{double_conv_forward.5} parent=43 // pred_check
          %p324 = pneg %p184
        $region50: #{double_conv_forward.5} parent=43 // pred_check_branch
          %326 = sbr.rel (%p324) target = $region52
        $region51: #{double_conv_forward.5} parent=43 // pred_region
          %s327 = sadd.s32 %s25, 1
          %p328 = scmp.lt.s32.totalorder %s24, 1
          %s329 = scalar_select %p328, %s24, 1
          %p330 = scmp.lt.s32.totalorder %s327, 4
          %s331 = scalar_select %p330, %s327, 4
          %s332 = smul.addr %s329, 5
          %s333 = sadd.s32 %s331, %s332
          %s334 = smul.addr %s333, 2
          %s335 = scalar_lea.vmem %s6, %s334
          %s336 = sadd.s32 %s25, 1
        $region52: #{double_conv_forward.5} parent=43 // pred_fallthru
          _
      $region44: #{double_conv_forward.5} parent=5 // pred_fallthru
        _
      %p337 = scmp.le.s32.totalorder 1, %s17
      %p338 = scmp.lt.s32.totalorder %s17, 7
      %p339 = pnand %p337, %p338
      %p340 = pneg %p339
      // Predicated region
      $region53: #{double_conv_forward.5} parent=5 // pred_check
        _
      $region54: #{double_conv_forward.5} parent=5 // pred_check_branch
        %342 = sbr.rel (%p339) target = $region56
      $region55: #{double_conv_forward.5} parent=5 // pred_region
        %s343 = ssub.s32 %s17, 1
        // Predicated region
        $region57: #{double_conv_forward.5} parent=55 // pred_check
          %p344 = pneg %p139
        $region58: #{double_conv_forward.5} parent=55 // pred_check_branch
          %346 = sbr.rel (%p344) target = $region60
        $region59: #{double_conv_forward.5} parent=55 // pred_region
          %347 = dma.done [#allocation3], 16
        $region60: #{double_conv_forward.5} parent=55 // pred_fallthru
          _
        // Predicated region
        $region61: #{double_conv_forward.5} parent=55 // pred_check
          %p348 = pneg %p160
        $region62: #{double_conv_forward.5} parent=55 // pred_check_branch
          %350 = sbr.rel (%p348) target = $region64
        $region63: #{double_conv_forward.5} parent=55 // pred_region
          %351 = dma.done [#allocation5], 16
        $region64: #{double_conv_forward.5} parent=55 // pred_fallthru
          _
        %352 = sfence
        %p353 = scmp.lt.s32.totalorder %s26, 1
        %s354 = scalar_select %p353, %s26, 1
        %s355 = smul.addr %s354, 10
        %s356 = smul.addr %s355, 4
        %s357 = scalar_lea.vmem %s0, %s356
        %p358 = pneg %p55
        %p359 = pneg %p52
        %p360 = pneg %p76
        %p361 = pneg %p73
        %p362 = pneg %p97
        %p363 = pneg %p94
        %p364 = pneg %p118
        %p365 = pneg %p115
        %p366 = pneg %p139
        %p367 = pneg %p136
        %p368 = pneg %p160
        %p369 = pneg %p157
        %s370 = sadd.s32 %s27, 1
        %p371 = scmp.lt.s32.totalorder %s26, 1
        %s372 = scalar_select %p371, %s26, 1
        %p373 = scmp.lt.s32.totalorder %s370, 4
        %s374 = scalar_select %p373, %s370, 4
        %s375 = smul.addr %s372, 5
        %s376 = sadd.s32 %s374, %s375
        %s377 = smul.addr %s376, 2
        %s378 = scalar_lea.vmem %s6, %s377
        %p379 = pneg %p190
        %p380 = pneg %p187
        %p381 = pneg %p211
        %p382 = pneg %p208
        %p383 = pneg %p232
        %p384 = pneg %p229
        %p385 = pneg %p260
        %p386 = pneg %p257
        %p387 = scmp.lt.s32.totalorder %s26, 1
        %s388 = scalar_select %p387, %s26, 1
        %p389 = scmp.lt.s32.totalorder %s27, 2
        %s390 = scalar_select %p389, %s27, 2
        %s391 = smul.addr %s390, 2
        %s392 = smul.addr %s388, 6
        %s393 = sadd.s32 %s391, %s392
        %s394 = smul.addr %s393, 8
        %s395 = scalar_lea.vmem %s9, %s394
        %p396 = scmp.lt.s32.totalorder %s26, 1
        %s397 = scalar_select %p396, %s26, 1
        %s398 = smul.addr %s397, 10
        %s399 = smul.addr %s398, 4
        %s400 = scalar_lea.vmem %s0, %s399
        %s401 = sadd.s32 %s27, 1
        %p402 = scmp.lt.s32.totalorder %s26, 1
        %s403 = scalar_select %p402, %s26, 1
        %p404 = scmp.lt.s32.totalorder %s401, 4
        %s405 = scalar_select %p404, %s401, 4
        %s406 = smul.addr %s403, 5
        %s407 = sadd.s32 %s405, %s406
        %s408 = smul.addr %s407, 2
        %s409 = scalar_lea.vmem %s6, %s408
        %s410 = sadd.s32 %s27, 1
        %p411 = scmp.lt.s32.totalorder %s26, 1
        %s412 = scalar_select %p411, %s26, 1
        %p413 = scmp.lt.s32.totalorder %s27, 2
        %s414 = scalar_select %p413, %s27, 2
        %s415 = smul.addr %s414, 2
        %s416 = smul.addr %s412, 6
        %s417 = sadd.s32 %s415, %s416
        %s418 = smul.addr %s417, 8
        %s419 = scalar_lea.vmem %s9, %s418
        %s421 = smul.u32 %s27, 2
        %s422 = smul.addr %s421, 4
        %s423 = scalar_lea.vmem %s400, %s422
        %v424 = vld [vmem:[%s423] sm:$0xf]
        %v425 = vld [vmem:[%s423 + $0x4] sm:$0xf]
        %s426 = sadd.s32 %s27, 1
        %s427 = smul.u32 %s426, 2
        %s428 = smul.addr %s427, 4
        %s429 = scalar_lea.vmem %s400, %s428
        %v430 = vld [vmem:[%s429] sm:$0xf]
        %v431 = vld [vmem:[%s429 + $0x4] sm:$0xf]
        %s432 = sadd.s32 %s27, 2
        %s433 = smul.u32 %s432, 2
        %s434 = smul.addr %s433, 4
        %s435 = scalar_lea.vmem %s400, %s434
        %v436 = vld [vmem:[%s435] sm:$0xf]
        %v437 = vld [vmem:[%s435 + $0x4] sm:$0xf]
        %v440 = vunpack.c.l.b16 %v424
        %v441 = vunpack.c.l.b16 %v425
        %v442 = vpack.c.b16 %v441, %v440
        %v446 = vunpack.c.l.b16 %v430
        %v447 = vunpack.c.l.b16 %v431
        %v448 = vpack.c.b16 %v447, %v446
        %v452 = vunpack.c.l.b16 %v436
        %v453 = vunpack.c.l.b16 %v437
        %v454 = vpack.c.b16 %v453, %v452
        %v456 = vunpack.c.l.bf16 %v442
        %v457 = vunpack.c.l.bf16 %v448
        %v458 = vunpack.c.l.bf16 %v454
        %v459 = vunpack.c.h.bf16 %v442
        %v460 = vunpack.c.h.bf16 %v448
        %v461 = vunpack.c.h.bf16 %v454
        %s462 = scalar_lea.vmem %s1, %s27
        %v463 = vld [vmem:[%s462] sm:$0x1]
        %s464 = scalar_lea.vmem %s1, %s426
        %v465 = vld [vmem:[%s464] sm:$0x1]
        %s466 = scalar_lea.vmem %s1, %s432
        %v467 = vld [vmem:[%s466] sm:$0x1]
        %vm468 = vcmp.gt.f32.partialorder %v463, 0.0
        %vm469 = vcmp.gt.f32.partialorder %v465, 0.0
        %vm470 = vcmp.gt.f32.partialorder %v467, 0.0
        %v471 = vld [vmem:[%s2] sm:$0xff]
        %v472 = vld [vmem:[%s2 + $0x8] sm:$0xff]
        %474 = vset.pattern.permute.xlu0 0
        %475 = vperm.xlu0 %474, %v471
        %v476 = vpop.permute.xlu0 %475
        %479 = vset.pattern.permute.xlu0 0
        %480 = vperm.xlu0 %479, %v472
        %v481 = vpop.permute.xlu0 %480
        %v483 = vmul.f32 %v456, %v476
        %v484 = vmul.f32 %v457, %v476
        %v485 = vmul.f32 %v458, %v476
        %v486 = vmul.f32 %v459, %v481
        %v487 = vmul.f32 %v460, %v481
        %v488 = vmul.f32 %v461, %v481
        %v489 = vld [vmem:[%s3] sm:$0xff]
        %v490 = vld [vmem:[%s3 + $0x8] sm:$0xff]
        %492 = vset.pattern.permute.xlu0 0
        %493 = vperm.xlu0 %492, %v489
        %v494 = vpop.permute.xlu0 %493
        %497 = vset.pattern.permute.xlu0 0
        %498 = vperm.xlu0 %497, %v490
        %v499 = vpop.permute.xlu0 %498
        %v501 = vadd.f32 %v483, %v494
        %v502 = vadd.f32 %v484, %v494
        %v503 = vadd.f32 %v485, %v494
        %v504 = vadd.f32 %v486, %v499
        %v505 = vadd.f32 %v487, %v499
        %v506 = vadd.f32 %v488, %v499
        %v507 = vmax.f32 %v501, 0.0
        %v508 = vmax.f32 %v502, 0.0
        %v509 = vmax.f32 %v503, 0.0
        %v510 = vmax.f32 %v504, 0.0
        %v511 = vmax.f32 %v505, 0.0
        %v512 = vmax.f32 %v506, 0.0
        %v513 = vsel %vm468, 1, 0
        %v514 = vsel %vm469, 1, 0
        %v515 = vsel %vm470, 1, 0
        %v516 = vlaneseq
        %v517 = vshrl.u32 %v516, 7
        %v518 = vsub.s32 0, %v517
        %v519 = vrot.slane %v513, %v518
        %v520 = vlaneseq
        %v521 = vshrl.u32 %v520, 7
        %v522 = vsub.s32 0, %v521
        %v523 = vrot.slane %v514, %v522
        %v524 = vlaneseq
        %v525 = vshrl.u32 %v524, 7
        %v526 = vsub.s32 0, %v525
        %v527 = vrot.slane %v515, %v526
        %vm528 = vcmp.eq.s32.totalorder %v519, 1
        %vm529 = vcmp.eq.s32.totalorder %v523, 1
        %vm530 = vcmp.eq.s32.totalorder %v527, 1
        %v531 = vsel %vm528, %v507, 0.0
        %v532 = vsel %vm529, %v508, 0.0
        %v533 = vsel %vm530, %v509, 0.0
        %v534 = vsel %vm528, %v510, 0.0
        %v535 = vsel %vm529, %v511, 0.0
        %v536 = vsel %vm530, %v512, 0.0
        %s537 = sld [smem:[#allocation4 + $0x12]]
        %v538 = vstv %s537
        %v539 = vadd.f32 %v538, 0.0
        %s540 = sld [smem:[#allocation4]]
        %vm541 = vcmask 1048424
        %v542 = vsel %vm541, %v531, 0.0
        %v543 = vsel %vm541, %v534, 0.0
        %v544 = vadd.f32 %v542, %v543
        %v545 = vrot.slane %v544, 4
        %v546 = vadd.f32 %v544, %v545
        %v547 = vrot.slane %v546, 2
        %v548 = vadd.f32 %v546, %v547
        %v549 = vrot.slane %v548, 1
        %v550 = vadd.f32 %v548, %v549
        %vm551 = vcmask 891904
        %v552 = vsel %vm551, %v532, 0.0
        %v553 = vsel %vm551, %v535, 0.0
        %v554 = vadd.f32 %v552, %v553
        %v555 = vrot.slane %v554, 4
        %v556 = vadd.f32 %v554, %v555
        %v557 = vrot.slane %v556, 2
        %v558 = vadd.f32 %v556, %v557
        %v559 = vrot.slane %v558, 1
        %v560 = vadd.f32 %v558, %v559
        %v561 = vmul.f32 %v550, 0.0625
        %v562 = vmul.f32 %v560, 0.0625
        %v563 = vstv %s540
        %v564 = vmul.f32 %v563, %v561
        %v565 = vmul.f32 %v563, %v562
        %v566 = vadd.f32 %v539, %v564
        %v567 = vadd.f32 %v539, %v565
        %s568 = sld [smem:[#allocation4 + $0x9]]
        %v569 = vsel %vm541, %v531, -inf
        %v570 = vsel %vm541, %v534, -inf
        %v571 = vmax.f32 %v569, %v570
        %v572 = vrot.slane %v571, 4
        %v573 = vmax.f32 %v571, %v572
        %v574 = vrot.slane %v573, 2
        %v575 = vmax.f32 %v573, %v574
        %v576 = vrot.slane %v575, 1
        %v577 = vmax.f32 %v575, %v576
        %v578 = vsel %vm551, %v532, -inf
        %v579 = vsel %vm551, %v535, -inf
        %v580 = vmax.f32 %v578, %v579
        %v581 = vrot.slane %v580, 4
        %v582 = vmax.f32 %v580, %v581
        %v583 = vrot.slane %v582, 2
        %v584 = vmax.f32 %v582, %v583
        %v585 = vrot.slane %v584, 1
        %v586 = vmax.f32 %v584, %v585
        %v587 = vstv %s568
        %v588 = vmul.f32 %v587, %v577
        %v589 = vmul.f32 %v587, %v586
        %v590 = vadd.f32 %v566, %v588
        %v591 = vadd.f32 %v567, %v589
        %s592 = sld [smem:[#allocation4 + $0x1]]
        %vm593 = vcmask 1048432
        %v594 = vsel %vm593, %v531, 0.0
        %v595 = vsel %vm593, %v534, 0.0
        %v596 = vadd.f32 %v594, %v595
        %v597 = vrot.slane %v596, 4
        %v598 = vadd.f32 %v596, %v597
        %v599 = vrot.slane %v598, 2
        %v600 = vadd.f32 %v598, %v599
        %v601 = vrot.slane %v600, 1
        %v602 = vadd.f32 %v600, %v601
        %vm603 = vcmask 900096
        %v604 = vsel %vm603, %v532, 0.0
        %v605 = vsel %vm603, %v535, 0.0
        %v606 = vadd.f32 %v604, %v605
        %v607 = vrot.slane %v606, 4
        %v608 = vadd.f32 %v606, %v607
        %v609 = vrot.slane %v608, 2
        %v610 = vadd.f32 %v608, %v609
        %v611 = vrot.slane %v610, 1
        %v612 = vadd.f32 %v610, %v611
        %v613 = vmul.f32 %v602, 0.0625
        %v614 = vmul.f32 %v612, 0.0625
        %v615 = vstv %s592
        %v616 = vmul.f32 %v615, %v613
        %v617 = vmul.f32 %v615, %v614
        %620 = vrot.lane.b32.xlu0 %v616, 127
        %v621 = vpop.permute.xlu0 %620
        %622 = vrot.lane.b32.xlu0 %v617, 127
        %v623 = vpop.permute.xlu0 %622
        %vm624 = vcmask 1039360
        %v625 = vsel %vm624, %v621, %v623
        %v628 = vadd.f32 %v590, %v625
        %v629 = vadd.f32 %v591, %v623
        %s630 = sld [smem:[#allocation4 + $0xa]]
        %v631 = vsel %vm593, %v531, -inf
        %v632 = vsel %vm593, %v534, -inf
        %v633 = vmax.f32 %v631, %v632
        %v634 = vrot.slane %v633, 4
        %v635 = vmax.f32 %v633, %v634
        %v636 = vrot.slane %v635, 2
        %v637 = vmax.f32 %v635, %v636
        %v638 = vrot.slane %v637, 1
        %v639 = vmax.f32 %v637, %v638
        %v640 = vsel %vm603, %v532, -inf
        %v641 = vsel %vm603, %v535, -inf
        %v642 = vmax.f32 %v640, %v641
        %v643 = vrot.slane %v642, 4
        %v644 = vmax.f32 %v642, %v643
        %v645 = vrot.slane %v644, 2
        %v646 = vmax.f32 %v644, %v645
        %v647 = vrot.slane %v646, 1
        %v648 = vmax.f32 %v646, %v647
        %v649 = vstv %s630
        %v650 = vmul.f32 %v649, %v639
        %v651 = vmul.f32 %v649, %v648
        %654 = vrot.lane.b32.xlu0 %v650, 127
        %v655 = vpop.permute.xlu0 %654
        %656 = vrot.lane.b32.xlu0 %v651, 127
        %v657 = vpop.permute.xlu0 %656
        %v658 = vsel %vm624, %v655, %v657
        %v661 = vadd.f32 %v628, %v658
        %v662 = vadd.f32 %v629, %v657
        %s663 = sld [smem:[#allocation4 + $0x2]]
        %vm664 = vcmask 1048440
        %v665 = vsel %vm664, %v531, 0.0
        %v666 = vsel %vm664, %v534, 0.0
        %v667 = vadd.f32 %v665, %v666
        %v668 = vrot.slane %v667, 4
        %v669 = vadd.f32 %v667, %v668
        %v670 = vrot.slane %v669, 2
        %v671 = vadd.f32 %v669, %v670
        %v672 = vrot.slane %v671, 1
        %v673 = vadd.f32 %v671, %v672
        %vm674 = vcmask 908288
        %v675 = vsel %vm674, %v532, 0.0
        %v676 = vsel %vm674, %v535, 0.0
        %v677 = vadd.f32 %v675, %v676
        %v678 = vrot.slane %v677, 4
        %v679 = vadd.f32 %v677, %v678
        %v680 = vrot.slane %v679, 2
        %v681 = vadd.f32 %v679, %v680
        %v682 = vrot.slane %v681, 1
        %v683 = vadd.f32 %v681, %v682
        %v684 = vmul.f32 %v673, 0.0625
        %v685 = vmul.f32 %v683, 0.0625
        %v686 = vstv %s663
        %v687 = vmul.f32 %v686, %v684
        %v688 = vmul.f32 %v686, %v685
        %691 = vrot.lane.b32.xlu0 %v687, 126
        %v692 = vpop.permute.xlu0 %691
        %693 = vrot.lane.b32.xlu0 %v688, 126
        %v694 = vpop.permute.xlu0 %693
        %vm695 = vcmask 1031168
        %v696 = vsel %vm695, %v692, %v694
        %v699 = vadd.f32 %v661, %v696
        %v700 = vadd.f32 %v662, %v694
        %s701 = sld [smem:[#allocation4 + $0xb]]
        %v702 = vsel %vm664, %v531, -inf
        %v703 = vsel %vm664, %v534, -inf
        %v704 = vmax.f32 %v702, %v703
        %v705 = vrot.slane %v704, 4
        %v706 = vmax.f32 %v704, %v705
        %v707 = vrot.slane %v706, 2
        %v708 = vmax.f32 %v706, %v707
        %v709 = vrot.slane %v708, 1
        %v710 = vmax.f32 %v708, %v709
        %v711 = vsel %vm674, %v532, -inf
        %v712 = vsel %vm674, %v535, -inf
        %v713 = vmax.f32 %v711, %v712
        %v714 = vrot.slane %v713, 4
        %v715 = vmax.f32 %v713, %v714
        %v716 = vrot.slane %v715, 2
        %v717 = vmax.f32 %v715, %v716
        %v718 = vrot.slane %v717, 1
        %v719 = vmax.f32 %v717, %v718
        %v720 = vstv %s701
        %v721 = vmul.f32 %v720, %v710
        %v722 = vmul.f32 %v720, %v719
        %725 = vrot.lane.b32.xlu0 %v721, 126
        %v726 = vpop.permute.xlu0 %725
        %727 = vrot.lane.b32.xlu0 %v722, 126
        %v728 = vpop.permute.xlu0 %727
        %v729 = vsel %vm695, %v726, %v728
        %v732 = vadd.f32 %v699, %v729
        %v733 = vadd.f32 %v700, %v728
        %s734 = sld [smem:[#allocation4 + $0x3]]
        %vm735 = vcmask 1048568
        %v736 = vsel %vm735, %v531, 0.0
        %v737 = vsel %vm735, %v534, 0.0
        %v738 = vadd.f32 %v736, %v737
        %v739 = vrot.slane %v738, 4
        %v740 = vadd.f32 %v738, %v739
        %v741 = vrot.slane %v740, 2
        %v742 = vadd.f32 %v740, %v741
        %v743 = vrot.slane %v742, 1
        %v744 = vadd.f32 %v742, %v743
        %v745 = vsel %vm624, %v532, 0.0
        %v746 = vsel %vm624, %v535, 0.0
        %v747 = vadd.f32 %v745, %v746
        %v748 = vrot.slane %v747, 4
        %v749 = vadd.f32 %v747, %v748
        %v750 = vrot.slane %v749, 2
        %v751 = vadd.f32 %v749, %v750
        %v752 = vrot.slane %v751, 1
        %v753 = vadd.f32 %v751, %v752
        %v754 = vmul.f32 %v744, 0.0625
        %v755 = vmul.f32 %v753, 0.0625
        %v756 = vstv %s734
        %v757 = vmul.f32 %v756, %v754
        %v758 = vmul.f32 %v756, %v755
        %761 = vrot.lane.b32.xlu0 %v757, 110
        %v762 = vpop.permute.xlu0 %761
        %763 = vrot.lane.b32.xlu0 %v758, 110
        %v764 = vpop.permute.xlu0 %763
        %v765 = vsel %vm603, %v762, %v764
        %v768 = vadd.f32 %v732, %v765
        %v769 = vadd.f32 %v733, %v764
        %s770 = sld [smem:[#allocation4 + $0xc]]
        %v771 = vsel %vm735, %v531, -inf
        %v772 = vsel %vm735, %v534, -inf
        %v773 = vmax.f32 %v771, %v772
        %v774 = vrot.slane %v773, 4
        %v775 = vmax.f32 %v773, %v774
        %v776 = vrot.slane %v775, 2
        %v777 = vmax.f32 %v775, %v776
        %v778 = vrot.slane %v777, 1
        %v779 = vmax.f32 %v777, %v778
        %v780 = vsel %vm624, %v532, -inf
        %v781 = vsel %vm624, %v535, -inf
        %v782 = vmax.f32 %v780, %v781
        %v783 = vrot.slane %v782, 4
        %v784 = vmax.f32 %v782, %v783
        %v785 = vrot.slane %v784, 2
        %v786 = vmax.f32 %v784, %v785
        %v787 = vrot.slane %v786, 1
        %v788 = vmax.f32 %v786, %v787
        %v789 = vstv %s770
        %v790 = vmul.f32 %v789, %v779
        %v791 = vmul.f32 %v789, %v788
        %794 = vrot.lane.b32.xlu0 %v790, 110
        %v795 = vpop.permute.xlu0 %794
        %796 = vrot.lane.b32.xlu0 %v791, 110
        %v797 = vpop.permute.xlu0 %796
        %v798 = vsel %vm603, %v795, %v797
        %v801 = vadd.f32 %v768, %v798
        %v802 = vadd.f32 %v769, %v797
        %s803 = sld [smem:[#allocation4 + $0x4]]
        %v804 = vadd.f32 %v532, %v535
        %v805 = vrot.slane %v804, 4
        %v806 = vadd.f32 %v804, %v805
        %v807 = vrot.slane %v806, 2
        %v808 = vadd.f32 %v806, %v807
        %v809 = vrot.slane %v808, 1
        %v810 = vadd.f32 %v808, %v809
        %v811 = vmul.f32 %v810, 0.0625
        %v812 = vstv %s803
        %v813 = vmul.f32 %v812, %v811
        %815 = vrot.lane.b32.xlu0 %v813, 109
        %v816 = vpop.permute.xlu0 %815
        %v818 = vadd.f32 %v801, %v816
        %v819 = vadd.f32 %v802, %v816
        %s820 = sld [smem:[#allocation4 + $0xd]]
        %v821 = vmax.f32 %v532, %v535
        %v822 = vrot.slane %v821, 4
        %v823 = vmax.f32 %v821, %v822
        %v824 = vrot.slane %v823, 2
        %v825 = vmax.f32 %v823, %v824
        %v826 = vrot.slane %v825, 1
        %v827 = vmax.f32 %v825, %v826
        %v828 = vstv %s820
        %v829 = vmul.f32 %v828, %v827
        %831 = vrot.lane.b32.xlu0 %v829, 109
        %v832 = vpop.permute.xlu0 %831
        %v834 = vadd.f32 %v818, %v832
        %v835 = vadd.f32 %v819, %v832
        %s836 = sld [smem:[#allocation4 + $0x5]]
        %vm837 = vcmask 1047560
        %v838 = vsel %vm837, %v532, 0.0
        %v839 = vsel %vm837, %v535, 0.0
        %v840 = vadd.f32 %v838, %v839
        %v841 = vrot.slane %v840, 4
        %v842 = vadd.f32 %v840, %v841
        %v843 = vrot.slane %v842, 2
        %v844 = vadd.f32 %v842, %v843
        %v845 = vrot.slane %v844, 1
        %v846 = vadd.f32 %v844, %v845
        %vm847 = vcmask 7168
        %v848 = vsel %vm847, %v533, 0.0
        %v849 = vsel %vm847, %v536, 0.0
        %v850 = vadd.f32 %v848, %v849
        %v851 = vrot.slane %v850, 4
        %v852 = vadd.f32 %v850, %v851
        %v853 = vrot.slane %v852, 2
        %v854 = vadd.f32 %v852, %v853
        %v855 = vrot.slane %v854, 1
        %v856 = vadd.f32 %v854, %v855
        %v857 = vmul.f32 %v846, 0.0625
        %v858 = vmul.f32 %v856, 0.0625
        %v859 = vstv %s836
        %v860 = vmul.f32 %v859, %v857
        %v861 = vmul.f32 %v859, %v858
        %864 = vrot.lane.b32.xlu0 %v860, 108
        %v865 = vpop.permute.xlu0 %864
        %866 = vrot.lane.b32.xlu0 %v861, 108
        %v867 = vpop.permute.xlu0 %866
        %vm868 = vcmask 883712
        %v869 = vsel %vm868, %v865, %v867
        %v872 = vadd.f32 %v834, %v865
        %v873 = vadd.f32 %v835, %v869
        %s874 = sld [smem:[#allocation4 + $0xe]]
        %v875 = vsel %vm837, %v532, -inf
        %v876 = vsel %vm837, %v535, -inf
        %v877 = vmax.f32 %v875, %v876
        %v878 = vrot.slane %v877, 4
        %v879 = vmax.f32 %v877, %v878
        %v880 = vrot.slane %v879, 2
        %v881 = vmax.f32 %v879, %v880
        %v882 = vrot.slane %v881, 1
        %v883 = vmax.f32 %v881, %v882
        %v884 = vsel %vm847, %v533, -inf
        %v885 = vsel %vm847, %v536, -inf
        %v886 = vmax.f32 %v884, %v885
        %v887 = vrot.slane %v886, 4
        %v888 = vmax.f32 %v886, %v887
        %v889 = vrot.slane %v888, 2
        %v890 = vmax.f32 %v888, %v889
        %v891 = vrot.slane %v890, 1
        %v892 = vmax.f32 %v890, %v891
        %v893 = vstv %s874
        %v894 = vmul.f32 %v893, %v883
        %v895 = vmul.f32 %v893, %v892
        %898 = vrot.lane.b32.xlu0 %v894, 108
        %v899 = vpop.permute.xlu0 %898
        %900 = vrot.lane.b32.xlu0 %v895, 108
        %v901 = vpop.permute.xlu0 %900
        %v902 = vsel %vm868, %v899, %v901
        %v905 = vadd.f32 %v872, %v899
        %v906 = vadd.f32 %v873, %v902
        %s907 = sld [smem:[#allocation4 + $0x6]]
        %vm908 = vcmask 1047688
        %v909 = vsel %vm908, %v532, 0.0
        %v910 = vsel %vm908, %v535, 0.0
        %v911 = vadd.f32 %v909, %v910
        %v912 = vrot.slane %v911, 4
        %v913 = vadd.f32 %v911, %v912
        %v914 = vrot.slane %v913, 2
        %v915 = vadd.f32 %v913, %v914
        %v916 = vrot.slane %v915, 1
        %v917 = vadd.f32 %v915, %v916
        %vm918 = vcmask 138240
        %v919 = vsel %vm918, %v533, 0.0
        %v920 = vsel %vm918, %v536, 0.0
        %v921 = vadd.f32 %v919, %v920
        %v922 = vrot.slane %v921, 4
        %v923 = vadd.f32 %v921, %v922
        %v924 = vrot.slane %v923, 2
        %v925 = vadd.f32 %v923, %v924
        %v926 = vrot.slane %v925, 1
        %v927 = vadd.f32 %v925, %v926
        %v928 = vmul.f32 %v917, 0.0625
        %v929 = vmul.f32 %v927, 0.0625
        %v930 = vstv %s907
        %v931 = vmul.f32 %v930, %v928
        %v932 = vmul.f32 %v930, %v929
        %935 = vrot.lane.b32.xlu0 %v931, 92
        %v936 = vpop.permute.xlu0 %935
        %937 = vrot.lane.b32.xlu0 %v932, 92
        %v938 = vpop.permute.xlu0 %937
        %vm939 = vcmask 752640
        %v940 = vsel %vm939, %v936, %v938
        %v943 = vadd.f32 %v905, %v936
        %v944 = vadd.f32 %v906, %v940
        %s945 = sld [smem:[#allocation4 + $0xf]]
        %v946 = vsel %vm908, %v532, -inf
        %v947 = vsel %vm908, %v535, -inf
        %v948 = vmax.f32 %v946, %v947
        %v949 = vrot.slane %v948, 4
        %v950 = vmax.f32 %v948, %v949
        %v951 = vrot.slane %v950, 2
        %v952 = vmax.f32 %v950, %v951
        %v953 = vrot.slane %v952, 1
        %v954 = vmax.f32 %v952, %v953
        %v955 = vsel %vm918, %v533, -inf
        %v956 = vsel %vm918, %v536, -inf
        %v957 = vmax.f32 %v955, %v956
        %v958 = vrot.slane %v957, 4
        %v959 = vmax.f32 %v957, %v958
        %v960 = vrot.slane %v959, 2
        %v961 = vmax.f32 %v959, %v960
        %v962 = vrot.slane %v961, 1
        %v963 = vmax.f32 %v961, %v962
        %v964 = vstv %s945
        %v965 = vmul.f32 %v964, %v954
        %v966 = vmul.f32 %v964, %v963
        %969 = vrot.lane.b32.xlu0 %v965, 92
        %v970 = vpop.permute.xlu0 %969
        %971 = vrot.lane.b32.xlu0 %v966, 92
        %v972 = vpop.permute.xlu0 %971
        %v973 = vsel %vm939, %v970, %v972
        %v976 = vadd.f32 %v943, %v970
        %v977 = vadd.f32 %v944, %v973
        %s978 = sld [smem:[#allocation4 + $0x7]]
        %vm979 = vcmask 1047696
        %v980 = vsel %vm979, %v532, 0.0
        %v981 = vsel %vm979, %v535, 0.0
        %v982 = vadd.f32 %v980, %v981
        %v983 = vrot.slane %v982, 4
        %v984 = vadd.f32 %v982, %v983
        %v985 = vrot.slane %v984, 2
        %v986 = vadd.f32 %v984, %v985
        %v987 = vrot.slane %v986, 1
        %v988 = vadd.f32 %v986, %v987
        %vm989 = vcmask 146432
        %v990 = vsel %vm989, %v533, 0.0
        %v991 = vsel %vm989, %v536, 0.0
        %v992 = vadd.f32 %v990, %v991
        %v993 = vrot.slane %v992, 4
        %v994 = vadd.f32 %v992, %v993
        %v995 = vrot.slane %v994, 2
        %v996 = vadd.f32 %v994, %v995
        %v997 = vrot.slane %v996, 1
        %v998 = vadd.f32 %v996, %v997
        %v999 = vmul.f32 %v988, 0.0625
        %v1000 = vmul.f32 %v998, 0.0625
        %v1001 = vstv %s978
        %v1002 = vmul.f32 %v1001, %v999
        %v1003 = vmul.f32 %v1001, %v1000
        %1006 = vrot.lane.b32.xlu0 %v1002, 91
        %v1007 = vpop.permute.xlu0 %1006
        %1008 = vrot.lane.b32.xlu0 %v1003, 91
        %v1009 = vpop.permute.xlu0 %1008
        %vm1010 = vcmask 744448
        %v1011 = vsel %vm1010, %v1007, %v1009
        %v1014 = vadd.f32 %v976, %v1007
        %v1015 = vadd.f32 %v977, %v1011
        %s1016 = sld [smem:[#allocation4 + $0x10]]
        %v1017 = vsel %vm979, %v532, -inf
        %v1018 = vsel %vm979, %v535, -inf
        %v1019 = vmax.f32 %v1017, %v1018
        %v1020 = vrot.slane %v1019, 4
        %v1021 = vmax.f32 %v1019, %v1020
        %v1022 = vrot.slane %v1021, 2
        %v1023 = vmax.f32 %v1021, %v1022
        %v1024 = vrot.slane %v1023, 1
        %v1025 = vmax.f32 %v1023, %v1024
        %v1026 = vsel %vm989, %v533, -inf
        %v1027 = vsel %vm989, %v536, -inf
        %v1028 = vmax.f32 %v1026, %v1027
        %v1029 = vrot.slane %v1028, 4
        %v1030 = vmax.f32 %v1028, %v1029
        %v1031 = vrot.slane %v1030, 2
        %v1032 = vmax.f32 %v1030, %v1031
        %v1033 = vrot.slane %v1032, 1
        %v1034 = vmax.f32 %v1032, %v1033
        %v1035 = vstv %s1016
        %v1036 = vmul.f32 %v1035, %v1025
        %v1037 = vmul.f32 %v1035, %v1034
        %1040 = vrot.lane.b32.xlu0 %v1036, 91
        %v1041 = vpop.permute.xlu0 %1040
        %1042 = vrot.lane.b32.xlu0 %v1037, 91
        %v1043 = vpop.permute.xlu0 %1042
        %v1044 = vsel %vm1010, %v1041, %v1043
        %v1047 = vadd.f32 %v1014, %v1041
        %v1048 = vadd.f32 %v1015, %v1044
        %s1049 = sld [smem:[#allocation4 + $0x8]]
        %vm1050 = vcmask 1047704
        %v1051 = vsel %vm1050, %v532, 0.0
        %v1052 = vsel %vm1050, %v535, 0.0
        %v1053 = vadd.f32 %v1051, %v1052
        %v1054 = vrot.slane %v1053, 4
        %v1055 = vadd.f32 %v1053, %v1054
        %v1056 = vrot.slane %v1055, 2
        %v1057 = vadd.f32 %v1055, %v1056
        %v1058 = vrot.slane %v1057, 1
        %v1059 = vadd.f32 %v1057, %v1058
        %vm1060 = vcmask 154624
        %v1061 = vsel %vm1060, %v533, 0.0
        %v1062 = vsel %vm1060, %v536, 0.0
        %v1063 = vadd.f32 %v1061, %v1062
        %v1064 = vrot.slane %v1063, 4
        %v1065 = vadd.f32 %v1063, %v1064
        %v1066 = vrot.slane %v1065, 2
        %v1067 = vadd.f32 %v1065, %v1066
        %v1068 = vrot.slane %v1067, 1
        %v1069 = vadd.f32 %v1067, %v1068
        %v1070 = vmul.f32 %v1059, 0.0625
        %v1071 = vmul.f32 %v1069, 0.0625
        %v1072 = vstv %s1049
        %v1073 = vmul.f32 %v1072, %v1070
        %v1074 = vmul.f32 %v1072, %v1071
        %1077 = vrot.lane.b32.xlu0 %v1073, 90
        %v1078 = vpop.permute.xlu0 %1077
        %1079 = vrot.lane.b32.xlu0 %v1074, 90
        %v1080 = vpop.permute.xlu0 %1079
        %vm1081 = vcmask 736256
        %v1082 = vsel %vm1081, %v1078, %v1080
        %v1085 = vadd.f32 %v1047, %v1078
        %v1086 = vadd.f32 %v1048, %v1082
        %s1087 = sld [smem:[#allocation4 + $0x11]]
        %v1088 = vsel %vm1050, %v532, -inf
        %v1089 = vsel %vm1050, %v535, -inf
        %v1090 = vmax.f32 %v1088, %v1089
        %v1091 = vrot.slane %v1090, 4
        %v1092 = vmax.f32 %v1090, %v1091
        %v1093 = vrot.slane %v1092, 2
        %v1094 = vmax.f32 %v1092, %v1093
        %v1095 = vrot.slane %v1094, 1
        %v1096 = vmax.f32 %v1094, %v1095
        %v1097 = vsel %vm1060, %v533, -inf
        %v1098 = vsel %vm1060, %v536, -inf
        %v1099 = vmax.f32 %v1097, %v1098
        %v1100 = vrot.slane %v1099, 4
        %v1101 = vmax.f32 %v1099, %v1100
        %v1102 = vrot.slane %v1101, 2
        %v1103 = vmax.f32 %v1101, %v1102
        %v1104 = vrot.slane %v1103, 1
        %v1105 = vmax.f32 %v1103, %v1104
        %v1106 = vstv %s1087
        %v1107 = vmul.f32 %v1106, %v1096
        %v1108 = vmul.f32 %v1106, %v1105
        %1111 = vrot.lane.b32.xlu0 %v1107, 90
        %v1112 = vpop.permute.xlu0 %1111
        %1113 = vrot.lane.b32.xlu0 %v1108, 90
        %v1114 = vpop.permute.xlu0 %1113
        %v1115 = vsel %vm1081, %v1112, %v1114
        %v1118 = vadd.f32 %v1085, %v1112
        %v1119 = vadd.f32 %v1086, %v1115
        %v1120 = vxor.u32 %v1118, 2147483648
        %v1121 = vxor.u32 %v1119, 2147483648
        %v1122 = vmul.f32 %v1120, 1.442695
        %v1123 = vpow.pop %v1122
        %v1124 = vmul.f32 %v1121, 1.442695
        %v1125 = vpow.pop %v1124
        %v1126 = vadd.f32 %v1123, 1.0
        %v1127 = vadd.f32 %v1125, 1.0
        %v1128 = vrcp.pop %v1126
        %v1129 = vmul.f32 1.0, %v1128
        %v1130 = vrcp.pop %v1127
        %v1131 = vmul.f32 1.0, %v1130
        %v1132 = vld [vmem:[%s7] sm:$0xf]
        %v1133 = vld [vmem:[%s7 + $0x4] sm:$0xf]
        %v1134 = vld [vmem:[%s409] sm:$0x3]
        %v1135 = vld [vmem:[%s8] sm:$0xff]
        %v1136 = vld [vmem:[%s8 + $0x8] sm:$0xff]
        %1138 = vset.pattern.permute.xlu0 0
        %1139 = vperm.xlu0 %1138, %v1135
        %v1140 = vpop.permute.xlu0 %1139
        %1143 = vset.pattern.permute.xlu0 0
        %1144 = vperm.xlu0 %1143, %v1136
        %v1145 = vpop.permute.xlu0 %1144
        %v1149 = vunpack.c.l.b16 %v1132
        %v1150 = vunpack.c.l.b16 %v1133
        %v1151 = vpack.c.b16 %v1150, %v1149
        %vm1152 = vcmask 31744
        %v1154 = vsel %vm1152, %v1151, 0
        %vm1156 = vcmask 1041408
        %v1158 = vsel %vm1156, %v1134, 0
        %1160 = vmatprep.subr.bf16.mxu0 0
        %1161 = vmatpush1.bf16.msra.mxu0 0
        %1162 = vmatprep.subr.bf16.mxu0 0
        %1163 = vmatpush1.bf16.msra.mxu0 0
        %1164 = vmatprep.subr.bf16.mxu0 0
        %1165 = vmatpush1.bf16.msra.mxu0 0
        %1166 = vmatprep.subr.bf16.mxu0 0
        %1167 = vmatpush1.bf16.msra.mxu0 0
        %1168 = vmatprep.subr.bf16.mxu0 0
        %1169 = vmatpush1.bf16.msra.mxu0 0
        %1170 = vmatprep.subr.bf16.mxu0 0
        %1171 = vmatpush1.bf16.msra.mxu0 0
        %1172 = vmatprep.subr.bf16.mxu0 0
        %1173 = vmatpush1.bf16.msra.mxu0 0
        %1174 = vmatprep.subr.bf16.mxu0 0
        %1175 = vmatpush1.bf16.msra.mxu0 %v1158
        %1176 = vmatprep.subr.bf16.mxu0 0
        %1177 = vmatpush2.bf16.msra.mxu0 0
        %1178 = vmatprep.subr.bf16.mxu0 0
        %1179 = vmatpush2.bf16.msra.mxu0 0
        %1180 = vmatprep.subr.bf16.mxu0 0
        %1181 = vmatpush2.bf16.msra.mxu0 0
        %1182 = vmatprep.subr.bf16.mxu0 0
        %1183 = vmatpush2.bf16.msra.mxu0 0
        %1184 = vmatprep.subr.bf16.mxu0 0
        %1185 = vmatpush2.bf16.msra.mxu0 0
        %1186 = vmatprep.subr.bf16.mxu0 0
        %1187 = vmatpush2.bf16.msra.mxu0 0
        %1188 = vmatprep.subr.bf16.mxu0 0
        %1189 = vmatpush2.bf16.msra.mxu0 0
        %1190 = vmatprep.subr.bf16.mxu0 0
        %1191 = vmatpush2.bf16.msra.mxu0 0
        %1192 = vmatprep.mubr.bf16.mxu0 0
        %1193 = vmatmul.mubr.bf16.gmra.mxu0 %v1154
        %v1194 = vpop.f32.mrf.mxu0
        %v1195 = vadd.f32 %v1140, %v1194
        %v1196 = vpop.f32.mrf.mxu0
        %v1197 = vpop.f32.mrf.mxu0
        %v1198 = vadd.f32 %v1145, %v1197
        %v1199 = vpop.f32.mrf.mxu0
        %1200 = vdwg.mxu0
        %s1201 = sld [smem:[#allocation2 + %s26]]
        %v1202 = vstv %s1201
        %v1203 = vadd.f32 %v1202, %v1129
        %v1204 = vadd.f32 %v1202, %v1131
        %v1205 = vlaneseq
        %v1206 = vshrl.u32 %v1205, 7
        %v1207 = vsub.s32 0, %v1206
        %v1208 = vrot.slane %v1203, %v1207
        %v1209 = vlaneseq
        %v1210 = vshrl.u32 %v1209, 7
        %v1211 = vsub.s32 0, %v1210
        %v1212 = vrot.slane %v1204, %v1211
        %1215 = vrot.lane.b32.xlu0 %v1208, 19
        %v1216 = vpop.permute.xlu0 %1215
        %1217 = vrot.lane.b32.xlu0 %v1212, 19
        %v1218 = vpop.permute.xlu0 %1217
        %v1219 = vsel %vm1060, %v1216, %v1218
        %v1221 = vmul.f32 %v532, %v1219
        %v1222 = vmul.f32 %v535, %v1219
        %v1223 = vadd.f32 %v1221, %v1195
        %v1224 = vadd.f32 %v1222, %v1198
        %1225 = vst [vmem:[%s419] sm:$0xff] %v1223
        %1226 = vst [vmem:[%s419 + $0x8] sm:$0xff] %v1224
        %p1227 = scmp.lt.s32.totalorder %s26, 1
        %s1228 = scalar_select %p1227, %s26, 1
        %p1229 = scmp.lt.s32.totalorder %s27, 2
        %s1230 = scalar_select %p1229, %s27, 2
        %s1231 = smul.addr %s1230, 2
        %s1232 = smul.addr %s1228, 6
        %s1233 = sadd.s32 %s1231, %s1232
        %s1234 = smul.addr %s1233, 8
        %s1235 = scalar_lea.vmem %s9, %s1234
        // Predicated region
        $region65: #{double_conv_forward.5} parent=55 // pred_check
          %p1236 = pneg %p257
        $region66: #{double_conv_forward.5} parent=55 // pred_check_branch
          %1238 = sbr.rel (%p1236) target = $region68
        $region67: #{double_conv_forward.5} parent=55 // pred_region
          _
        $region68: #{double_conv_forward.5} parent=55 // pred_fallthru
          _
      $region56: #{double_conv_forward.5} parent=5 // pred_fallthru
        _
      %p1239 = scmp.le.s32.totalorder 2, %s17
      // Predicated region
      $region69: #{double_conv_forward.5} parent=5 // pred_check
        %p1240 = pneg %p1239
      $region70: #{double_conv_forward.5} parent=5 // pred_check_branch
        %1242 = sbr.rel (%p1240) target = $region72
      $region71: #{double_conv_forward.5} parent=5 // pred_region
        %s1243 = ssub.s32 %s17, 2
        // Predicated region
        $region73: #{double_conv_forward.5} parent=71 // pred_check
          %p1244 = pneg %p263
        $region74: #{double_conv_forward.5} parent=71 // pred_check_branch
          %1246 = sbr.rel (%p1244) target = $region76
        $region75: #{double_conv_forward.5} parent=71 // pred_region
          %p1247 = scmp.lt.s32.totalorder %s28, 1
          %s1248 = scalar_select %p1247, %s28, 1
          %p1249 = scmp.lt.s32.totalorder %s29, 2
          %s1250 = scalar_select %p1249, %s29, 2
          %s1251 = smul.addr %s1250, 2
          %s1252 = smul.addr %s1248, 6
          %s1253 = sadd.s32 %s1251, %s1252
          %s1254 = smul.addr %s1253, 8
          %s1255 = scalar_lea.vmem %s9, %s1254
        $region76: #{double_conv_forward.5} parent=71 // pred_fallthru
          _
      $region72: #{double_conv_forward.5} parent=5 // pred_fallthru
        _
    $region6: #{double_conv_forward.5} parent=1 // loop_footer
      %s21 = sadd.s32 1, %s17
    $region7: #{double_conv_forward.5} parent=1 // loop_footer_branch
      %16 = sbr.rel target = $region3
    $region8: #{double_conv_forward.5} parent=1 // loop_exit
      _
    %1256 = vsyncpa [#allocation3], 1
    %s1257 = scalar_lea.sflag [#allocation3], 1
    %1258 = vsyncpa %s1257, 1
    %1259 = vsyncpa [#allocation5], 1

</llo_original>
